<compile_context>
chip_gen: v5e
topology: v5e:2x2
jax: 0.10.0
libtpu: 0.0.40
codegen_flags: <defaults>
</compile_context>

<pallas_src>
import functools

import jax
import jax.numpy as jnp
from jax.experimental import pallas as pl
from jax.experimental.pallas import tpu as pltpu


# ----------------------------------------------------------------------------
# Plain-JAX glue: ResNet18-1D backbone (BatchNorm in training mode = batch stats)
# ----------------------------------------------------------------------------
def _conv1d(x, w, stride, pad):
    # x: (N, C, L), w: (O, I, K)
    return jax.lax.conv_general_dilated(
        x, w, window_strides=(stride,), padding=[(pad, pad)],
        dimension_numbers=("NCH", "OIH", "NCH"))


def _bn1d_train(x, gamma, beta, eps=1e-5):
    # x: (N, C, L); training-mode BatchNorm1d (biased var over N and L)
    mu = jnp.mean(x, axis=(0, 2), keepdims=True)
    var = jnp.mean((x - mu) ** 2, axis=(0, 2), keepdims=True)
    return gamma[None, :, None] * (x - mu) * jax.lax.rsqrt(var + eps) + beta[None, :, None]


def resnet18_1d(params, x):
    x = _conv1d(x, params["conv1"], 2, 3)
    x = jnp.maximum(_bn1d_train(x, *params["bn1"]), 0.0)
    x = jax.lax.reduce_window(x, -jnp.inf, jax.lax.max,
                              (1, 1, 3), (1, 1, 2),
                              ((0, 0), (0, 0), (1, 1)))  # MaxPool1d(3, 2, pad=1)
    for blk in params["blocks"]:
        s = blk["stride"]
        identity = x
        out = jnp.maximum(_bn1d_train(_conv1d(x, blk["c1"], s, 1), *blk["bn1"]), 0.0)
        out = _bn1d_train(_conv1d(out, blk["c2"], 1, 1), *blk["bn2"])
        if "down" in blk:
            dw, dg, db = blk["down"]
            identity = _bn1d_train(_conv1d(x, dw, s, 0), dg, db)
        x = jnp.maximum(out + identity, 0.0)
    return x  # (N, 512, L // 32)


# ----------------------------------------------------------------------------
# Pallas kernel: streamed avg-pool (grid over L', NLC bf16) + bottleneck + head
#                + cross-entropy + domain discriminator + BCE + accuracy
# ----------------------------------------------------------------------------
def dann_head_kernel(feat_ref, oh_ref,
                     w1_ref, wh_ref, dw1_ref, dw2_ref, vec_ref,
                     y_ref, sc_ref,
                     pooled_acc,
                     *, inv_len, n_src, n_real):
    step = pl.program_id(0)

    @pl.when(step == 0)
    def _init():
        pooled_acc[...] = jnp.zeros_like(pooled_acc)

    # Streaming nn.AdaptiveAvgPool1d(1): feat block is (TB_pad, tile_l, 512)
    # bf16 with channels in the lane dim -> the L'-sum is VPU/sublane work and
    # pooled (TB_pad, 512) is already lane-aligned for the MXU matmuls.
    pooled_acc[...] += jnp.sum(feat_ref[...].astype(jnp.float32), axis=1)

    @pl.when(step == pl.num_programs(0) - 1)
    def _epilogue():
        eps = 1e-5
        b = n_src                                   # B (static)
        tb_pad = pooled_acc.shape[0]
        inv_n = 1.0 / n_real

        pooled = pooled_acc[...] * inv_len          # (TB_pad, 512) == Flatten(avg_pool)

        # row-validity mask: rows [0, 2B) are real (src then tgt), rest is pad
        row = jax.lax.broadcasted_iota(jnp.int32, (tb_pad, 1), 0)
        valid = (row < n_real).astype(jnp.float32)  # (TB_pad, 1)

        # unpack the packed bias / BN-parameter slab (one (16,512) f32 load)
        vec = vec_ref[...]
        b1, g1, bb1 = vec[0:1, :256], vec[1:2, :256], vec[2:3, :256]
        bh = vec[3:4, :128]                         # -1e30 in the padded classes
        db1, dg1, dbb1 = vec[4:5, :], vec[5:6, :], vec[6:7, :]
        db2, dg2, dbb2 = vec[7:8, :], vec[8:9, :], vec[9:10, :]
        dw3 = vec[10:11, :]
        db3 = vec[11:12, 0:1]

        def bn_relu(h, g, bb):
            # training-mode BatchNorm1d over the real 2B rows only
            mu = jnp.sum(h * valid, axis=0, keepdims=True) * inv_n
            d = (h - mu) * valid
            var = jnp.sum(d * d, axis=0, keepdims=True) * inv_n
            return jnp.maximum(g * (h - mu) * jax.lax.rsqrt(var + eps) + bb, 0.0)

        def mm(a, w_ref):
            # bf16 operands (weights stored bf16), f32 accumulate on the MXU
            return jnp.dot(a.astype(jnp.bfloat16), w_ref[...],
                           preferred_element_type=jnp.float32)

        # Linear(512, 256) + BN + ReLU  -> feature f
        f = bn_relu(mm(pooled, w1_ref) + b1, g1, bb1)          # (TB_pad, 256)

        # classification head Linear(256, num_classes) padded to 128 lanes
        # (padded weight cols are 0, padded bias is -1e30 -> exp underflows)
        y = mm(f, wh_ref) + bh                                  # (TB_pad, 128)
        y_ref[...] = y                                          # sliced outside

        # F.cross_entropy(y_s, label_src), reduction='mean'; padded oh rows are 0
        m = jnp.max(y, axis=-1, keepdims=True)
        lse = m + jnp.log(jnp.sum(jnp.exp(y - m), axis=-1, keepdims=True))
        ce = jnp.sum(-oh_ref[...] * (y - lse), axis=-1, keepdims=True)   # (TB_pad, 1)
        lcls = jnp.sum(ce, axis=0, keepdims=True) * (1.0 / b)            # (1, 1)

        # Domain discriminator (GradientReverseLayer is identity in the forward)
        h1 = bn_relu(mm(f, dw1_ref) + db1, dg1, dbb1)           # (TB_pad, 512)
        h2 = bn_relu(mm(h1, dw2_ref) + db2, dg2, dbb2)          # (TB_pad, 512)
        # width-1 logit: elementwise multiply + lane reduction (no (512,1) matmul)
        logits = jnp.sum(h2 * dw3, axis=-1, keepdims=True) + db3        # (TB_pad, 1)

        def softplus(x):  # numerically stable BCE-with-logits formulation
            return jnp.maximum(x, 0.0) + jnp.log(1.0 + jnp.exp(-jnp.abs(x)))

        lg_s = logits[:b]           # real src rows
        lg_t = logits[b:n_real]     # real tgt rows
        # 0.5 * (BCE(sigmoid(d_s), 1) + BCE(sigmoid(d_t), 0)), mean reduction
        loss_s = jnp.mean(softplus(-lg_s), axis=0, keepdims=True)
        loss_t = jnp.mean(softplus(lg_t), axis=0, keepdims=True)
        ld = 0.5 * (loss_s + loss_t)                            # (1, 1)

        # 0.5*(binary_accuracy(d_s,1)+binary_accuracy(d_t,0)); sigmoid>=0.5 <=> x>=0
        acc_s = 100.0 * jnp.mean((lg_s >= 0.0).astype(jnp.float32),
                                 axis=0, keepdims=True)
        acc_t = 100.0 * jnp.mean((lg_t < 0.0).astype(jnp.float32),
                                 axis=0, keepdims=True)
        acc = 0.5 * (acc_s + acc_t)                             # (1, 1)

        # pack the three scalars into one lane-dense (1, 128) row
        lane = jax.lax.broadcasted_iota(jnp.int32, sc_ref.shape, 1)
        sc_ref[...] = (jnp.where(lane == 0, lcls, 0.0)
                       + jnp.where(lane == 1, ld, 0.0)
                       + jnp.where(lane == 2, acc, 0.0))


def _ceil_to(a, m):
    return -(-a // m) * m


def _vmem_budget():
    """Generation-aware (feat tile budget, vmem_limit_bytes)."""
    kind = ""
    try:
        kind = jax.devices()[0].device_kind.lower()
    except Exception:
        pass
    if "v7" in kind or "7x" in kind:                 # 64 MiB VMEM per TensorCore
        return 7 * 1024 * 1024, 48 * 1024 * 1024
    return 14 * 1024 * 1024, 80 * 1024 * 1024        # v5e / v6e: 128 MiB physical


def _choose_tile_l(l_total, rows, chans, bytes_per_elem, budget_bytes):
    """Pick an L'-tile (multiple of 16 for bf16 sublanes) and the padded L'."""
    bytes_per_l = rows * chans * bytes_per_elem
    cap = max(16, (budget_bytes // bytes_per_l) // 16 * 16)
    l16 = _ceil_to(l_total, 16)
    if l16 <= cap:
        return l16, l16                              # single lane/sublane-dense block
    nsteps = -(-l16 // cap)
    tile = _ceil_to(-(-l16 // nsteps), 16)
    return tile, nsteps * tile


def dann_forward_train(params, data_src, data_tgt, label_src, num_classes=3):
    """DANN.forward with self.training == True. Returns (y_t, loss_cls, loss_d, acc_d)."""
    B = data_src.shape[0]
    x = jnp.concatenate([data_src, data_tgt], axis=0)            # (2B, C, L), src first
    feat = resnet18_1d(params["backbone"], x)                    # (2B, 512, L') f32

    # NLC layout (channels lane-dense) + bf16 stream; one-time mem-bound XLA op.
    feat = jnp.transpose(feat, (0, 2, 1)).astype(jnp.bfloat16)   # (2B, L', 512)
    TB, Lp, C = feat.shape
    TB_pad = max(8, _ceil_to(TB, 8))

    tail = params["tail"]
    nc_pad = tail["wh"].shape[1]                                 # padded head width (128)
    oh = jax.nn.one_hot(label_src, nc_pad, dtype=jnp.float32)    # (B, nc_pad)
    oh = jnp.pad(oh, ((0, TB_pad - B), (0, 0)))                  # pad rows contribute 0

    feat_budget, vmem_limit = _vmem_budget()
    tile_l, Lp_pad = _choose_tile_l(Lp, TB_pad, C, 2, feat_budget)
    feat = jnp.pad(feat, ((0, TB_pad - TB), (0, Lp_pad - Lp), (0, 0)))
    grid = (Lp_pad // tile_l,)

    w1, wh, dw1, dw2, vec = tail["w1"], tail["wh"], tail["dw1"], tail["dw2"], tail["vec"]

    in_specs = [
        pl.BlockSpec((TB_pad, tile_l, C), lambda i: (0, i, 0)),  # streamed feat
        pl.BlockSpec(oh.shape, lambda i: (0, 0)),
        pl.BlockSpec(w1.shape, lambda i: (0, 0)),
        pl.BlockSpec(wh.shape, lambda i: (0, 0)),
        pl.BlockSpec(dw1.shape, lambda i: (0, 0)),
        pl.BlockSpec(dw2.shape, lambda i: (0, 0)),
        pl.BlockSpec(vec.shape, lambda i: (0, 0)),
    ]
    out_shapes = (jax.ShapeDtypeStruct((TB_pad, nc_pad), jnp.float32),  # padded y (all rows)
                  jax.ShapeDtypeStruct((1, 128), jnp.float32))          # packed scalars
    out_specs = (pl.BlockSpec((TB_pad, nc_pad), lambda i: (0, 0)),
                 pl.BlockSpec((1, 128), lambda i: (0, 0)))

    kernel = functools.partial(dann_head_kernel,
                               inv_len=1.0 / Lp, n_src=B, n_real=2 * B)

    y_full, sc = pl.pallas_call(
        kernel,
        grid=grid,
        in_specs=in_specs,
        out_specs=out_specs,
        out_shape=out_shapes,
        scratch_shapes=[pltpu.VMEM((TB_pad, C), jnp.float32)],   # pooled-sum accumulator
        compiler_params=pltpu.CompilerParams(
            dimension_semantics=("arbitrary",),                  # reduction over L' tiles
            vmem_limit_bytes=vmem_limit),
    )(feat, oh, w1, wh, dw1, dw2, vec)

    y_t = y_full[B:2 * B, :num_classes]
    return y_t, sc[0, 0], sc[0, 1], sc[0, 2]


# ----------------------------------------------------------------------------
# Deterministic parameter construction (synthetic, no checkpoint)
# ----------------------------------------------------------------------------
def make_params(key, in_channel=1, num_classes=3, nc_pad=128):
    kit = iter(jax.random.split(key, 48))

    def W(shape, scale=0.05):
        return (scale * jax.random.normal(next(kit), shape)).astype(jnp.float32)

    ones = lambda c: jnp.ones((c,), jnp.float32)
    zeros = lambda c: jnp.zeros((c,), jnp.float32)

    backbone = {"conv1": W((64, in_channel, 7)), "bn1": (ones(64), zeros(64)), "blocks": []}
    cfg = [(64, 64, 1), (64, 64, 1), (64, 128, 2), (128, 128, 1),
           (128, 256, 2), (256, 256, 1), (256, 512, 2), (512, 512, 1)]
    for cin, cout, s in cfg:
        blk = {"stride": s,
               "c1": W((cout, cin, 3)), "bn1": (ones(cout), zeros(cout)),
               "c2": W((cout, cout, 3)), "bn2": (ones(cout), zeros(cout))}
        if s != 1 or cin != cout:
            blk["down"] = (W((cout, cin, 1)), ones(cout), zeros(cout))
        backbone["blocks"].append(blk)

    NC = num_classes
    # matmul weights stored bf16 (MXU-native); biases / BN params stay f32
    w1 = W((512, 256)).astype(jnp.bfloat16)
    wh = jnp.zeros((256, nc_pad), jnp.float32).at[:, :NC].set(W((256, NC))).astype(jnp.bfloat16)
    dw1 = W((256, 512)).astype(jnp.bfloat16)
    dw2 = W((512, 512)).astype(jnp.bfloat16)

    # packed (16, 512) f32 slab of all small vectors:
    #  0: b1(256)  1: g1(256)  2: bb1(256)  3: bh(128, -1e30 pad)
    #  4: db1      5: dg1      6: dbb1      7: db2   8: dg2   9: dbb2
    # 10: dw3 row (512)       11: db3 scalar (col 0)  12-15: unused
    vec = jnp.zeros((16, 512), jnp.float32)
    vec = vec.at[1, :256].set(1.0)                      # g1
    vec = vec.at[3, NC:nc_pad].set(-1e30)               # head-bias padding
    vec = vec.at[5, :].set(1.0)                         # dg1
    vec = vec.at[8, :].set(1.0)                         # dg2
    vec = vec.at[10, :].set(W((512,)))                  # dw3 (Linear(512,1) weight row)

    tail = {"w1": w1, "wh": wh, "dw1": dw1, "dw2": dw2, "vec": vec}
    return {"backbone": backbone, "tail": tail}


if __name__ == "__main__":
    key = jax.random.PRNGKey(0)
    pkey, skey, tkey, lkey = jax.random.split(key, 4)

    in_channel, num_classes = 1, 3
    B, L = 2, 256                                   # small shapes
    params = make_params(pkey, in_channel, num_classes)

    data_src = jax.random.normal(skey, (B, in_channel, L), jnp.float32)
    data_tgt = jax.random.normal(tkey, (B, in_channel, L), jnp.float32)
    label_src = jax.random.randint(lkey, (B,), 0, num_classes)

    fwd = jax.jit(lambda ds, dt, ls: dann_forward_train(params, ds, dt, ls, num_classes))
    y_t, loss_cls, loss_d, acc_d = fwd(data_src, data_tgt, label_src)
    jax.block_until_ready((y_t, loss_cls, loss_d, acc_d))
    print("KERNEL_OK")
</pallas_src>

<mosaic_0001>
module attributes {stable_mosaic.version = 11 : i64} {
  func.func @dann_head_kernel(%arg0: i32, %arg1: memref<8x16x512xbf16, #tpu.memory_space<vmem>>, %arg2: memref<8x128xf32, #tpu.memory_space<vmem>>, %arg3: memref<512x256xbf16, #tpu.memory_space<vmem>>, %arg4: memref<256x128xbf16, #tpu.memory_space<vmem>>, %arg5: memref<256x512xbf16, #tpu.memory_space<vmem>>, %arg6: memref<512x512xbf16, #tpu.memory_space<vmem>>, %arg7: memref<16x512xf32, #tpu.memory_space<vmem>>, %arg8: memref<8x128xf32, #tpu.memory_space<vmem>>, %arg9: memref<1x128xf32, #tpu.memory_space<vmem>>, %arg10: memref<8x512xf32, #tpu.memory_space<vmem>>) attributes {dimension_semantics = [#tpu.dimension_semantics<arbitrary>], iteration_bounds = array<i64: 1>, scalar_prefetch = 0 : i64, scratch_operands = 1 : i64, tpu.core_type = #tpu.core_type<tc>, window_params = [{transform_indices = @transform_0, window_bounds = array<i64: 8, 16, 512>}, {pipeline_mode = #tpu.pipeline_mode<synchronous>, transform_indices = @transform_1, window_bounds = array<i64: 8, 128>}, {pipeline_mode = #tpu.pipeline_mode<synchronous>, transform_indices = @transform_2, window_bounds = array<i64: 512, 256>}, {pipeline_mode = #tpu.pipeline_mode<synchronous>, transform_indices = @transform_3, window_bounds = array<i64: 256, 128>}, {pipeline_mode = #tpu.pipeline_mode<synchronous>, transform_indices = @transform_4, window_bounds = array<i64: 256, 512>}, {pipeline_mode = #tpu.pipeline_mode<synchronous>, transform_indices = @transform_5, window_bounds = array<i64: 512, 512>}, {pipeline_mode = #tpu.pipeline_mode<synchronous>, transform_indices = @transform_6, window_bounds = array<i64: 16, 512>}, {pipeline_mode = #tpu.pipeline_mode<synchronous>, transform_indices = @transform_7, window_bounds = array<i64: 8, 128>}, {pipeline_mode = #tpu.pipeline_mode<synchronous>, transform_indices = @transform_8, window_bounds = array<i64: 1, 128>}]} {
    %c0_i32 = arith.constant 0 : i32
    %0 = arith.cmpi eq, %arg0, %c0_i32 : i32
    %1 = arith.extui %0 : i1 to i32
    %c0_i32_0 = arith.constant 0 : i32
    %2 = arith.cmpi ne, %1, %c0_i32_0 : i32
    scf.if %2 {
      %cst_9 = arith.constant 0.000000e+00 : f32
      %12 = vector.broadcast %cst_9 : f32 to vector<8x512xf32>
      %c0_10 = arith.constant 0 : index
      %c0_11 = arith.constant 0 : index
      %13 = vector.load %arg10[%c0_10, %c0_11] : memref<8x512xf32, #tpu.memory_space<vmem>>, vector<8x512xf32>
      tpu.vector_store %arg10[%c0_10, %c0_11], %12 {strides = array<i32>} : memref<8x512xf32, #tpu.memory_space<vmem>>, vector<8x512xf32>,
    } else {
    }
    %c0 = arith.constant 0 : index
    %c0_1 = arith.constant 0 : index
    %3 = vector.load %arg10[%c0, %c0_1] : memref<8x512xf32, #tpu.memory_space<vmem>>, vector<8x512xf32>
    %c0_2 = arith.constant 0 : index
    %c0_3 = arith.constant 0 : index
    %c0_4 = arith.constant 0 : index
    %4 = vector.load %arg1[%c0_2, %c0_3, %c0_4] : memref<8x16x512xbf16, #tpu.memory_space<vmem>>, vector<8x16x512xbf16>
    %5 = arith.extf %4 : vector<8x16x512xbf16> to vector<8x16x512xf32>
    %cst = arith.constant dense<0.000000e+00> : vector<8x512xf32>
    %6 = vector.multi_reduction <add>, %5, %cst [1] : vector<8x16x512xf32> to vector<8x512xf32>
    %7 = arith.addf %3, %6 : vector<8x512xf32>
    %c0_5 = arith.constant 0 : index
    %c0_6 = arith.constant 0 : index
    %8 = vector.load %arg10[%c0_5, %c0_6] : memref<8x512xf32, #tpu.memory_space<vmem>>, vector<8x512xf32>
    tpu.vector_store %arg10[%c0_5, %c0_6], %7 {strides = array<i32>} : memref<8x512xf32, #tpu.memory_space<vmem>>, vector<8x512xf32>,
    %c0_i32_7 = arith.constant 0 : i32
    %9 = arith.cmpi eq, %arg0, %c0_i32_7 : i32
    %10 = arith.extui %9 : i1 to i32
    %c0_i32_8 = arith.constant 0 : i32
    %11 = arith.cmpi ne, %10, %c0_i32_8 : i32
    scf.if %11 {
      %c0_9 = arith.constant 0 : index
      %c0_10 = arith.constant 0 : index
      %12 = vector.load %arg10[%c0_9, %c0_10] : memref<8x512xf32, #tpu.memory_space<vmem>>, vector<8x512xf32>
      %cst_11 = arith.constant 1.250000e-01 : f32
      %13 = vector.broadcast %cst_11 : f32 to vector<8x512xf32>
      %14 = arith.mulf %12, %13 : vector<8x512xf32>
      %15 = tpu.iota {dimensions = array<i32: 0>} : vector<8x1xi32>
      %c4_i32 = arith.constant 4 : i32
      %16 = vector.broadcast %c4_i32 : i32 to vector<8x1xi32>
      %17 = arith.cmpi slt, %15, %16 : vector<8x1xi32>
      %18 = arith.extui %17 : vector<8x1xi1> to vector<8x1xi32>
      %19 = arith.sitofp %18 : vector<8x1xi32> to vector<8x1xf32>
      %c0_12 = arith.constant 0 : index
      %c0_13 = arith.constant 0 : index
      %20 = vector.load %arg7[%c0_12, %c0_13] : memref<16x512xf32, #tpu.memory_space<vmem>>, vector<16x512xf32>
      %21 = vector.extract_strided_slice %20 {offsets = [0, 0], sizes = [1, 256], strides = [1, 1]} : vector<16x512xf32> to vector<1x256xf32>
      %22 = vector.extract_strided_slice %20 {offsets = [1, 0], sizes = [1, 256], strides = [1, 1]} : vector<16x512xf32> to vector<1x256xf32>
      %23 = vector.extract_strided_slice %20 {offsets = [2, 0], sizes = [1, 256], strides = [1, 1]} : vector<16x512xf32> to vector<1x256xf32>
      %24 = vector.extract_strided_slice %20 {offsets = [3, 0], sizes = [1, 128], strides = [1, 1]} : vector<16x512xf32> to vector<1x128xf32>
      %25 = vector.extract_strided_slice %20 {offsets = [4, 0], sizes = [1, 512], strides = [1, 1]} : vector<16x512xf32> to vector<1x512xf32>
      %26 = vector.extract_strided_slice %20 {offsets = [5, 0], sizes = [1, 512], strides = [1, 1]} : vector<16x512xf32> to vector<1x512xf32>
      %27 = vector.extract_strided_slice %20 {offsets = [6, 0], sizes = [1, 512], strides = [1, 1]} : vector<16x512xf32> to vector<1x512xf32>
      %28 = vector.extract_strided_slice %20 {offsets = [7, 0], sizes = [1, 512], strides = [1, 1]} : vector<16x512xf32> to vector<1x512xf32>
      %29 = vector.extract_strided_slice %20 {offsets = [8, 0], sizes = [1, 512], strides = [1, 1]} : vector<16x512xf32> to vector<1x512xf32>
      %30 = vector.extract_strided_slice %20 {offsets = [9, 0], sizes = [1, 512], strides = [1, 1]} : vector<16x512xf32> to vector<1x512xf32>
      %31 = vector.extract_strided_slice %20 {offsets = [10, 0], sizes = [1, 512], strides = [1, 1]} : vector<16x512xf32> to vector<1x512xf32>
      %32 = vector.extract_strided_slice %20 {offsets = [11, 0], sizes = [1, 1], strides = [1, 1]} : vector<16x512xf32> to vector<1x1xf32>
      %33 = arith.truncf %14 : vector<8x512xf32> to vector<8x512xbf16>
      %c0_14 = arith.constant 0 : index
      %c0_15 = arith.constant 0 : index
      %34 = vector.load %arg3[%c0_14, %c0_15] : memref<512x256xbf16, #tpu.memory_space<vmem>>, vector<512x256xbf16>
      %cst_16 = arith.constant dense<0.000000e+00> : vector<8x256xf32>
      %35 = tpu.matmul %33, %34, %cst_16 {dimension_numbers = #tpu.dot_dimension_numbers<[1], [0], [0], [1], [0, 0, 1, 1], [], []>} : vector<8x512xbf16>, vector<512x256xbf16>, vector<8x256xf32> -> vector<8x256xf32>
      %36 = vector.broadcast %21 : vector<1x256xf32> to vector<8x256xf32>
      %37 = arith.addf %35, %36 : vector<8x256xf32>
      %38 = vector.broadcast %19 : vector<8x1xf32> to vector<8x256xf32>
      %39 = arith.mulf %37, %38 : vector<8x256xf32>
      %cst_17 = arith.constant dense<0.000000e+00> : vector<256xf32>
      %40 = vector.multi_reduction <add>, %39, %cst_17 [0] : vector<8x256xf32> to vector<256xf32>
      %41 = vector.shape_cast %40 : vector<256xf32> to vector<1x256xf32>
      %cst_18 = arith.constant 2.500000e-01 : f32
      %42 = vector.broadcast %cst_18 : f32 to vector<1x256xf32>
      %43 = arith.mulf %41, %42 : vector<1x256xf32>
      %44 = vector.broadcast %43 : vector<1x256xf32> to vector<8x256xf32>
      %45 = arith.subf %37, %44 : vector<8x256xf32>
      %46 = vector.broadcast %19 : vector<8x1xf32> to vector<8x256xf32>
      %47 = arith.mulf %45, %46 : vector<8x256xf32>
      %48 = arith.mulf %47, %47 : vector<8x256xf32>
      %cst_19 = arith.constant dense<0.000000e+00> : vector<256xf32>
      %49 = vector.multi_reduction <add>, %48, %cst_19 [0] : vector<8x256xf32> to vector<256xf32>
      %50 = vector.shape_cast %49 : vector<256xf32> to vector<1x256xf32>
      %cst_20 = arith.constant 2.500000e-01 : f32
      %51 = vector.broadcast %cst_20 : f32 to vector<1x256xf32>
      %52 = arith.mulf %50, %51 : vector<1x256xf32>
      %53 = vector.broadcast %43 : vector<1x256xf32> to vector<8x256xf32>
      %54 = arith.subf %37, %53 : vector<8x256xf32>
      %55 = vector.broadcast %22 : vector<1x256xf32> to vector<8x256xf32>
      %56 = arith.mulf %55, %54 : vector<8x256xf32>
      %cst_21 = arith.constant 9.99999974E-6 : f32
      %57 = vector.broadcast %cst_21 : f32 to vector<1x256xf32>
      %58 = arith.addf %52, %57 : vector<1x256xf32>
      %59 = math.rsqrt %58 : vector<1x256xf32>
      %60 = vector.broadcast %59 : vector<1x256xf32> to vector<8x256xf32>
      %61 = arith.mulf %56, %60 : vector<8x256xf32>
      %62 = vector.broadcast %23 : vector<1x256xf32> to vector<8x256xf32>
      %63 = arith.addf %61, %62 : vector<8x256xf32>
      %cst_22 = arith.constant 0.000000e+00 : f32
      %64 = vector.broadcast %cst_22 : f32 to vector<8x256xf32>
      %65 = arith.maximumf %63, %64 : vector<8x256xf32>
      %66 = arith.truncf %65 : vector<8x256xf32> to vector<8x256xbf16>
      %c0_23 = arith.constant 0 : index
      %c0_24 = arith.constant 0 : index
      %67 = vector.load %arg4[%c0_23, %c0_24] : memref<256x128xbf16, #tpu.memory_space<vmem>>, vector<256x128xbf16>
      %cst_25 = arith.constant dense<0.000000e+00> : vector<8x128xf32>
      %68 = tpu.matmul %66, %67, %cst_25 {dimension_numbers = #tpu.dot_dimension_numbers<[1], [0], [0], [1], [0, 0, 1, 1], [], []>} : vector<8x256xbf16>, vector<256x128xbf16>, vector<8x128xf32> -> vector<8x128xf32>
      %69 = vector.broadcast %24 : vector<1x128xf32> to vector<8x128xf32>
      %70 = arith.addf %68, %69 : vector<8x128xf32>
      %c0_26 = arith.constant 0 : index
      %c0_27 = arith.constant 0 : index
      %71 = vector.load %arg8[%c0_26, %c0_27] : memref<8x128xf32, #tpu.memory_space<vmem>>, vector<8x128xf32>
      tpu.vector_store %arg8[%c0_26, %c0_27], %70 {strides = array<i32>} : memref<8x128xf32, #tpu.memory_space<vmem>>, vector<8x128xf32>,
      %cst_28 = arith.constant dense<0xFF800000> : vector<8xf32>
      %72 = vector.multi_reduction <maximumf>, %70, %cst_28 [1] : vector<8x128xf32> to vector<8xf32>
      %73 = vector.shape_cast %72 : vector<8xf32> to vector<8x1xf32>
      %74 = vector.broadcast %73 : vector<8x1xf32> to vector<8x128xf32>
      %75 = arith.subf %70, %74 : vector<8x128xf32>
      %76 = math.exp %75 : vector<8x128xf32>
      %cst_29 = arith.constant dense<0.000000e+00> : vector<8xf32>
      %77 = vector.multi_reduction <add>, %76, %cst_29 [1] : vector<8x128xf32> to vector<8xf32>
      %78 = vector.shape_cast %77 : vector<8xf32> to vector<8x1xf32>
      %79 = math.log %78 : vector<8x1xf32>
      %80 = arith.addf %73, %79 : vector<8x1xf32>
      %c0_30 = arith.constant 0 : index
      %c0_31 = arith.constant 0 : index
      %81 = vector.load %arg2[%c0_30, %c0_31] : memref<8x128xf32, #tpu.memory_space<vmem>>, vector<8x128xf32>
      %cst_32 = arith.constant 0.000000e+00 : f32
      %82 = vector.broadcast %cst_32 : f32 to vector<8x128xf32>
      %83 = arith.subf %82, %81 : vector<8x128xf32>
      %84 = vector.broadcast %80 : vector<8x1xf32> to vector<8x128xf32>
      %85 = arith.subf %70, %84 : vector<8x128xf32>
      %86 = arith.mulf %83, %85 : vector<8x128xf32>
      %cst_33 = arith.constant dense<0.000000e+00> : vector<8xf32>
      %87 = vector.multi_reduction <add>, %86, %cst_33 [1] : vector<8x128xf32> to vector<8xf32>
      %88 = vector.shape_cast %87 : vector<8xf32> to vector<8x1xf32>
      %cst_34 = arith.constant dense<0.000000e+00> : vector<1xf32>
      %89 = vector.multi_reduction <add>, %88, %cst_34 [0] : vector<8x1xf32> to vector<1xf32>
      %90 = vector.shape_cast %89 : vector<1xf32> to vector<1x1xf32>
      %cst_35 = arith.constant 5.000000e-01 : f32
      %91 = vector.broadcast %cst_35 : f32 to vector<1x1xf32>
      %92 = arith.mulf %90, %91 : vector<1x1xf32>
      %93 = arith.truncf %65 : vector<8x256xf32> to vector<8x256xbf16>
      %c0_36 = arith.constant 0 : index
      %c0_37 = arith.constant 0 : index
      %94 = vector.load %arg5[%c0_36, %c0_37] : memref<256x512xbf16, #tpu.memory_space<vmem>>, vector<256x512xbf16>
      %cst_38 = arith.constant dense<0.000000e+00> : vector<8x512xf32>
      %95 = tpu.matmul %93, %94, %cst_38 {dimension_numbers = #tpu.dot_dimension_numbers<[1], [0], [0], [1], [0, 0, 1, 1], [], []>} : vector<8x256xbf16>, vector<256x512xbf16>, vector<8x512xf32> -> vector<8x512xf32>
      %96 = vector.broadcast %25 : vector<1x512xf32> to vector<8x512xf32>
      %97 = arith.addf %95, %96 : vector<8x512xf32>
      %98 = vector.broadcast %19 : vector<8x1xf32> to vector<8x512xf32>
      %99 = arith.mulf %97, %98 : vector<8x512xf32>
      %cst_39 = arith.constant dense<0.000000e+00> : vector<512xf32>
      %100 = vector.multi_reduction <add>, %99, %cst_39 [0] : vector<8x512xf32> to vector<512xf32>
      %101 = vector.shape_cast %100 : vector<512xf32> to vector<1x512xf32>
      %cst_40 = arith.constant 2.500000e-01 : f32
      %102 = vector.broadcast %cst_40 : f32 to vector<1x512xf32>
      %103 = arith.mulf %101, %102 : vector<1x512xf32>
      %104 = vector.broadcast %103 : vector<1x512xf32> to vector<8x512xf32>
      %105 = arith.subf %97, %104 : vector<8x512xf32>
      %106 = vector.broadcast %19 : vector<8x1xf32> to vector<8x512xf32>
      %107 = arith.mulf %105, %106 : vector<8x512xf32>
      %108 = arith.mulf %107, %107 : vector<8x512xf32>
      %cst_41 = arith.constant dense<0.000000e+00> : vector<512xf32>
      %109 = vector.multi_reduction <add>, %108, %cst_41 [0] : vector<8x512xf32> to vector<512xf32>
      %110 = vector.shape_cast %109 : vector<512xf32> to vector<1x512xf32>
      %cst_42 = arith.constant 2.500000e-01 : f32
      %111 = vector.broadcast %cst_42 : f32 to vector<1x512xf32>
      %112 = arith.mulf %110, %111 : vector<1x512xf32>
      %113 = vector.broadcast %103 : vector<1x512xf32> to vector<8x512xf32>
      %114 = arith.subf %97, %113 : vector<8x512xf32>
      %115 = vector.broadcast %26 : vector<1x512xf32> to vector<8x512xf32>
      %116 = arith.mulf %115, %114 : vector<8x512xf32>
      %cst_43 = arith.constant 9.99999974E-6 : f32
      %117 = vector.broadcast %cst_43 : f32 to vector<1x512xf32>
      %118 = arith.addf %112, %117 : vector<1x512xf32>
      %119 = math.rsqrt %118 : vector<1x512xf32>
      %120 = vector.broadcast %119 : vector<1x512xf32> to vector<8x512xf32>
      %121 = arith.mulf %116, %120 : vector<8x512xf32>
      %122 = vector.broadcast %27 : vector<1x512xf32> to vector<8x512xf32>
      %123 = arith.addf %121, %122 : vector<8x512xf32>
      %cst_44 = arith.constant 0.000000e+00 : f32
      %124 = vector.broadcast %cst_44 : f32 to vector<8x512xf32>
      %125 = arith.maximumf %123, %124 : vector<8x512xf32>
      %126 = arith.truncf %125 : vector<8x512xf32> to vector<8x512xbf16>
      %c0_45 = arith.constant 0 : index
      %c0_46 = arith.constant 0 : index
      %127 = vector.load %arg6[%c0_45, %c0_46] : memref<512x512xbf16, #tpu.memory_space<vmem>>, vector<512x512xbf16>
      %cst_47 = arith.constant dense<0.000000e+00> : vector<8x512xf32>
      %128 = tpu.matmul %126, %127, %cst_47 {dimension_numbers = #tpu.dot_dimension_numbers<[1], [0], [0], [1], [0, 0, 1, 1], [], []>} : vector<8x512xbf16>, vector<512x512xbf16>, vector<8x512xf32> -> vector<8x512xf32>
      %129 = vector.broadcast %28 : vector<1x512xf32> to vector<8x512xf32>
      %130 = arith.addf %128, %129 : vector<8x512xf32>
      %131 = vector.broadcast %19 : vector<8x1xf32> to vector<8x512xf32>
      %132 = arith.mulf %130, %131 : vector<8x512xf32>
      %cst_48 = arith.constant dense<0.000000e+00> : vector<512xf32>
      %133 = vector.multi_reduction <add>, %132, %cst_48 [0] : vector<8x512xf32> to vector<512xf32>
      %134 = vector.shape_cast %133 : vector<512xf32> to vector<1x512xf32>
      %cst_49 = arith.constant 2.500000e-01 : f32
      %135 = vector.broadcast %cst_49 : f32 to vector<1x512xf32>
      %136 = arith.mulf %134, %135 : vector<1x512xf32>
      %137 = vector.broadcast %136 : vector<1x512xf32> to vector<8x512xf32>
      %138 = arith.subf %130, %137 : vector<8x512xf32>
      %139 = vector.broadcast %19 : vector<8x1xf32> to vector<8x512xf32>
      %140 = arith.mulf %138, %139 : vector<8x512xf32>
      %141 = arith.mulf %140, %140 : vector<8x512xf32>
      %cst_50 = arith.constant dense<0.000000e+00> : vector<512xf32>
      %142 = vector.multi_reduction <add>, %141, %cst_50 [0] : vector<8x512xf32> to vector<512xf32>
      %143 = vector.shape_cast %142 : vector<512xf32> to vector<1x512xf32>
      %cst_51 = arith.constant 2.500000e-01 : f32
      %144 = vector.broadcast %cst_51 : f32 to vector<1x512xf32>
      %145 = arith.mulf %143, %144 : vector<1x512xf32>
      %146 = vector.broadcast %136 : vector<1x512xf32> to vector<8x512xf32>
      %147 = arith.subf %130, %146 : vector<8x512xf32>
      %148 = vector.broadcast %29 : vector<1x512xf32> to vector<8x512xf32>
      %149 = arith.mulf %148, %147 : vector<8x512xf32>
      %cst_52 = arith.constant 9.99999974E-6 : f32
      %150 = vector.broadcast %cst_52 : f32 to vector<1x512xf32>
      %151 = arith.addf %145, %150 : vector<1x512xf32>
      %152 = math.rsqrt %151 : vector<1x512xf32>
      %153 = vector.broadcast %152 : vector<1x512xf32> to vector<8x512xf32>
      %154 = arith.mulf %149, %153 : vector<8x512xf32>
      %155 = vector.broadcast %30 : vector<1x512xf32> to vector<8x512xf32>
      %156 = arith.addf %154, %155 : vector<8x512xf32>
      %cst_53 = arith.constant 0.000000e+00 : f32
      %157 = vector.broadcast %cst_53 : f32 to vector<8x512xf32>
      %158 = arith.maximumf %156, %157 : vector<8x512xf32>
      %159 = vector.broadcast %31 : vector<1x512xf32> to vector<8x512xf32>
      %160 = arith.mulf %158, %159 : vector<8x512xf32>
      %cst_54 = arith.constant dense<0.000000e+00> : vector<8xf32>
      %161 = vector.multi_reduction <add>, %160, %cst_54 [1] : vector<8x512xf32> to vector<8xf32>
      %162 = vector.shape_cast %161 : vector<8xf32> to vector<8x1xf32>
      %163 = vector.broadcast %32 : vector<1x1xf32> to vector<8x1xf32>
      %164 = arith.addf %162, %163 : vector<8x1xf32>
      %165 = vector.extract_strided_slice %164 {offsets = [0, 0], sizes = [2, 1], strides = [1, 1]} : vector<8x1xf32> to vector<2x1xf32>
      %166 = vector.extract_strided_slice %164 {offsets = [2, 0], sizes = [2, 1], strides = [1, 1]} : vector<8x1xf32> to vector<2x1xf32>
      %cst_55 = arith.constant 0.000000e+00 : f32
      %167 = vector.broadcast %cst_55 : f32 to vector<2x1xf32>
      %168 = arith.subf %167, %165 : vector<2x1xf32>
      %cst_56 = arith.constant 0.000000e+00 : f32
      %169 = vector.broadcast %cst_56 : f32 to vector<2x1xf32>
      %170 = arith.maximumf %168, %169 : vector<2x1xf32>
      %171 = math.absf %168 : vector<2x1xf32>
      %cst_57 = arith.constant 0.000000e+00 : f32
      %172 = vector.broadcast %cst_57 : f32 to vector<2x1xf32>
      %173 = arith.subf %172, %171 : vector<2x1xf32>
      %174 = math.exp %173 : vector<2x1xf32>
      %cst_58 = arith.constant 1.000000e+00 : f32
      %175 = vector.broadcast %cst_58 : f32 to vector<2x1xf32>
      %176 = arith.addf %175, %174 : vector<2x1xf32>
      %177 = math.log %176 : vector<2x1xf32>
      %178 = arith.addf %170, %177 : vector<2x1xf32>
      %cst_59 = arith.constant dense<0.000000e+00> : vector<1xf32>
      %179 = vector.multi_reduction <add>, %178, %cst_59 [0] : vector<2x1xf32> to vector<1xf32>
      %180 = vector.shape_cast %179 : vector<1xf32> to vector<1x1xf32>
      %cst_60 = arith.constant 2.000000e+00 : f32
      %181 = vector.broadcast %cst_60 : f32 to vector<1x1xf32>
      %182 = arith.divf %180, %181 : vector<1x1xf32>
      %cst_61 = arith.constant 0.000000e+00 : f32
      %183 = vector.broadcast %cst_61 : f32 to vector<2x1xf32>
      %184 = arith.maximumf %166, %183 : vector<2x1xf32>
      %185 = math.absf %166 : vector<2x1xf32>
      %cst_62 = arith.constant 0.000000e+00 : f32
      %186 = vector.broadcast %cst_62 : f32 to vector<2x1xf32>
      %187 = arith.subf %186, %185 : vector<2x1xf32>
      %188 = math.exp %187 : vector<2x1xf32>
      %cst_63 = arith.constant 1.000000e+00 : f32
      %189 = vector.broadcast %cst_63 : f32 to vector<2x1xf32>
      %190 = arith.addf %189, %188 : vector<2x1xf32>
      %191 = math.log %190 : vector<2x1xf32>
      %192 = arith.addf %184, %191 : vector<2x1xf32>
      %cst_64 = arith.constant dense<0.000000e+00> : vector<1xf32>
      %193 = vector.multi_reduction <add>, %192, %cst_64 [0] : vector<2x1xf32> to vector<1xf32>
      %194 = vector.shape_cast %193 : vector<1xf32> to vector<1x1xf32>
      %cst_65 = arith.constant 2.000000e+00 : f32
      %195 = vector.broadcast %cst_65 : f32 to vector<1x1xf32>
      %196 = arith.divf %194, %195 : vector<1x1xf32>
      %197 = arith.addf %182, %196 : vector<1x1xf32>
      %cst_66 = arith.constant 5.000000e-01 : f32
      %198 = vector.broadcast %cst_66 : f32 to vector<1x1xf32>
      %199 = arith.mulf %198, %197 : vector<1x1xf32>
      %cst_67 = arith.constant 0.000000e+00 : f32
      %200 = vector.broadcast %cst_67 : f32 to vector<2x1xf32>
      %201 = arith.cmpf oge, %165, %200 : vector<2x1xf32>
      %202 = arith.extui %201 : vector<2x1xi1> to vector<2x1xi32>
      %203 = arith.sitofp %202 : vector<2x1xi32> to vector<2x1xf32>
      %cst_68 = arith.constant dense<0.000000e+00> : vector<1xf32>
      %204 = vector.multi_reduction <add>, %203, %cst_68 [0] : vector<2x1xf32> to vector<1xf32>
      %205 = vector.shape_cast %204 : vector<1xf32> to vector<1x1xf32>
      %cst_69 = arith.constant 2.000000e+00 : f32
      %206 = vector.broadcast %cst_69 : f32 to vector<1x1xf32>
      %207 = arith.divf %205, %206 : vector<1x1xf32>
      %cst_70 = arith.constant 1.000000e+02 : f32
      %208 = vector.broadcast %cst_70 : f32 to vector<1x1xf32>
      %209 = arith.mulf %208, %207 : vector<1x1xf32>
      %cst_71 = arith.constant 0.000000e+00 : f32
      %210 = vector.broadcast %cst_71 : f32 to vector<2x1xf32>
      %211 = arith.cmpf olt, %166, %210 : vector<2x1xf32>
      %212 = arith.extui %211 : vector<2x1xi1> to vector<2x1xi32>
      %213 = arith.sitofp %212 : vector<2x1xi32> to vector<2x1xf32>
      %cst_72 = arith.constant dense<0.000000e+00> : vector<1xf32>
      %214 = vector.multi_reduction <add>, %213, %cst_72 [0] : vector<2x1xf32> to vector<1xf32>
      %215 = vector.shape_cast %214 : vector<1xf32> to vector<1x1xf32>
      %cst_73 = arith.constant 2.000000e+00 : f32
      %216 = vector.broadcast %cst_73 : f32 to vector<1x1xf32>
      %217 = arith.divf %215, %216 : vector<1x1xf32>
      %cst_74 = arith.constant 1.000000e+02 : f32
      %218 = vector.broadcast %cst_74 : f32 to vector<1x1xf32>
      %219 = arith.mulf %218, %217 : vector<1x1xf32>
      %220 = arith.addf %209, %219 : vector<1x1xf32>
      %cst_75 = arith.constant 5.000000e-01 : f32
      %221 = vector.broadcast %cst_75 : f32 to vector<1x1xf32>
      %222 = arith.mulf %221, %220 : vector<1x1xf32>
      %223 = tpu.iota {dimensions = array<i32: 1>} : vector<1x128xi32>
      %c0_i32_76 = arith.constant 0 : i32
      %224 = vector.broadcast %c0_i32_76 : i32 to vector<1x128xi32>
      %225 = arith.cmpi eq, %223, %224 : vector<1x128xi32>
      %cst_77 = arith.constant 0.000000e+00 : f32
      %226 = vector.shape_cast %92 : vector<1x1xf32> to vector<1x1xf32>
      %227 = vector.broadcast %226 : vector<1x1xf32> to vector<1x128xf32>
      %228 = vector.broadcast %cst_77 : f32 to vector<1x128xf32>
      %229 = arith.select %225, %227, %228 : vector<1x128xi1>, vector<1x128xf32>
      %c1_i32 = arith.constant 1 : i32
      %230 = vector.broadcast %c1_i32 : i32 to vector<1x128xi32>
      %231 = arith.cmpi eq, %223, %230 : vector<1x128xi32>
      %cst_78 = arith.constant 0.000000e+00 : f32
      %232 = vector.shape_cast %199 : vector<1x1xf32> to vector<1x1xf32>
      %233 = vector.broadcast %232 : vector<1x1xf32> to vector<1x128xf32>
      %234 = vector.broadcast %cst_78 : f32 to vector<1x128xf32>
      %235 = arith.select %231, %233, %234 : vector<1x128xi1>, vector<1x128xf32>
      %236 = arith.addf %229, %235 : vector<1x128xf32>
      %c2_i32 = arith.constant 2 : i32
      %237 = vector.broadcast %c2_i32 : i32 to vector<1x128xi32>
      %238 = arith.cmpi eq, %223, %237 : vector<1x128xi32>
      %cst_79 = arith.constant 0.000000e+00 : f32
      %239 = vector.shape_cast %222 : vector<1x1xf32> to vector<1x1xf32>
      %240 = vector.broadcast %239 : vector<1x1xf32> to vector<1x128xf32>
      %241 = vector.broadcast %cst_79 : f32 to vector<1x128xf32>
      %242 = arith.select %238, %240, %241 : vector<1x128xi1>, vector<1x128xf32>
      %243 = arith.addf %236, %242 : vector<1x128xf32>
      %c0_80 = arith.constant 0 : index
      %c0_81 = arith.constant 0 : index
      %244 = vector.load %arg9[%c0_80, %c0_81] : memref<1x128xf32, #tpu.memory_space<vmem>>, vector<1x128xf32>
      tpu.vector_store %arg9[%c0_80, %c0_81], %243 {strides = array<i32>} : memref<1x128xf32, #tpu.memory_space<vmem>>, vector<1x128xf32>,
    } else {
    }
    return
  }
  func.func @transform_0(%arg0: i32) -> (i32, i32, i32) {
    %c0_i32 = arith.constant 0 : i32
    %c0_i32_0 = arith.constant 0 : i32
    %c0_i32_1 = arith.constant 0 : i32
    return %c0_i32, %arg0, %c0_i32_0 : i32, i32, i32
  }
  func.func @transform_1(%arg0: i32) -> (i32, i32) {
    %c0_i32 = arith.constant 0 : i32
    %c0_i32_0 = arith.constant 0 : i32
    %c0_i32_1 = arith.constant 0 : i32
    return %c0_i32, %c0_i32_0 : i32, i32
  }
  func.func @transform_2(%arg0: i32) -> (i32, i32) {
    %c0_i32 = arith.constant 0 : i32
    %c0_i32_0 = arith.constant 0 : i32
    %c0_i32_1 = arith.constant 0 : i32
    return %c0_i32, %c0_i32_0 : i32, i32
  }
  func.func @transform_3(%arg0: i32) -> (i32, i32) {
    %c0_i32 = arith.constant 0 : i32
    %c0_i32_0 = arith.constant 0 : i32
    %c0_i32_1 = arith.constant 0 : i32
    return %c0_i32, %c0_i32_0 : i32, i32
  }
  func.func @transform_4(%arg0: i32) -> (i32, i32) {
    %c0_i32 = arith.constant 0 : i32
    %c0_i32_0 = arith.constant 0 : i32
    %c0_i32_1 = arith.constant 0 : i32
    return %c0_i32, %c0_i32_0 : i32, i32
  }
  func.func @transform_5(%arg0: i32) -> (i32, i32) {
    %c0_i32 = arith.constant 0 : i32
    %c0_i32_0 = arith.constant 0 : i32
    %c0_i32_1 = arith.constant 0 : i32
    return %c0_i32, %c0_i32_0 : i32, i32
  }
  func.func @transform_6(%arg0: i32) -> (i32, i32) {
    %c0_i32 = arith.constant 0 : i32
    %c0_i32_0 = arith.constant 0 : i32
    %c0_i32_1 = arith.constant 0 : i32
    return %c0_i32, %c0_i32_0 : i32, i32
  }
  func.func @transform_7(%arg0: i32) -> (i32, i32) {
    %c0_i32 = arith.constant 0 : i32
    %c0_i32_0 = arith.constant 0 : i32
    %c0_i32_1 = arith.constant 0 : i32
    return %c0_i32, %c0_i32_0 : i32, i32
  }
  func.func @transform_8(%arg0: i32) -> (i32, i32) {
    %c0_i32 = arith.constant 0 : i32
    %c0_i32_0 = arith.constant 0 : i32
    %c0_i32_1 = arith.constant 0 : i32
    return %c0_i32, %c0_i32_0 : i32, i32
  }
}

</mosaic_0001>

<llo_original>
// kernel: _lambda_.1
$region0: #{_lambda_.1}
  #allocation0 [shape = 'u32[]', space=smem, size = 0x4, offset = 0x4, fixed_abs, tag = 'smem constant byte address 0x4 - core index']
  #allocation1 [shape = 'u32[72,128]{1,0:T(1,128)}', space=vmem, size = 0x9000, scoped, tag = 'internal scratch']
  #allocation2 [shape = 'f32[8,512]{1,0:T(8,128)}', space=vmem, size = 0x4000, scoped, tag = 'scratch operand']
  %s0 = inlined_call_operand.vmem [shape: bf16[8,16,512], index: 0, kind: input, shape index: {}]
  %s1 = inlined_call_operand.vmem [shape: f32[8,128], index: 1, kind: input, shape index: {}]
  %s2 = inlined_call_operand.vmem [shape: bf16[512,256], index: 2, kind: input, shape index: {}]
  %s3 = inlined_call_operand.vmem [shape: bf16[256,128], index: 3, kind: input, shape index: {}]
  %s4 = inlined_call_operand.vmem [shape: bf16[256,512], index: 4, kind: input, shape index: {}]
  %s5 = inlined_call_operand.vmem [shape: bf16[512,512], index: 5, kind: input, shape index: {}]
  %s6 = inlined_call_operand.vmem [shape: f32[16,512], index: 6, kind: input, shape index: {}]
  %s7 = inlined_call_operand.vmem [shape: f32[8,128], index: 7, kind: output, shape index: {0}]
  %s8 = inlined_call_operand.vmem [shape: f32[1,128], index: 8, kind: output, shape index: {1}]
  %9 = xla_tuple %s7, %s8
  %s10 = sld [smem:[#allocation0]]
  $region54: #{_lambda_.1} parent=0
    _
  %s12 = ssub.s32 1, %s10
  %s13 = scalar_select 0, %s12, %s10
  // Predicated region
  $region2: #{_lambda_.1} parent=0 // pred_check
    _
  $region3: #{_lambda_.1} parent=0 // pred_check_branch
    %15 = sbr.rel (0) target = $region5
  $region4: #{_lambda_.1} parent=0 // pred_region
    _
  $region5: #{_lambda_.1} parent=0 // pred_fallthru
    _
  // Predicated region
  $region6: #{_lambda_.1} parent=0 // pred_check
    _
  $region7: #{_lambda_.1} parent=0 // pred_check_branch
    %17 = sbr.rel (0) target = $region9
  $region8: #{_lambda_.1} parent=0 // pred_region
    _
  $region9: #{_lambda_.1} parent=0 // pred_fallthru
    _
  // Predicated region
  $region10: #{_lambda_.1} parent=0 // pred_check
    _
  $region11: #{_lambda_.1} parent=0 // pred_check_branch
    %19 = sbr.rel (0) target = $region13
  $region12: #{_lambda_.1} parent=0 // pred_region
    _
  $region13: #{_lambda_.1} parent=0 // pred_fallthru
    _
  // Predicated region
  $region14: #{_lambda_.1} parent=0 // pred_check
    _
  $region15: #{_lambda_.1} parent=0 // pred_check_branch
    %21 = sbr.rel (0) target = $region17
  $region16: #{_lambda_.1} parent=0 // pred_region
    _
  $region17: #{_lambda_.1} parent=0 // pred_fallthru
    _
  // Predicated region
  $region18: #{_lambda_.1} parent=0 // pred_check
    _
  $region19: #{_lambda_.1} parent=0 // pred_check_branch
    %23 = sbr.rel (0) target = $region21
  $region20: #{_lambda_.1} parent=0 // pred_region
    _
  $region21: #{_lambda_.1} parent=0 // pred_fallthru
    _
  // Predicated region
  $region22: #{_lambda_.1} parent=0 // pred_check
    _
  $region23: #{_lambda_.1} parent=0 // pred_check_branch
    %25 = sbr.rel (0) target = $region25
  $region24: #{_lambda_.1} parent=0 // pred_region
    _
  $region25: #{_lambda_.1} parent=0 // pred_fallthru
    _
  // Predicated region
  $region26: #{_lambda_.1} parent=0 // pred_check
    _
  $region27: #{_lambda_.1} parent=0 // pred_check_branch
    %27 = sbr.rel (0) target = $region29
  $region28: #{_lambda_.1} parent=0 // pred_region
    _
  $region29: #{_lambda_.1} parent=0 // pred_fallthru
    _
  %p28 = scmp.eq.s32.totalorder 0, 0
  // Predicated region
  $region30: #{_lambda_.1} parent=0 // pred_check
    %p29 = pneg %p28
  $region31: #{_lambda_.1} parent=0 // pred_check_branch
    %31 = sbr.rel (%p29) target = $region33
  $region32: #{_lambda_.1} parent=0 // pred_region
    %32 = vst [vmem:[#allocation2] sm:$0xff] 0.0
    %33 = vst [vmem:[#allocation2 + $0x8] sm:$0xff] 0.0
    %34 = vst [vmem:[#allocation2 + $0x10] sm:$0xff] 0.0
    %35 = vst [vmem:[#allocation2 + $0x18] sm:$0xff] 0.0
  $region33: #{_lambda_.1} parent=0 // pred_fallthru
    _
  %v36 = vld [vmem:[#allocation2] sm:$0xff]
  %v37 = vld [vmem:[#allocation2 + $0x8] sm:$0xff]
  %v38 = vld [vmem:[#allocation2 + $0x10] sm:$0xff]
  %v39 = vld [vmem:[#allocation2 + $0x18] sm:$0xff]
  %v40 = vld [vmem:[%s0] sm:$0xff]
  %v41 = vld [vmem:[%s0 + $0x8] sm:$0xff]
  %v42 = vld [vmem:[%s0 + $0x10] sm:$0xff]
  %v43 = vld [vmem:[%s0 + $0x18] sm:$0xff]
  %v44 = vld [vmem:[%s0 + $0x20] sm:$0xff]
  %v45 = vld [vmem:[%s0 + $0x28] sm:$0xff]
  %v46 = vld [vmem:[%s0 + $0x30] sm:$0xff]
  %v47 = vld [vmem:[%s0 + $0x38] sm:$0xff]
  %v48 = vld [vmem:[%s0 + $0x40] sm:$0xff]
  %v49 = vld [vmem:[%s0 + $0x48] sm:$0xff]
  %v50 = vld [vmem:[%s0 + $0x50] sm:$0xff]
  %v51 = vld [vmem:[%s0 + $0x58] sm:$0xff]
  %v52 = vld [vmem:[%s0 + $0x60] sm:$0xff]
  %v53 = vld [vmem:[%s0 + $0x68] sm:$0xff]
  %v54 = vld [vmem:[%s0 + $0x70] sm:$0xff]
  %v55 = vld [vmem:[%s0 + $0x78] sm:$0xff]
  %v56 = vld [vmem:[%s0 + $0x80] sm:$0xff]
  %v57 = vld [vmem:[%s0 + $0x88] sm:$0xff]
  %v58 = vld [vmem:[%s0 + $0x90] sm:$0xff]
  %v59 = vld [vmem:[%s0 + $0x98] sm:$0xff]
  %v60 = vld [vmem:[%s0 + $0xa0] sm:$0xff]
  %v61 = vld [vmem:[%s0 + $0xa8] sm:$0xff]
  %v62 = vld [vmem:[%s0 + $0xb0] sm:$0xff]
  %v63 = vld [vmem:[%s0 + $0xb8] sm:$0xff]
  %v64 = vld [vmem:[%s0 + $0xc0] sm:$0xff]
  %v65 = vld [vmem:[%s0 + $0xc8] sm:$0xff]
  %v66 = vld [vmem:[%s0 + $0xd0] sm:$0xff]
  %v67 = vld [vmem:[%s0 + $0xd8] sm:$0xff]
  %v68 = vld [vmem:[%s0 + $0xe0] sm:$0xff]
  %v69 = vld [vmem:[%s0 + $0xe8] sm:$0xff]
  %v70 = vld [vmem:[%s0 + $0xf0] sm:$0xff]
  %v71 = vld [vmem:[%s0 + $0xf8] sm:$0xff]
  %v72 = vunpack.c.l.bf16 %v40
  %v73 = vunpack.c.h.bf16 %v40
  %v74 = vunpack.c.l.bf16 %v41
  %v75 = vunpack.c.h.bf16 %v41
  %v76 = vunpack.c.l.bf16 %v42
  %v77 = vunpack.c.h.bf16 %v42
  %v78 = vunpack.c.l.bf16 %v43
  %v79 = vunpack.c.h.bf16 %v43
  %v80 = vunpack.c.l.bf16 %v44
  %v81 = vunpack.c.h.bf16 %v44
  %v82 = vunpack.c.l.bf16 %v45
  %v83 = vunpack.c.h.bf16 %v45
  %v84 = vunpack.c.l.bf16 %v46
  %v85 = vunpack.c.h.bf16 %v46
  %v86 = vunpack.c.l.bf16 %v47
  %v87 = vunpack.c.h.bf16 %v47
  %v88 = vunpack.c.l.bf16 %v48
  %v89 = vunpack.c.h.bf16 %v48
  %v90 = vunpack.c.l.bf16 %v49
  %v91 = vunpack.c.h.bf16 %v49
  %v92 = vunpack.c.l.bf16 %v50
  %v93 = vunpack.c.h.bf16 %v50
  %v94 = vunpack.c.l.bf16 %v51
  %v95 = vunpack.c.h.bf16 %v51
  %v96 = vunpack.c.l.bf16 %v52
  %v97 = vunpack.c.h.bf16 %v52
  %v98 = vunpack.c.l.bf16 %v53
  %v99 = vunpack.c.h.bf16 %v53
  %v100 = vunpack.c.l.bf16 %v54
  %v101 = vunpack.c.h.bf16 %v54
  %v102 = vunpack.c.l.bf16 %v55
  %v103 = vunpack.c.h.bf16 %v55
  %v104 = vunpack.c.l.bf16 %v56
  %v105 = vunpack.c.h.bf16 %v56
  %v106 = vunpack.c.l.bf16 %v57
  %v107 = vunpack.c.h.bf16 %v57
  %v108 = vunpack.c.l.bf16 %v58
  %v109 = vunpack.c.h.bf16 %v58
  %v110 = vunpack.c.l.bf16 %v59
  %v111 = vunpack.c.h.bf16 %v59
  %v112 = vunpack.c.l.bf16 %v60
  %v113 = vunpack.c.h.bf16 %v60
  %v114 = vunpack.c.l.bf16 %v61
  %v115 = vunpack.c.h.bf16 %v61
  %v116 = vunpack.c.l.bf16 %v62
  %v117 = vunpack.c.h.bf16 %v62
  %v118 = vunpack.c.l.bf16 %v63
  %v119 = vunpack.c.h.bf16 %v63
  %v120 = vunpack.c.l.bf16 %v64
  %v121 = vunpack.c.h.bf16 %v64
  %v122 = vunpack.c.l.bf16 %v65
  %v123 = vunpack.c.h.bf16 %v65
  %v124 = vunpack.c.l.bf16 %v66
  %v125 = vunpack.c.h.bf16 %v66
  %v126 = vunpack.c.l.bf16 %v67
  %v127 = vunpack.c.h.bf16 %v67
  %v128 = vunpack.c.l.bf16 %v68
  %v129 = vunpack.c.h.bf16 %v68
  %v130 = vunpack.c.l.bf16 %v69
  %v131 = vunpack.c.h.bf16 %v69
  %v132 = vunpack.c.l.bf16 %v70
  %v133 = vunpack.c.h.bf16 %v70
  %v134 = vunpack.c.l.bf16 %v71
  %v135 = vunpack.c.h.bf16 %v71
  %v136 = vadd.f32 %v72, %v76
  %v137 = vrot.slane %v136, 4
  %v138 = vadd.f32 %v136, %v137
  %v139 = vrot.slane %v138, 2
  %v140 = vadd.f32 %v138, %v139
  %v141 = vrot.slane %v140, 1
  %v142 = vadd.f32 %v140, %v141
  %v143 = vadd.f32 %v73, %v77
  %v144 = vrot.slane %v143, 4
  %v145 = vadd.f32 %v143, %v144
  %v146 = vrot.slane %v145, 2
  %v147 = vadd.f32 %v145, %v146
  %v148 = vrot.slane %v147, 1
  %v149 = vadd.f32 %v147, %v148
  %v150 = vadd.f32 %v74, %v78
  %v151 = vrot.slane %v150, 4
  %v152 = vadd.f32 %v150, %v151
  %v153 = vrot.slane %v152, 2
  %v154 = vadd.f32 %v152, %v153
  %v155 = vrot.slane %v154, 1
  %v156 = vadd.f32 %v154, %v155
  %v157 = vadd.f32 %v75, %v79
  %v158 = vrot.slane %v157, 4
  %v159 = vadd.f32 %v157, %v158
  %v160 = vrot.slane %v159, 2
  %v161 = vadd.f32 %v159, %v160
  %v162 = vrot.slane %v161, 1
  %v163 = vadd.f32 %v161, %v162
  %v164 = vadd.f32 %v80, %v84
  %v165 = vrot.slane %v164, 4
  %v166 = vadd.f32 %v164, %v165
  %v167 = vrot.slane %v166, 2
  %v168 = vadd.f32 %v166, %v167
  %v169 = vrot.slane %v168, 1
  %v170 = vadd.f32 %v168, %v169
  %v171 = vadd.f32 %v81, %v85
  %v172 = vrot.slane %v171, 4
  %v173 = vadd.f32 %v171, %v172
  %v174 = vrot.slane %v173, 2
  %v175 = vadd.f32 %v173, %v174
  %v176 = vrot.slane %v175, 1
  %v177 = vadd.f32 %v175, %v176
  %v178 = vadd.f32 %v82, %v86
  %v179 = vrot.slane %v178, 4
  %v180 = vadd.f32 %v178, %v179
  %v181 = vrot.slane %v180, 2
  %v182 = vadd.f32 %v180, %v181
  %v183 = vrot.slane %v182, 1
  %v184 = vadd.f32 %v182, %v183
  %v185 = vadd.f32 %v83, %v87
  %v186 = vrot.slane %v185, 4
  %v187 = vadd.f32 %v185, %v186
  %v188 = vrot.slane %v187, 2
  %v189 = vadd.f32 %v187, %v188
  %v190 = vrot.slane %v189, 1
  %v191 = vadd.f32 %v189, %v190
  %v192 = vadd.f32 %v88, %v92
  %v193 = vrot.slane %v192, 4
  %v194 = vadd.f32 %v192, %v193
  %v195 = vrot.slane %v194, 2
  %v196 = vadd.f32 %v194, %v195
  %v197 = vrot.slane %v196, 1
  %v198 = vadd.f32 %v196, %v197
  %v199 = vadd.f32 %v89, %v93
  %v200 = vrot.slane %v199, 4
  %v201 = vadd.f32 %v199, %v200
  %v202 = vrot.slane %v201, 2
  %v203 = vadd.f32 %v201, %v202
  %v204 = vrot.slane %v203, 1
  %v205 = vadd.f32 %v203, %v204
  %v206 = vadd.f32 %v90, %v94
  %v207 = vrot.slane %v206, 4
  %v208 = vadd.f32 %v206, %v207
  %v209 = vrot.slane %v208, 2
  %v210 = vadd.f32 %v208, %v209
  %v211 = vrot.slane %v210, 1
  %v212 = vadd.f32 %v210, %v211
  %v213 = vadd.f32 %v91, %v95
  %v214 = vrot.slane %v213, 4
  %v215 = vadd.f32 %v213, %v214
  %v216 = vrot.slane %v215, 2
  %v217 = vadd.f32 %v215, %v216
  %v218 = vrot.slane %v217, 1
  %v219 = vadd.f32 %v217, %v218
  %v220 = vadd.f32 %v96, %v100
  %v221 = vrot.slane %v220, 4
  %v222 = vadd.f32 %v220, %v221
  %v223 = vrot.slane %v222, 2
  %v224 = vadd.f32 %v222, %v223
  %v225 = vrot.slane %v224, 1
  %v226 = vadd.f32 %v224, %v225
  %v227 = vadd.f32 %v97, %v101
  %v228 = vrot.slane %v227, 4
  %v229 = vadd.f32 %v227, %v228
  %v230 = vrot.slane %v229, 2
  %v231 = vadd.f32 %v229, %v230
  %v232 = vrot.slane %v231, 1
  %v233 = vadd.f32 %v231, %v232
  %v234 = vadd.f32 %v98, %v102
  %v235 = vrot.slane %v234, 4
  %v236 = vadd.f32 %v234, %v235
  %v237 = vrot.slane %v236, 2
  %v238 = vadd.f32 %v236, %v237
  %v239 = vrot.slane %v238, 1
  %v240 = vadd.f32 %v238, %v239
  %v241 = vadd.f32 %v99, %v103
  %v242 = vrot.slane %v241, 4
  %v243 = vadd.f32 %v241, %v242
  %v244 = vrot.slane %v243, 2
  %v245 = vadd.f32 %v243, %v244
  %v246 = vrot.slane %v245, 1
  %v247 = vadd.f32 %v245, %v246
  %v248 = vadd.f32 %v104, %v108
  %v249 = vrot.slane %v248, 4
  %v250 = vadd.f32 %v248, %v249
  %v251 = vrot.slane %v250, 2
  %v252 = vadd.f32 %v250, %v251
  %v253 = vrot.slane %v252, 1
  %v254 = vadd.f32 %v252, %v253
  %v255 = vadd.f32 %v105, %v109
  %v256 = vrot.slane %v255, 4
  %v257 = vadd.f32 %v255, %v256
  %v258 = vrot.slane %v257, 2
  %v259 = vadd.f32 %v257, %v258
  %v260 = vrot.slane %v259, 1
  %v261 = vadd.f32 %v259, %v260
  %v262 = vadd.f32 %v106, %v110
  %v263 = vrot.slane %v262, 4
  %v264 = vadd.f32 %v262, %v263
  %v265 = vrot.slane %v264, 2
  %v266 = vadd.f32 %v264, %v265
  %v267 = vrot.slane %v266, 1
  %v268 = vadd.f32 %v266, %v267
  %v269 = vadd.f32 %v107, %v111
  %v270 = vrot.slane %v269, 4
  %v271 = vadd.f32 %v269, %v270
  %v272 = vrot.slane %v271, 2
  %v273 = vadd.f32 %v271, %v272
  %v274 = vrot.slane %v273, 1
  %v275 = vadd.f32 %v273, %v274
  %v276 = vadd.f32 %v112, %v116
  %v277 = vrot.slane %v276, 4
  %v278 = vadd.f32 %v276, %v277
  %v279 = vrot.slane %v278, 2
  %v280 = vadd.f32 %v278, %v279
  %v281 = vrot.slane %v280, 1
  %v282 = vadd.f32 %v280, %v281
  %v283 = vadd.f32 %v113, %v117
  %v284 = vrot.slane %v283, 4
  %v285 = vadd.f32 %v283, %v284
  %v286 = vrot.slane %v285, 2
  %v287 = vadd.f32 %v285, %v286
  %v288 = vrot.slane %v287, 1
  %v289 = vadd.f32 %v287, %v288
  %v290 = vadd.f32 %v114, %v118
  %v291 = vrot.slane %v290, 4
  %v292 = vadd.f32 %v290, %v291
  %v293 = vrot.slane %v292, 2
  %v294 = vadd.f32 %v292, %v293
  %v295 = vrot.slane %v294, 1
  %v296 = vadd.f32 %v294, %v295
  %v297 = vadd.f32 %v115, %v119
  %v298 = vrot.slane %v297, 4
  %v299 = vadd.f32 %v297, %v298
  %v300 = vrot.slane %v299, 2
  %v301 = vadd.f32 %v299, %v300
  %v302 = vrot.slane %v301, 1
  %v303 = vadd.f32 %v301, %v302
  %v304 = vadd.f32 %v120, %v124
  %v305 = vrot.slane %v304, 4
  %v306 = vadd.f32 %v304, %v305
  %v307 = vrot.slane %v306, 2
  %v308 = vadd.f32 %v306, %v307
  %v309 = vrot.slane %v308, 1
  %v310 = vadd.f32 %v308, %v309
  %v311 = vadd.f32 %v121, %v125
  %v312 = vrot.slane %v311, 4
  %v313 = vadd.f32 %v311, %v312
  %v314 = vrot.slane %v313, 2
  %v315 = vadd.f32 %v313, %v314
  %v316 = vrot.slane %v315, 1
  %v317 = vadd.f32 %v315, %v316
  %v318 = vadd.f32 %v122, %v126
  %v319 = vrot.slane %v318, 4
  %v320 = vadd.f32 %v318, %v319
  %v321 = vrot.slane %v320, 2
  %v322 = vadd.f32 %v320, %v321
  %v323 = vrot.slane %v322, 1
  %v324 = vadd.f32 %v322, %v323
  %v325 = vadd.f32 %v123, %v127
  %v326 = vrot.slane %v325, 4
  %v327 = vadd.f32 %v325, %v326
  %v328 = vrot.slane %v327, 2
  %v329 = vadd.f32 %v327, %v328
  %v330 = vrot.slane %v329, 1
  %v331 = vadd.f32 %v329, %v330
  %v332 = vadd.f32 %v128, %v132
  %v333 = vrot.slane %v332, 4
  %v334 = vadd.f32 %v332, %v333
  %v335 = vrot.slane %v334, 2
  %v336 = vadd.f32 %v334, %v335
  %v337 = vrot.slane %v336, 1
  %v338 = vadd.f32 %v336, %v337
  %v339 = vadd.f32 %v129, %v133
  %v340 = vrot.slane %v339, 4
  %v341 = vadd.f32 %v339, %v340
  %v342 = vrot.slane %v341, 2
  %v343 = vadd.f32 %v341, %v342
  %v344 = vrot.slane %v343, 1
  %v345 = vadd.f32 %v343, %v344
  %v346 = vadd.f32 %v130, %v134
  %v347 = vrot.slane %v346, 4
  %v348 = vadd.f32 %v346, %v347
  %v349 = vrot.slane %v348, 2
  %v350 = vadd.f32 %v348, %v349
  %v351 = vrot.slane %v350, 1
  %v352 = vadd.f32 %v350, %v351
  %v353 = vadd.f32 %v131, %v135
  %v354 = vrot.slane %v353, 4
  %v355 = vadd.f32 %v353, %v354
  %v356 = vrot.slane %v355, 2
  %v357 = vadd.f32 %v355, %v356
  %v358 = vrot.slane %v357, 1
  %v359 = vadd.f32 %v357, %v358
  %vm392 = vcmask 1041409
  %v393 = vsel %vm392, %v170, %v142
  %vm394 = vcmask 1042434
  %v395 = vsel %vm394, %v198, %v393
  %vm396 = vcmask 1043459
  %v397 = vsel %vm396, %v226, %v395
  %vm398 = vcmask 1044484
  %v399 = vsel %vm398, %v254, %v397
  %vm400 = vcmask 1045509
  %v401 = vsel %vm400, %v282, %v399
  %vm402 = vcmask 1046534
  %v403 = vsel %vm402, %v310, %v401
  %vm404 = vcmask 1047559
  %v405 = vsel %vm404, %v338, %v403
  %v406 = vsel %vm392, %v177, %v149
  %v407 = vsel %vm394, %v205, %v406
  %v408 = vsel %vm396, %v233, %v407
  %v409 = vsel %vm398, %v261, %v408
  %v410 = vsel %vm400, %v289, %v409
  %v411 = vsel %vm402, %v317, %v410
  %v412 = vsel %vm404, %v345, %v411
  %v413 = vsel %vm392, %v184, %v156
  %v414 = vsel %vm394, %v212, %v413
  %v415 = vsel %vm396, %v240, %v414
  %v416 = vsel %vm398, %v268, %v415
  %v417 = vsel %vm400, %v296, %v416
  %v418 = vsel %vm402, %v324, %v417
  %v419 = vsel %vm404, %v352, %v418
  %v420 = vsel %vm392, %v191, %v163
  %v421 = vsel %vm394, %v219, %v420
  %v422 = vsel %vm396, %v247, %v421
  %v423 = vsel %vm398, %v275, %v422
  %v424 = vsel %vm400, %v303, %v423
  %v425 = vsel %vm402, %v331, %v424
  %v426 = vsel %vm404, %v359, %v425
  %v431 = vadd.f32 %v36, %v405
  %v432 = vadd.f32 %v37, %v412
  %v433 = vadd.f32 %v38, %v419
  %v434 = vadd.f32 %v39, %v426
  %435 = vst [vmem:[#allocation2] sm:$0xff] %v431
  %436 = vst [vmem:[#allocation2 + $0x8] sm:$0xff] %v432
  %437 = vst [vmem:[#allocation2 + $0x10] sm:$0xff] %v433
  %438 = vst [vmem:[#allocation2 + $0x18] sm:$0xff] %v434
  // Predicated region
  $region34: #{_lambda_.1} parent=0 // pred_check
    %p439 = pneg %p28
  $region35: #{_lambda_.1} parent=0 // pred_check_branch
    %441 = sbr.rel (%p439) target = $region37
  $region36: #{_lambda_.1} parent=0 // pred_region
    %v442 = vld [vmem:[#allocation2] sm:$0xff]
    %v443 = vld [vmem:[#allocation2 + $0x8] sm:$0xff]
    %v444 = vld [vmem:[#allocation2 + $0x10] sm:$0xff]
    %v445 = vld [vmem:[#allocation2 + $0x18] sm:$0xff]
    %v446 = vmul.f32 %v442, 0.125
    %v447 = vmul.f32 %v443, 0.125
    %v448 = vmul.f32 %v444, 0.125
    %v449 = vmul.f32 %v445, 0.125
    %v450 = vlaneseq
    %v451 = vshrl.u32 %v450, 7
    %vm452 = vcmp.lt.s32.totalorder %v451, 4
    %v453 = vsel %vm452, 1, 0
    %v454 = vcvt.s32.f32 %v453
    %v455 = vld [vmem:[%s6] sm:$0xff]
    %v456 = vld [vmem:[%s6 + $0x8] sm:$0xff]
    %v457 = vld [vmem:[%s6 + $0x10] sm:$0xff]
    %v458 = vld [vmem:[%s6 + $0x18] sm:$0xff]
    %v459 = vld [vmem:[%s6 + $0x20] sm:$0xff]
    %v460 = vld [vmem:[%s6 + $0x28] sm:$0xff]
    %v461 = vld [vmem:[%s6 + $0x30] sm:$0xff]
    %v462 = vld [vmem:[%s6 + $0x38] sm:$0xff]
    %v463 = vpack.c.bf16 %v446, %v446
    %v464 = vpack.c.bf16 %v447, %v447
    %v465 = vpack.c.bf16 %v448, %v448
    %v466 = vpack.c.bf16 %v449, %v449
    %v467 = vld [vmem:[%s2] sm:$0xff]
    %v468 = vld [vmem:[%s2 + $0x8] sm:$0xff]
    %v469 = vld [vmem:[%s2 + $0x10] sm:$0xff]
    %v470 = vld [vmem:[%s2 + $0x18] sm:$0xff]
    %v471 = vld [vmem:[%s2 + $0x20] sm:$0xff]
    %v472 = vld [vmem:[%s2 + $0x28] sm:$0xff]
    %v473 = vld [vmem:[%s2 + $0x30] sm:$0xff]
    %v474 = vld [vmem:[%s2 + $0x38] sm:$0xff]
    %v475 = vld [vmem:[%s2 + $0x40] sm:$0xff]
    %v476 = vld [vmem:[%s2 + $0x48] sm:$0xff]
    %v477 = vld [vmem:[%s2 + $0x50] sm:$0xff]
    %v478 = vld [vmem:[%s2 + $0x58] sm:$0xff]
    %v479 = vld [vmem:[%s2 + $0x60] sm:$0xff]
    %v480 = vld [vmem:[%s2 + $0x68] sm:$0xff]
    %v481 = vld [vmem:[%s2 + $0x70] sm:$0xff]
    %v482 = vld [vmem:[%s2 + $0x78] sm:$0xff]
    %v483 = vld [vmem:[%s2 + $0x80] sm:$0xff]
    %v484 = vld [vmem:[%s2 + $0x88] sm:$0xff]
    %v485 = vld [vmem:[%s2 + $0x90] sm:$0xff]
    %v486 = vld [vmem:[%s2 + $0x98] sm:$0xff]
    %v487 = vld [vmem:[%s2 + $0xa0] sm:$0xff]
    %v488 = vld [vmem:[%s2 + $0xa8] sm:$0xff]
    %v489 = vld [vmem:[%s2 + $0xb0] sm:$0xff]
    %v490 = vld [vmem:[%s2 + $0xb8] sm:$0xff]
    %v491 = vld [vmem:[%s2 + $0xc0] sm:$0xff]
    %v492 = vld [vmem:[%s2 + $0xc8] sm:$0xff]
    %v493 = vld [vmem:[%s2 + $0xd0] sm:$0xff]
    %v494 = vld [vmem:[%s2 + $0xd8] sm:$0xff]
    %v495 = vld [vmem:[%s2 + $0xe0] sm:$0xff]
    %v496 = vld [vmem:[%s2 + $0xe8] sm:$0xff]
    %v497 = vld [vmem:[%s2 + $0xf0] sm:$0xff]
    %v498 = vld [vmem:[%s2 + $0xf8] sm:$0xff]
    %v499 = vld [vmem:[%s2 + $0x100] sm:$0xff]
    %v500 = vld [vmem:[%s2 + $0x108] sm:$0xff]
    %v501 = vld [vmem:[%s2 + $0x110] sm:$0xff]
    %v502 = vld [vmem:[%s2 + $0x118] sm:$0xff]
    %v503 = vld [vmem:[%s2 + $0x120] sm:$0xff]
    %v504 = vld [vmem:[%s2 + $0x128] sm:$0xff]
    %v505 = vld [vmem:[%s2 + $0x130] sm:$0xff]
    %v506 = vld [vmem:[%s2 + $0x138] sm:$0xff]
    %v507 = vld [vmem:[%s2 + $0x140] sm:$0xff]
    %v508 = vld [vmem:[%s2 + $0x148] sm:$0xff]
    %v509 = vld [vmem:[%s2 + $0x150] sm:$0xff]
    %v510 = vld [vmem:[%s2 + $0x158] sm:$0xff]
    %v511 = vld [vmem:[%s2 + $0x160] sm:$0xff]
    %v512 = vld [vmem:[%s2 + $0x168] sm:$0xff]
    %v513 = vld [vmem:[%s2 + $0x170] sm:$0xff]
    %v514 = vld [vmem:[%s2 + $0x178] sm:$0xff]
    %v515 = vld [vmem:[%s2 + $0x180] sm:$0xff]
    %v516 = vld [vmem:[%s2 + $0x188] sm:$0xff]
    %v517 = vld [vmem:[%s2 + $0x190] sm:$0xff]
    %v518 = vld [vmem:[%s2 + $0x198] sm:$0xff]
    %v519 = vld [vmem:[%s2 + $0x1a0] sm:$0xff]
    %v520 = vld [vmem:[%s2 + $0x1a8] sm:$0xff]
    %v521 = vld [vmem:[%s2 + $0x1b0] sm:$0xff]
    %v522 = vld [vmem:[%s2 + $0x1b8] sm:$0xff]
    %v523 = vld [vmem:[%s2 + $0x1c0] sm:$0xff]
    %v524 = vld [vmem:[%s2 + $0x1c8] sm:$0xff]
    %v525 = vld [vmem:[%s2 + $0x1d0] sm:$0xff]
    %v526 = vld [vmem:[%s2 + $0x1d8] sm:$0xff]
    %v527 = vld [vmem:[%s2 + $0x1e0] sm:$0xff]
    %v528 = vld [vmem:[%s2 + $0x1e8] sm:$0xff]
    %v529 = vld [vmem:[%s2 + $0x1f0] sm:$0xff]
    %v530 = vld [vmem:[%s2 + $0x1f8] sm:$0xff]
    %v531 = vperm.slane %v455, 0
    %v532 = vperm.slane %v456, 0
    %v597 = vunpack.c.l.b16 %v467
    %v598 = vunpack.c.h.b16 %v467
    %v599 = vunpack.c.l.b16 %v468
    %v600 = vunpack.c.h.b16 %v468
    %v601 = vunpack.c.l.b16 %v469
    %v602 = vunpack.c.h.b16 %v469
    %v603 = vunpack.c.l.b16 %v470
    %v604 = vunpack.c.h.b16 %v470
    %v605 = vunpack.c.l.b16 %v471
    %v606 = vunpack.c.h.b16 %v471
    %v607 = vunpack.c.l.b16 %v472
    %v608 = vunpack.c.h.b16 %v472
    %v609 = vunpack.c.l.b16 %v473
    %v610 = vunpack.c.h.b16 %v473
    %v611 = vunpack.c.l.b16 %v474
    %v612 = vunpack.c.h.b16 %v474
    %v613 = vunpack.c.l.b16 %v475
    %v614 = vunpack.c.h.b16 %v475
    %v615 = vunpack.c.l.b16 %v476
    %v616 = vunpack.c.h.b16 %v476
    %v617 = vunpack.c.l.b16 %v477
    %v618 = vunpack.c.h.b16 %v477
    %v619 = vunpack.c.l.b16 %v478
    %v620 = vunpack.c.h.b16 %v478
    %v621 = vunpack.c.l.b16 %v479
    %v622 = vunpack.c.h.b16 %v479
    %v623 = vunpack.c.l.b16 %v480
    %v624 = vunpack.c.h.b16 %v480
    %v625 = vunpack.c.l.b16 %v481
    %v626 = vunpack.c.h.b16 %v481
    %v627 = vunpack.c.l.b16 %v482
    %v628 = vunpack.c.h.b16 %v482
    %v629 = vunpack.c.l.b16 %v483
    %v630 = vunpack.c.h.b16 %v483
    %v631 = vunpack.c.l.b16 %v484
    %v632 = vunpack.c.h.b16 %v484
    %v633 = vunpack.c.l.b16 %v485
    %v634 = vunpack.c.h.b16 %v485
    %v635 = vunpack.c.l.b16 %v486
    %v636 = vunpack.c.h.b16 %v486
    %v637 = vunpack.c.l.b16 %v487
    %v638 = vunpack.c.h.b16 %v487
    %v639 = vunpack.c.l.b16 %v488
    %v640 = vunpack.c.h.b16 %v488
    %v641 = vunpack.c.l.b16 %v489
    %v642 = vunpack.c.h.b16 %v489
    %v643 = vunpack.c.l.b16 %v490
    %v644 = vunpack.c.h.b16 %v490
    %v645 = vunpack.c.l.b16 %v491
    %v646 = vunpack.c.h.b16 %v491
    %v647 = vunpack.c.l.b16 %v492
    %v648 = vunpack.c.h.b16 %v492
    %v649 = vunpack.c.l.b16 %v493
    %v650 = vunpack.c.h.b16 %v493
    %v651 = vunpack.c.l.b16 %v494
    %v652 = vunpack.c.h.b16 %v494
    %v653 = vunpack.c.l.b16 %v495
    %v654 = vunpack.c.h.b16 %v495
    %v655 = vunpack.c.l.b16 %v496
    %v656 = vunpack.c.h.b16 %v496
    %v657 = vunpack.c.l.b16 %v497
    %v658 = vunpack.c.h.b16 %v497
    %v659 = vunpack.c.l.b16 %v498
    %v660 = vunpack.c.h.b16 %v498
    %v661 = vunpack.c.l.b16 %v499
    %v662 = vunpack.c.h.b16 %v499
    %v663 = vunpack.c.l.b16 %v500
    %v664 = vunpack.c.h.b16 %v500
    %v665 = vunpack.c.l.b16 %v501
    %v666 = vunpack.c.h.b16 %v501
    %v667 = vunpack.c.l.b16 %v502
    %v668 = vunpack.c.h.b16 %v502
    %v669 = vunpack.c.l.b16 %v503
    %v670 = vunpack.c.h.b16 %v503
    %v671 = vunpack.c.l.b16 %v504
    %v672 = vunpack.c.h.b16 %v504
    %v673 = vunpack.c.l.b16 %v505
    %v674 = vunpack.c.h.b16 %v505
    %v675 = vunpack.c.l.b16 %v506
    %v676 = vunpack.c.h.b16 %v506
    %v677 = vunpack.c.l.b16 %v507
    %v678 = vunpack.c.h.b16 %v507
    %v679 = vunpack.c.l.b16 %v508
    %v680 = vunpack.c.h.b16 %v508
    %v681 = vunpack.c.l.b16 %v509
    %v682 = vunpack.c.h.b16 %v509
    %v683 = vunpack.c.l.b16 %v510
    %v684 = vunpack.c.h.b16 %v510
    %v685 = vunpack.c.l.b16 %v511
    %v686 = vunpack.c.h.b16 %v511
    %v687 = vunpack.c.l.b16 %v512
    %v688 = vunpack.c.h.b16 %v512
    %v689 = vunpack.c.l.b16 %v513
    %v690 = vunpack.c.h.b16 %v513
    %v691 = vunpack.c.l.b16 %v514
    %v692 = vunpack.c.h.b16 %v514
    %v693 = vunpack.c.l.b16 %v515
    %v694 = vunpack.c.h.b16 %v515
    %v695 = vunpack.c.l.b16 %v516
    %v696 = vunpack.c.h.b16 %v516
    %v697 = vunpack.c.l.b16 %v517
    %v698 = vunpack.c.h.b16 %v517
    %v699 = vunpack.c.l.b16 %v518
    %v700 = vunpack.c.h.b16 %v518
    %v701 = vunpack.c.l.b16 %v519
    %v702 = vunpack.c.h.b16 %v519
    %v703 = vunpack.c.l.b16 %v520
    %v704 = vunpack.c.h.b16 %v520
    %v705 = vunpack.c.l.b16 %v521
    %v706 = vunpack.c.h.b16 %v521
    %v707 = vunpack.c.l.b16 %v522
    %v708 = vunpack.c.h.b16 %v522
    %v709 = vunpack.c.l.b16 %v523
    %v710 = vunpack.c.h.b16 %v523
    %v711 = vunpack.c.l.b16 %v524
    %v712 = vunpack.c.h.b16 %v524
    %v713 = vunpack.c.l.b16 %v525
    %v714 = vunpack.c.h.b16 %v525
    %v715 = vunpack.c.l.b16 %v526
    %v716 = vunpack.c.h.b16 %v526
    %v717 = vunpack.c.l.b16 %v527
    %v718 = vunpack.c.h.b16 %v527
    %v719 = vunpack.c.l.b16 %v528
    %v720 = vunpack.c.h.b16 %v528
    %v721 = vunpack.c.l.b16 %v529
    %v722 = vunpack.c.h.b16 %v529
    %v723 = vunpack.c.l.b16 %v530
    %v724 = vunpack.c.h.b16 %v530
    %v725 = vpack.c.b16 %v599, %v597
    %v726 = vpack.c.b16 %v600, %v598
    %v727 = vpack.c.b16 %v603, %v601
    %v728 = vpack.c.b16 %v604, %v602
    %v729 = vpack.c.b16 %v607, %v605
    %v730 = vpack.c.b16 %v608, %v606
    %v731 = vpack.c.b16 %v611, %v609
    %v732 = vpack.c.b16 %v612, %v610
    %v733 = vpack.c.b16 %v615, %v613
    %v734 = vpack.c.b16 %v616, %v614
    %v735 = vpack.c.b16 %v619, %v617
    %v736 = vpack.c.b16 %v620, %v618
    %v737 = vpack.c.b16 %v623, %v621
    %v738 = vpack.c.b16 %v624, %v622
    %v739 = vpack.c.b16 %v627, %v625
    %v740 = vpack.c.b16 %v628, %v626
    %v741 = vpack.c.b16 %v631, %v629
    %v742 = vpack.c.b16 %v632, %v630
    %v743 = vpack.c.b16 %v635, %v633
    %v744 = vpack.c.b16 %v636, %v634
    %v745 = vpack.c.b16 %v639, %v637
    %v746 = vpack.c.b16 %v640, %v638
    %v747 = vpack.c.b16 %v643, %v641
    %v748 = vpack.c.b16 %v644, %v642
    %v749 = vpack.c.b16 %v647, %v645
    %v750 = vpack.c.b16 %v648, %v646
    %v751 = vpack.c.b16 %v651, %v649
    %v752 = vpack.c.b16 %v652, %v650
    %v753 = vpack.c.b16 %v655, %v653
    %v754 = vpack.c.b16 %v656, %v654
    %v755 = vpack.c.b16 %v659, %v657
    %v756 = vpack.c.b16 %v660, %v658
    %v757 = vpack.c.b16 %v663, %v661
    %v758 = vpack.c.b16 %v664, %v662
    %v759 = vpack.c.b16 %v667, %v665
    %v760 = vpack.c.b16 %v668, %v666
    %v761 = vpack.c.b16 %v671, %v669
    %v762 = vpack.c.b16 %v672, %v670
    %v763 = vpack.c.b16 %v675, %v673
    %v764 = vpack.c.b16 %v676, %v674
    %v765 = vpack.c.b16 %v679, %v677
    %v766 = vpack.c.b16 %v680, %v678
    %v767 = vpack.c.b16 %v683, %v681
    %v768 = vpack.c.b16 %v684, %v682
    %v769 = vpack.c.b16 %v687, %v685
    %v770 = vpack.c.b16 %v688, %v686
    %v771 = vpack.c.b16 %v691, %v689
    %v772 = vpack.c.b16 %v692, %v690
    %v773 = vpack.c.b16 %v695, %v693
    %v774 = vpack.c.b16 %v696, %v694
    %v775 = vpack.c.b16 %v699, %v697
    %v776 = vpack.c.b16 %v700, %v698
    %v777 = vpack.c.b16 %v703, %v701
    %v778 = vpack.c.b16 %v704, %v702
    %v779 = vpack.c.b16 %v707, %v705
    %v780 = vpack.c.b16 %v708, %v706
    %v781 = vpack.c.b16 %v711, %v709
    %v782 = vpack.c.b16 %v712, %v710
    %v783 = vpack.c.b16 %v715, %v713
    %v784 = vpack.c.b16 %v716, %v714
    %v785 = vpack.c.b16 %v719, %v717
    %v786 = vpack.c.b16 %v720, %v718
    %v787 = vpack.c.b16 %v723, %v721
    %v788 = vpack.c.b16 %v724, %v722
    %853 = vmatpush.bf16.msra.mxu0 %v739
    %854 = vmatpush.bf16.msra.mxu0 %v737
    %855 = vmatpush.bf16.msra.mxu0 %v735
    %856 = vmatpush.bf16.msra.mxu0 %v733
    %857 = vmatpush.bf16.msra.mxu0 %v731
    %858 = vmatpush.bf16.msra.mxu0 %v729
    %859 = vmatpush.bf16.msra.mxu0 %v727
    %860 = vmatpush.bf16.msra.mxu0 %v725
    %861 = vmatmul.bf16.gmra.mxu0 %v463
    %v862 = vpop.f32.mrf.mxu0
    %v863 = vadd.f32 %v531, %v862
    %v864 = vpop.f32.mrf.mxu0
    %865 = vdwg.mxu0
    %866 = vmatpush.bf16.msra.mxu0 %v755
    %867 = vmatpush.bf16.msra.mxu0 %v753
    %868 = vmatpush.bf16.msra.mxu0 %v751
    %869 = vmatpush.bf16.msra.mxu0 %v749
    %870 = vmatpush.bf16.msra.mxu0 %v747
    %871 = vmatpush.bf16.msra.mxu0 %v745
    %872 = vmatpush.bf16.msra.mxu0 %v743
    %873 = vmatpush.bf16.msra.mxu0 %v741
    %874 = vmatmul.bf16.gmra.mxu0 %v464
    %v875 = vpop.f32.mrf.mxu0
    %v876 = vadd.f32 %v863, %v875
    %v877 = vpop.f32.mrf.mxu0
    %878 = vdwg.mxu0
    %879 = vmatpush.bf16.msra.mxu0 %v771
    %880 = vmatpush.bf16.msra.mxu0 %v769
    %881 = vmatpush.bf16.msra.mxu0 %v767
    %882 = vmatpush.bf16.msra.mxu0 %v765
    %883 = vmatpush.bf16.msra.mxu0 %v763
    %884 = vmatpush.bf16.msra.mxu0 %v761
    %885 = vmatpush.bf16.msra.mxu0 %v759
    %886 = vmatpush.bf16.msra.mxu0 %v757
    %887 = vmatmul.bf16.gmra.mxu0 %v465
    %v888 = vpop.f32.mrf.mxu0
    %v889 = vadd.f32 %v876, %v888
    %v890 = vpop.f32.mrf.mxu0
    %891 = vdwg.mxu0
    %892 = vmatpush.bf16.msra.mxu0 %v787
    %893 = vmatpush.bf16.msra.mxu0 %v785
    %894 = vmatpush.bf16.msra.mxu0 %v783
    %895 = vmatpush.bf16.msra.mxu0 %v781
    %896 = vmatpush.bf16.msra.mxu0 %v779
    %897 = vmatpush.bf16.msra.mxu0 %v777
    %898 = vmatpush.bf16.msra.mxu0 %v775
    %899 = vmatpush.bf16.msra.mxu0 %v773
    %900 = vmatmul.bf16.gmra.mxu0 %v466
    %v901 = vpop.f32.mrf.mxu0
    %v902 = vadd.f32 %v889, %v901
    %v903 = vpop.f32.mrf.mxu0
    %904 = vdwg.mxu0
    %905 = vmatpush.bf16.msra.mxu0 %v740
    %906 = vmatpush.bf16.msra.mxu0 %v738
    %907 = vmatpush.bf16.msra.mxu0 %v736
    %908 = vmatpush.bf16.msra.mxu0 %v734
    %909 = vmatpush.bf16.msra.mxu0 %v732
    %910 = vmatpush.bf16.msra.mxu0 %v730
    %911 = vmatpush.bf16.msra.mxu0 %v728
    %912 = vmatpush.bf16.msra.mxu0 %v726
    %913 = vmatmul.bf16.gmra.mxu0 %v463
    %v914 = vpop.f32.mrf.mxu0
    %v915 = vadd.f32 %v532, %v914
    %v916 = vpop.f32.mrf.mxu0
    %917 = vdwg.mxu0
    %918 = vmatpush.bf16.msra.mxu0 %v756
    %919 = vmatpush.bf16.msra.mxu0 %v754
    %920 = vmatpush.bf16.msra.mxu0 %v752
    %921 = vmatpush.bf16.msra.mxu0 %v750
    %922 = vmatpush.bf16.msra.mxu0 %v748
    %923 = vmatpush.bf16.msra.mxu0 %v746
    %924 = vmatpush.bf16.msra.mxu0 %v744
    %925 = vmatpush.bf16.msra.mxu0 %v742
    %926 = vmatmul.bf16.gmra.mxu0 %v464
    %v927 = vpop.f32.mrf.mxu0
    %v928 = vadd.f32 %v915, %v927
    %v929 = vpop.f32.mrf.mxu0
    %930 = vdwg.mxu0
    %931 = vmatpush.bf16.msra.mxu0 %v772
    %932 = vmatpush.bf16.msra.mxu0 %v770
    %933 = vmatpush.bf16.msra.mxu0 %v768
    %934 = vmatpush.bf16.msra.mxu0 %v766
    %935 = vmatpush.bf16.msra.mxu0 %v764
    %936 = vmatpush.bf16.msra.mxu0 %v762
    %937 = vmatpush.bf16.msra.mxu0 %v760
    %938 = vmatpush.bf16.msra.mxu0 %v758
    %939 = vmatmul.bf16.gmra.mxu0 %v465
    %v940 = vpop.f32.mrf.mxu0
    %v941 = vadd.f32 %v928, %v940
    %v942 = vpop.f32.mrf.mxu0
    %943 = vdwg.mxu0
    %944 = vmatpush.bf16.msra.mxu0 %v788
    %945 = vmatpush.bf16.msra.mxu0 %v786
    %946 = vmatpush.bf16.msra.mxu0 %v784
    %947 = vmatpush.bf16.msra.mxu0 %v782
    %948 = vmatpush.bf16.msra.mxu0 %v780
    %949 = vmatpush.bf16.msra.mxu0 %v778
    %950 = vmatpush.bf16.msra.mxu0 %v776
    %951 = vmatpush.bf16.msra.mxu0 %v774
    %952 = vmatmul.bf16.gmra.mxu0 %v466
    %v953 = vpop.f32.mrf.mxu0
    %v954 = vadd.f32 %v941, %v953
    %v955 = vpop.f32.mrf.mxu0
    %956 = vdwg.mxu0
    %v957 = vmul.f32 %v902, %v454
    %v958 = vmul.f32 %v954, %v454
    %v959 = vrot.slane %v957, 4
    %v960 = vadd.f32 %v957, %v959
    %v961 = vrot.slane %v960, 2
    %v962 = vadd.f32 %v960, %v961
    %v963 = vrot.slane %v962, 1
    %v964 = vadd.f32 %v962, %v963
    %v965 = vrot.slane %v958, 4
    %v966 = vadd.f32 %v958, %v965
    %v967 = vrot.slane %v966, 2
    %v968 = vadd.f32 %v966, %v967
    %v969 = vrot.slane %v968, 1
    %v970 = vadd.f32 %v968, %v969
    %v971 = vmul.f32 %v964, 0.25
    %v972 = vmul.f32 %v970, 0.25
    %v973 = vsub.f32 %v902, %v971
    %v974 = vsub.f32 %v954, %v972
    %v975 = vmul.f32 %v973, %v454
    %v976 = vmul.f32 %v974, %v454
    %v977 = vmul.f32 %v975, %v975
    %v978 = vmul.f32 %v976, %v976
    %v979 = vrot.slane %v977, 4
    %v980 = vadd.f32 %v977, %v979
    %v981 = vrot.slane %v980, 2
    %v982 = vadd.f32 %v980, %v981
    %v983 = vrot.slane %v982, 1
    %v984 = vadd.f32 %v982, %v983
    %v985 = vrot.slane %v978, 4
    %v986 = vadd.f32 %v978, %v985
    %v987 = vrot.slane %v986, 2
    %v988 = vadd.f32 %v986, %v987
    %v989 = vrot.slane %v988, 1
    %v990 = vadd.f32 %v988, %v989
    %v991 = vmul.f32 %v984, 0.25
    %v992 = vmul.f32 %v990, 0.25
    %v993 = vperm.slane %v455, 1
    %v994 = vperm.slane %v456, 1
    %v995 = vmul.f32 %v993, %v973
    %v996 = vmul.f32 %v994, %v974
    %v997 = vadd.f32 %v991, 1e-05
    %v998 = vadd.f32 %v992, 1e-05
    %v999 = vrsqrt.pop %v997
    %v1000 = vmul.f32 %v999, %v997
    %v1001 = vmul.f32 %v1000, %v999
    %v1002 = vmul.f32 0.5, %v1001
    %v1003 = vsub.f32 1.5, %v1002
    %v1004 = vmul.f32 %v999, %v1003
    %vm1005 = vweird.f32 %v997
    %vm1006 = vweird.f32 %v999
    %vm1007 = vmor %vm1005, %vm1006
    %v1008 = vsel %vm1007, %v999, %v1004
    %v1009 = vrsqrt.pop %v998
    %v1010 = vmul.f32 %v1009, %v998
    %v1011 = vmul.f32 %v1010, %v1009
    %v1012 = vmul.f32 0.5, %v1011
    %v1013 = vsub.f32 1.5, %v1012
    %v1014 = vmul.f32 %v1009, %v1013
    %vm1015 = vweird.f32 %v998
    %vm1016 = vweird.f32 %v1009
    %vm1017 = vmor %vm1015, %vm1016
    %v1018 = vsel %vm1017, %v1009, %v1014
    %v1019 = vmul.f32 %v995, %v1008
    %v1020 = vmul.f32 %v996, %v1018
    %v1021 = vperm.slane %v455, 2
    %v1022 = vperm.slane %v456, 2
    %v1023 = vadd.f32 %v1019, %v1021
    %v1024 = vadd.f32 %v1020, %v1022
    %v1025 = vmax.f32 %v1023, 0.0
    %v1026 = vmax.f32 %v1024, 0.0
    %v1027 = vpack.c.bf16 %v1025, %v1025
    %v1028 = vpack.c.bf16 %v1026, %v1026
    %v1029 = vld [vmem:[%s3] sm:$0xf]
    %v1030 = vld [vmem:[%s3 + $0x4] sm:$0xf]
    %v1031 = vld [vmem:[%s3 + $0x8] sm:$0xf]
    %v1032 = vld [vmem:[%s3 + $0xc] sm:$0xf]
    %v1033 = vld [vmem:[%s3 + $0x10] sm:$0xf]
    %v1034 = vld [vmem:[%s3 + $0x14] sm:$0xf]
    %v1035 = vld [vmem:[%s3 + $0x18] sm:$0xf]
    %v1036 = vld [vmem:[%s3 + $0x1c] sm:$0xf]
    %v1037 = vld [vmem:[%s3 + $0x20] sm:$0xf]
    %v1038 = vld [vmem:[%s3 + $0x24] sm:$0xf]
    %v1039 = vld [vmem:[%s3 + $0x28] sm:$0xf]
    %v1040 = vld [vmem:[%s3 + $0x2c] sm:$0xf]
    %v1041 = vld [vmem:[%s3 + $0x30] sm:$0xf]
    %v1042 = vld [vmem:[%s3 + $0x34] sm:$0xf]
    %v1043 = vld [vmem:[%s3 + $0x38] sm:$0xf]
    %v1044 = vld [vmem:[%s3 + $0x3c] sm:$0xf]
    %v1045 = vld [vmem:[%s3 + $0x40] sm:$0xf]
    %v1046 = vld [vmem:[%s3 + $0x44] sm:$0xf]
    %v1047 = vld [vmem:[%s3 + $0x48] sm:$0xf]
    %v1048 = vld [vmem:[%s3 + $0x4c] sm:$0xf]
    %v1049 = vld [vmem:[%s3 + $0x50] sm:$0xf]
    %v1050 = vld [vmem:[%s3 + $0x54] sm:$0xf]
    %v1051 = vld [vmem:[%s3 + $0x58] sm:$0xf]
    %v1052 = vld [vmem:[%s3 + $0x5c] sm:$0xf]
    %v1053 = vld [vmem:[%s3 + $0x60] sm:$0xf]
    %v1054 = vld [vmem:[%s3 + $0x64] sm:$0xf]
    %v1055 = vld [vmem:[%s3 + $0x68] sm:$0xf]
    %v1056 = vld [vmem:[%s3 + $0x6c] sm:$0xf]
    %v1057 = vld [vmem:[%s3 + $0x70] sm:$0xf]
    %v1058 = vld [vmem:[%s3 + $0x74] sm:$0xf]
    %v1059 = vld [vmem:[%s3 + $0x78] sm:$0xf]
    %v1060 = vld [vmem:[%s3 + $0x7c] sm:$0xf]
    %v1061 = vperm.slane %v455, 3
    %v1094 = vunpack.c.l.b16 %v1029
    %v1095 = vunpack.c.l.b16 %v1030
    %v1096 = vunpack.c.l.b16 %v1031
    %v1097 = vunpack.c.l.b16 %v1032
    %v1098 = vunpack.c.l.b16 %v1033
    %v1099 = vunpack.c.l.b16 %v1034
    %v1100 = vunpack.c.l.b16 %v1035
    %v1101 = vunpack.c.l.b16 %v1036
    %v1102 = vunpack.c.l.b16 %v1037
    %v1103 = vunpack.c.l.b16 %v1038
    %v1104 = vunpack.c.l.b16 %v1039
    %v1105 = vunpack.c.l.b16 %v1040
    %v1106 = vunpack.c.l.b16 %v1041
    %v1107 = vunpack.c.l.b16 %v1042
    %v1108 = vunpack.c.l.b16 %v1043
    %v1109 = vunpack.c.l.b16 %v1044
    %v1110 = vunpack.c.l.b16 %v1045
    %v1111 = vunpack.c.l.b16 %v1046
    %v1112 = vunpack.c.l.b16 %v1047
    %v1113 = vunpack.c.l.b16 %v1048
    %v1114 = vunpack.c.l.b16 %v1049
    %v1115 = vunpack.c.l.b16 %v1050
    %v1116 = vunpack.c.l.b16 %v1051
    %v1117 = vunpack.c.l.b16 %v1052
    %v1118 = vunpack.c.l.b16 %v1053
    %v1119 = vunpack.c.l.b16 %v1054
    %v1120 = vunpack.c.l.b16 %v1055
    %v1121 = vunpack.c.l.b16 %v1056
    %v1122 = vunpack.c.l.b16 %v1057
    %v1123 = vunpack.c.l.b16 %v1058
    %v1124 = vunpack.c.l.b16 %v1059
    %v1125 = vunpack.c.l.b16 %v1060
    %v1126 = vpack.c.b16 %v1095, %v1094
    %v1127 = vpack.c.b16 %v1097, %v1096
    %v1128 = vpack.c.b16 %v1099, %v1098
    %v1129 = vpack.c.b16 %v1101, %v1100
    %v1130 = vpack.c.b16 %v1103, %v1102
    %v1131 = vpack.c.b16 %v1105, %v1104
    %v1132 = vpack.c.b16 %v1107, %v1106
    %v1133 = vpack.c.b16 %v1109, %v1108
    %v1134 = vpack.c.b16 %v1111, %v1110
    %v1135 = vpack.c.b16 %v1113, %v1112
    %v1136 = vpack.c.b16 %v1115, %v1114
    %v1137 = vpack.c.b16 %v1117, %v1116
    %v1138 = vpack.c.b16 %v1119, %v1118
    %v1139 = vpack.c.b16 %v1121, %v1120
    %v1140 = vpack.c.b16 %v1123, %v1122
    %v1141 = vpack.c.b16 %v1125, %v1124
    %1158 = vmatpush.bf16.msra.mxu0 %v1133
    %1159 = vmatpush.bf16.msra.mxu0 %v1132
    %1160 = vmatpush.bf16.msra.mxu0 %v1131
    %1161 = vmatpush.bf16.msra.mxu0 %v1130
    %1162 = vmatpush.bf16.msra.mxu0 %v1129
    %1163 = vmatpush.bf16.msra.mxu0 %v1128
    %1164 = vmatpush.bf16.msra.mxu0 %v1127
    %1165 = vmatpush.bf16.msra.mxu0 %v1126
    %1166 = vmatmul.bf16.gmra.mxu0 %v1027
    %v1167 = vpop.f32.mrf.mxu0
    %v1168 = vadd.f32 %v1061, %v1167
    %v1169 = vpop.f32.mrf.mxu0
    %1170 = vdwg.mxu0
    %1171 = vmatpush.bf16.msra.mxu0 %v1141
    %1172 = vmatpush.bf16.msra.mxu0 %v1140
    %1173 = vmatpush.bf16.msra.mxu0 %v1139
    %1174 = vmatpush.bf16.msra.mxu0 %v1138
    %1175 = vmatpush.bf16.msra.mxu0 %v1137
    %1176 = vmatpush.bf16.msra.mxu0 %v1136
    %1177 = vmatpush.bf16.msra.mxu0 %v1135
    %1178 = vmatpush.bf16.msra.mxu0 %v1134
    %1179 = vmatmul.bf16.gmra.mxu0 %v1028
    %v1180 = vpop.f32.mrf.mxu0
    %v1181 = vadd.f32 %v1168, %v1180
    %v1182 = vpop.f32.mrf.mxu0
    %1183 = vdwg.mxu0
    %1184 = vst [vmem:[%s7] sm:$0xff] %v1181
    %1185 = vmax.xlane.f32.xlu0 %v1181
    %v1186 = vpop.xlane.xlu0 %1185
    %v1187 = vsub.f32 %v1181, %v1186
    %v1188 = vmul.f32 %v1187, 1.442695
    %v1189 = vpow.pop %v1188
    %1190 = vadd.xlane.f32.xlu0 %v1189
    %v1191 = vpop.xlane.xlu0 %1190
    %v1192 = vlog2.pop %v1191
    %v1193 = vmul.f32 %v1192, 0.6931472
    %v1194 = vadd.f32 %v1186, %v1193
    %v1195 = vld [vmem:[%s1] sm:$0xff]
    %v1196 = vsub.f32 0.0, %v1195
    %v1197 = vsub.f32 %v1181, %v1194
    %v1198 = vmul.f32 %v1196, %v1197
    %1199 = vadd.xlane.f32.xlu0 %v1198
    %v1200 = vpop.xlane.xlu0 %1199
    %v1201 = vrot.slane %v1200, 4
    %v1202 = vadd.f32 %v1200, %v1201
    %v1203 = vrot.slane %v1202, 2
    %v1204 = vadd.f32 %v1202, %v1203
    %v1205 = vrot.slane %v1204, 1
    %v1206 = vadd.f32 %v1204, %v1205
    %v1207 = vmul.f32 %v1206, 0.5
    %v1208 = vld [vmem:[%s4] sm:$0xff]
    %v1209 = vld [vmem:[%s4 + $0x8] sm:$0xff]
    %v1210 = vld [vmem:[%s4 + $0x10] sm:$0xff]
    %v1211 = vld [vmem:[%s4 + $0x18] sm:$0xff]
    %v1212 = vld [vmem:[%s4 + $0x20] sm:$0xff]
    %v1213 = vld [vmem:[%s4 + $0x28] sm:$0xff]
    %v1214 = vld [vmem:[%s4 + $0x30] sm:$0xff]
    %v1215 = vld [vmem:[%s4 + $0x38] sm:$0xff]
    %v1216 = vld [vmem:[%s4 + $0x40] sm:$0xff]
    %v1217 = vld [vmem:[%s4 + $0x48] sm:$0xff]
    %v1218 = vld [vmem:[%s4 + $0x50] sm:$0xff]
    %v1219 = vld [vmem:[%s4 + $0x58] sm:$0xff]
    %v1220 = vld [vmem:[%s4 + $0x60] sm:$0xff]
    %v1221 = vld [vmem:[%s4 + $0x68] sm:$0xff]
    %v1222 = vld [vmem:[%s4 + $0x70] sm:$0xff]
    %v1223 = vld [vmem:[%s4 + $0x78] sm:$0xff]
    %v1224 = vld [vmem:[%s4 + $0x80] sm:$0xff]
    %v1225 = vld [vmem:[%s4 + $0x88] sm:$0xff]
    %v1226 = vld [vmem:[%s4 + $0x90] sm:$0xff]
    %v1227 = vld [vmem:[%s4 + $0x98] sm:$0xff]
    %v1228 = vld [vmem:[%s4 + $0xa0] sm:$0xff]
    %v1229 = vld [vmem:[%s4 + $0xa8] sm:$0xff]
    %v1230 = vld [vmem:[%s4 + $0xb0] sm:$0xff]
    %v1231 = vld [vmem:[%s4 + $0xb8] sm:$0xff]
    %v1232 = vld [vmem:[%s4 + $0xc0] sm:$0xff]
    %v1233 = vld [vmem:[%s4 + $0xc8] sm:$0xff]
    %v1234 = vld [vmem:[%s4 + $0xd0] sm:$0xff]
    %v1235 = vld [vmem:[%s4 + $0xd8] sm:$0xff]
    %v1236 = vld [vmem:[%s4 + $0xe0] sm:$0xff]
    %v1237 = vld [vmem:[%s4 + $0xe8] sm:$0xff]
    %v1238 = vld [vmem:[%s4 + $0xf0] sm:$0xff]
    %v1239 = vld [vmem:[%s4 + $0xf8] sm:$0xff]
    %v1240 = vld [vmem:[%s4 + $0x100] sm:$0xff]
    %v1241 = vld [vmem:[%s4 + $0x108] sm:$0xff]
    %v1242 = vld [vmem:[%s4 + $0x110] sm:$0xff]
    %v1243 = vld [vmem:[%s4 + $0x118] sm:$0xff]
    %v1244 = vld [vmem:[%s4 + $0x120] sm:$0xff]
    %v1245 = vld [vmem:[%s4 + $0x128] sm:$0xff]
    %v1246 = vld [vmem:[%s4 + $0x130] sm:$0xff]
    %v1247 = vld [vmem:[%s4 + $0x138] sm:$0xff]
    %v1248 = vld [vmem:[%s4 + $0x140] sm:$0xff]
    %v1249 = vld [vmem:[%s4 + $0x148] sm:$0xff]
    %v1250 = vld [vmem:[%s4 + $0x150] sm:$0xff]
    %v1251 = vld [vmem:[%s4 + $0x158] sm:$0xff]
    %v1252 = vld [vmem:[%s4 + $0x160] sm:$0xff]
    %v1253 = vld [vmem:[%s4 + $0x168] sm:$0xff]
    %v1254 = vld [vmem:[%s4 + $0x170] sm:$0xff]
    %v1255 = vld [vmem:[%s4 + $0x178] sm:$0xff]
    %v1256 = vld [vmem:[%s4 + $0x180] sm:$0xff]
    %v1257 = vld [vmem:[%s4 + $0x188] sm:$0xff]
    %v1258 = vld [vmem:[%s4 + $0x190] sm:$0xff]
    %v1259 = vld [vmem:[%s4 + $0x198] sm:$0xff]
    %v1260 = vld [vmem:[%s4 + $0x1a0] sm:$0xff]
    %v1261 = vld [vmem:[%s4 + $0x1a8] sm:$0xff]
    %v1262 = vld [vmem:[%s4 + $0x1b0] sm:$0xff]
    %v1263 = vld [vmem:[%s4 + $0x1b8] sm:$0xff]
    %v1264 = vld [vmem:[%s4 + $0x1c0] sm:$0xff]
    %v1265 = vld [vmem:[%s4 + $0x1c8] sm:$0xff]
    %v1266 = vld [vmem:[%s4 + $0x1d0] sm:$0xff]
    %v1267 = vld [vmem:[%s4 + $0x1d8] sm:$0xff]
    %v1268 = vld [vmem:[%s4 + $0x1e0] sm:$0xff]
    %v1269 = vld [vmem:[%s4 + $0x1e8] sm:$0xff]
    %v1270 = vld [vmem:[%s4 + $0x1f0] sm:$0xff]
    %v1271 = vld [vmem:[%s4 + $0x1f8] sm:$0xff]
    %v1272 = vperm.slane %v455, 4
    %v1273 = vperm.slane %v456, 4
    %v1274 = vperm.slane %v457, 4
    %v1275 = vperm.slane %v458, 4
    %v1340 = vunpack.c.l.b16 %v1208
    %v1341 = vunpack.c.h.b16 %v1208
    %v1342 = vunpack.c.l.b16 %v1209
    %v1343 = vunpack.c.h.b16 %v1209
    %v1344 = vunpack.c.l.b16 %v1210
    %v1345 = vunpack.c.h.b16 %v1210
    %v1346 = vunpack.c.l.b16 %v1211
    %v1347 = vunpack.c.h.b16 %v1211
    %v1348 = vunpack.c.l.b16 %v1212
    %v1349 = vunpack.c.h.b16 %v1212
    %v1350 = vunpack.c.l.b16 %v1213
    %v1351 = vunpack.c.h.b16 %v1213
    %v1352 = vunpack.c.l.b16 %v1214
    %v1353 = vunpack.c.h.b16 %v1214
    %v1354 = vunpack.c.l.b16 %v1215
    %v1355 = vunpack.c.h.b16 %v1215
    %v1356 = vunpack.c.l.b16 %v1216
    %v1357 = vunpack.c.h.b16 %v1216
    %v1358 = vunpack.c.l.b16 %v1217
    %v1359 = vunpack.c.h.b16 %v1217
    %v1360 = vunpack.c.l.b16 %v1218
    %v1361 = vunpack.c.h.b16 %v1218
    %v1362 = vunpack.c.l.b16 %v1219
    %v1363 = vunpack.c.h.b16 %v1219
    %v1364 = vunpack.c.l.b16 %v1220
    %v1365 = vunpack.c.h.b16 %v1220
    %v1366 = vunpack.c.l.b16 %v1221
    %v1367 = vunpack.c.h.b16 %v1221
    %v1368 = vunpack.c.l.b16 %v1222
    %v1369 = vunpack.c.h.b16 %v1222
    %v1370 = vunpack.c.l.b16 %v1223
    %v1371 = vunpack.c.h.b16 %v1223
    %v1372 = vunpack.c.l.b16 %v1224
    %v1373 = vunpack.c.h.b16 %v1224
    %v1374 = vunpack.c.l.b16 %v1225
    %v1375 = vunpack.c.h.b16 %v1225
    %v1376 = vunpack.c.l.b16 %v1226
    %v1377 = vunpack.c.h.b16 %v1226
    %v1378 = vunpack.c.l.b16 %v1227
    %v1379 = vunpack.c.h.b16 %v1227
    %v1380 = vunpack.c.l.b16 %v1228
    %v1381 = vunpack.c.h.b16 %v1228
    %v1382 = vunpack.c.l.b16 %v1229
    %v1383 = vunpack.c.h.b16 %v1229
    %v1384 = vunpack.c.l.b16 %v1230
    %v1385 = vunpack.c.h.b16 %v1230
    %v1386 = vunpack.c.l.b16 %v1231
    %v1387 = vunpack.c.h.b16 %v1231
    %v1388 = vunpack.c.l.b16 %v1232
    %v1389 = vunpack.c.h.b16 %v1232
    %v1390 = vunpack.c.l.b16 %v1233
    %v1391 = vunpack.c.h.b16 %v1233
    %v1392 = vunpack.c.l.b16 %v1234
    %v1393 = vunpack.c.h.b16 %v1234
    %v1394 = vunpack.c.l.b16 %v1235
    %v1395 = vunpack.c.h.b16 %v1235
    %v1396 = vunpack.c.l.b16 %v1236
    %v1397 = vunpack.c.h.b16 %v1236
    %v1398 = vunpack.c.l.b16 %v1237
    %v1399 = vunpack.c.h.b16 %v1237
    %v1400 = vunpack.c.l.b16 %v1238
    %v1401 = vunpack.c.h.b16 %v1238
    %v1402 = vunpack.c.l.b16 %v1239
    %v1403 = vunpack.c.h.b16 %v1239
    %v1404 = vunpack.c.l.b16 %v1240
    %v1405 = vunpack.c.h.b16 %v1240
    %v1406 = vunpack.c.l.b16 %v1241
    %v1407 = vunpack.c.h.b16 %v1241
    %v1408 = vunpack.c.l.b16 %v1242
    %v1409 = vunpack.c.h.b16 %v1242
    %v1410 = vunpack.c.l.b16 %v1243
    %v1411 = vunpack.c.h.b16 %v1243
    %v1412 = vunpack.c.l.b16 %v1244
    %v1413 = vunpack.c.h.b16 %v1244
    %v1414 = vunpack.c.l.b16 %v1245
    %v1415 = vunpack.c.h.b16 %v1245
    %v1416 = vunpack.c.l.b16 %v1246
    %v1417 = vunpack.c.h.b16 %v1246
    %v1418 = vunpack.c.l.b16 %v1247
    %v1419 = vunpack.c.h.b16 %v1247
    %v1420 = vunpack.c.l.b16 %v1248
    %v1421 = vunpack.c.h.b16 %v1248
    %v1422 = vunpack.c.l.b16 %v1249
    %v1423 = vunpack.c.h.b16 %v1249
    %v1424 = vunpack.c.l.b16 %v1250
    %v1425 = vunpack.c.h.b16 %v1250
    %v1426 = vunpack.c.l.b16 %v1251
    %v1427 = vunpack.c.h.b16 %v1251
    %v1428 = vunpack.c.l.b16 %v1252
    %v1429 = vunpack.c.h.b16 %v1252
    %v1430 = vunpack.c.l.b16 %v1253
    %v1431 = vunpack.c.h.b16 %v1253
    %v1432 = vunpack.c.l.b16 %v1254
    %v1433 = vunpack.c.h.b16 %v1254
    %v1434 = vunpack.c.l.b16 %v1255
    %v1435 = vunpack.c.h.b16 %v1255
    %v1436 = vunpack.c.l.b16 %v1256
    %v1437 = vunpack.c.h.b16 %v1256
    %v1438 = vunpack.c.l.b16 %v1257
    %v1439 = vunpack.c.h.b16 %v1257
    %v1440 = vunpack.c.l.b16 %v1258
    %v1441 = vunpack.c.h.b16 %v1258
    %v1442 = vunpack.c.l.b16 %v1259
    %v1443 = vunpack.c.h.b16 %v1259
    %v1444 = vunpack.c.l.b16 %v1260
    %v1445 = vunpack.c.h.b16 %v1260
    %v1446 = vunpack.c.l.b16 %v1261
    %v1447 = vunpack.c.h.b16 %v1261
    %v1448 = vunpack.c.l.b16 %v1262
    %v1449 = vunpack.c.h.b16 %v1262
    %v1450 = vunpack.c.l.b16 %v1263
    %v1451 = vunpack.c.h.b16 %v1263
    %v1452 = vunpack.c.l.b16 %v1264
    %v1453 = vunpack.c.h.b16 %v1264
    %v1454 = vunpack.c.l.b16 %v1265
    %v1455 = vunpack.c.h.b16 %v1265
    %v1456 = vunpack.c.l.b16 %v1266
    %v1457 = vunpack.c.h.b16 %v1266
    %v1458 = vunpack.c.l.b16 %v1267
    %v1459 = vunpack.c.h.b16 %v1267
    %v1460 = vunpack.c.l.b16 %v1268
    %v1461 = vunpack.c.h.b16 %v1268
    %v1462 = vunpack.c.l.b16 %v1269
    %v1463 = vunpack.c.h.b16 %v1269
    %v1464 = vunpack.c.l.b16 %v1270
    %v1465 = vunpack.c.h.b16 %v1270
    %v1466 = vunpack.c.l.b16 %v1271
    %v1467 = vunpack.c.h.b16 %v1271
    %v1468 = vpack.c.b16 %v1344, %v1340
    %v1469 = vpack.c.b16 %v1345, %v1341
    %v1470 = vpack.c.b16 %v1346, %v1342
    %v1471 = vpack.c.b16 %v1347, %v1343
    %v1472 = vpack.c.b16 %v1352, %v1348
    %v1473 = vpack.c.b16 %v1353, %v1349
    %v1474 = vpack.c.b16 %v1354, %v1350
    %v1475 = vpack.c.b16 %v1355, %v1351
    %v1476 = vpack.c.b16 %v1360, %v1356
    %v1477 = vpack.c.b16 %v1361, %v1357
    %v1478 = vpack.c.b16 %v1362, %v1358
    %v1479 = vpack.c.b16 %v1363, %v1359
    %v1480 = vpack.c.b16 %v1368, %v1364
    %v1481 = vpack.c.b16 %v1369, %v1365
    %v1482 = vpack.c.b16 %v1370, %v1366
    %v1483 = vpack.c.b16 %v1371, %v1367
    %v1484 = vpack.c.b16 %v1376, %v1372
    %v1485 = vpack.c.b16 %v1377, %v1373
    %v1486 = vpack.c.b16 %v1378, %v1374
    %v1487 = vpack.c.b16 %v1379, %v1375
    %v1488 = vpack.c.b16 %v1384, %v1380
    %v1489 = vpack.c.b16 %v1385, %v1381
    %v1490 = vpack.c.b16 %v1386, %v1382
    %v1491 = vpack.c.b16 %v1387, %v1383
    %v1492 = vpack.c.b16 %v1392, %v1388
    %v1493 = vpack.c.b16 %v1393, %v1389
    %v1494 = vpack.c.b16 %v1394, %v1390
    %v1495 = vpack.c.b16 %v1395, %v1391
    %v1496 = vpack.c.b16 %v1400, %v1396
    %v1497 = vpack.c.b16 %v1401, %v1397
    %v1498 = vpack.c.b16 %v1402, %v1398
    %v1499 = vpack.c.b16 %v1403, %v1399
    %v1500 = vpack.c.b16 %v1408, %v1404
    %v1501 = vpack.c.b16 %v1409, %v1405
    %v1502 = vpack.c.b16 %v1410, %v1406
    %v1503 = vpack.c.b16 %v1411, %v1407
    %v1504 = vpack.c.b16 %v1416, %v1412
    %v1505 = vpack.c.b16 %v1417, %v1413
    %v1506 = vpack.c.b16 %v1418, %v1414
    %v1507 = vpack.c.b16 %v1419, %v1415
    %v1508 = vpack.c.b16 %v1424, %v1420
    %v1509 = vpack.c.b16 %v1425, %v1421
    %v1510 = vpack.c.b16 %v1426, %v1422
    %v1511 = vpack.c.b16 %v1427, %v1423
    %v1512 = vpack.c.b16 %v1432, %v1428
    %v1513 = vpack.c.b16 %v1433, %v1429
    %v1514 = vpack.c.b16 %v1434, %v1430
    %v1515 = vpack.c.b16 %v1435, %v1431
    %v1516 = vpack.c.b16 %v1440, %v1436
    %v1517 = vpack.c.b16 %v1441, %v1437
    %v1518 = vpack.c.b16 %v1442, %v1438
    %v1519 = vpack.c.b16 %v1443, %v1439
    %v1520 = vpack.c.b16 %v1448, %v1444
    %v1521 = vpack.c.b16 %v1449, %v1445
    %v1522 = vpack.c.b16 %v1450, %v1446
    %v1523 = vpack.c.b16 %v1451, %v1447
    %v1524 = vpack.c.b16 %v1456, %v1452
    %v1525 = vpack.c.b16 %v1457, %v1453
    %v1526 = vpack.c.b16 %v1458, %v1454
    %v1527 = vpack.c.b16 %v1459, %v1455
    %v1528 = vpack.c.b16 %v1464, %v1460
    %v1529 = vpack.c.b16 %v1465, %v1461
    %v1530 = vpack.c.b16 %v1466, %v1462
    %v1531 = vpack.c.b16 %v1467, %v1463
    %1596 = vmatpush.bf16.msra.mxu0 %v1496
    %1597 = vmatpush.bf16.msra.mxu0 %v1492
    %1598 = vmatpush.bf16.msra.mxu0 %v1488
    %1599 = vmatpush.bf16.msra.mxu0 %v1484
    %1600 = vmatpush.bf16.msra.mxu0 %v1480
    %1601 = vmatpush.bf16.msra.mxu0 %v1476
    %1602 = vmatpush.bf16.msra.mxu0 %v1472
    %1603 = vmatpush.bf16.msra.mxu0 %v1468
    %1604 = vmatmul.bf16.gmra.mxu0 %v1027
    %v1605 = vpop.f32.mrf.mxu0
    %v1606 = vadd.f32 %v1272, %v1605
    %v1607 = vpop.f32.mrf.mxu0
    %1608 = vdwg.mxu0
    %1609 = vmatpush.bf16.msra.mxu0 %v1528
    %1610 = vmatpush.bf16.msra.mxu0 %v1524
    %1611 = vmatpush.bf16.msra.mxu0 %v1520
    %1612 = vmatpush.bf16.msra.mxu0 %v1516
    %1613 = vmatpush.bf16.msra.mxu0 %v1512
    %1614 = vmatpush.bf16.msra.mxu0 %v1508
    %1615 = vmatpush.bf16.msra.mxu0 %v1504
    %1616 = vmatpush.bf16.msra.mxu0 %v1500
    %1617 = vmatmul.bf16.gmra.mxu0 %v1028
    %v1618 = vpop.f32.mrf.mxu0
    %v1619 = vadd.f32 %v1606, %v1618
    %v1620 = vpop.f32.mrf.mxu0
    %1621 = vdwg.mxu0
    %1622 = vmatpush.bf16.msra.mxu0 %v1497
    %1623 = vmatpush.bf16.msra.mxu0 %v1493
    %1624 = vmatpush.bf16.msra.mxu0 %v1489
    %1625 = vmatpush.bf16.msra.mxu0 %v1485
    %1626 = vmatpush.bf16.msra.mxu0 %v1481
    %1627 = vmatpush.bf16.msra.mxu0 %v1477
    %1628 = vmatpush.bf16.msra.mxu0 %v1473
    %1629 = vmatpush.bf16.msra.mxu0 %v1469
    %1630 = vmatmul.bf16.gmra.mxu0 %v1027
    %v1631 = vpop.f32.mrf.mxu0
    %v1632 = vadd.f32 %v1273, %v1631
    %v1633 = vpop.f32.mrf.mxu0
    %1634 = vdwg.mxu0
    %1635 = vmatpush.bf16.msra.mxu0 %v1529
    %1636 = vmatpush.bf16.msra.mxu0 %v1525
    %1637 = vmatpush.bf16.msra.mxu0 %v1521
    %1638 = vmatpush.bf16.msra.mxu0 %v1517
    %1639 = vmatpush.bf16.msra.mxu0 %v1513
    %1640 = vmatpush.bf16.msra.mxu0 %v1509
    %1641 = vmatpush.bf16.msra.mxu0 %v1505
    %1642 = vmatpush.bf16.msra.mxu0 %v1501
    %1643 = vmatmul.bf16.gmra.mxu0 %v1028
    %v1644 = vpop.f32.mrf.mxu0
    %v1645 = vadd.f32 %v1632, %v1644
    %v1646 = vpop.f32.mrf.mxu0
    %1647 = vdwg.mxu0
    %1648 = vmatpush.bf16.msra.mxu0 %v1498
    %1649 = vmatpush.bf16.msra.mxu0 %v1494
    %1650 = vmatpush.bf16.msra.mxu0 %v1490
    %1651 = vmatpush.bf16.msra.mxu0 %v1486
    %1652 = vmatpush.bf16.msra.mxu0 %v1482
    %1653 = vmatpush.bf16.msra.mxu0 %v1478
    %1654 = vmatpush.bf16.msra.mxu0 %v1474
    %1655 = vmatpush.bf16.msra.mxu0 %v1470
    %1656 = vmatmul.bf16.gmra.mxu0 %v1027
    %v1657 = vpop.f32.mrf.mxu0
    %v1658 = vadd.f32 %v1274, %v1657
    %v1659 = vpop.f32.mrf.mxu0
    %1660 = vdwg.mxu0
    %1661 = vmatpush.bf16.msra.mxu0 %v1530
    %1662 = vmatpush.bf16.msra.mxu0 %v1526
    %1663 = vmatpush.bf16.msra.mxu0 %v1522
    %1664 = vmatpush.bf16.msra.mxu0 %v1518
    %1665 = vmatpush.bf16.msra.mxu0 %v1514
    %1666 = vmatpush.bf16.msra.mxu0 %v1510
    %1667 = vmatpush.bf16.msra.mxu0 %v1506
    %1668 = vmatpush.bf16.msra.mxu0 %v1502
    %1669 = vmatmul.bf16.gmra.mxu0 %v1028
    %v1670 = vpop.f32.mrf.mxu0
    %v1671 = vadd.f32 %v1658, %v1670
    %v1672 = vpop.f32.mrf.mxu0
    %1673 = vdwg.mxu0
    %1674 = vmatpush.bf16.msra.mxu0 %v1499
    %1675 = vmatpush.bf16.msra.mxu0 %v1495
    %1676 = vmatpush.bf16.msra.mxu0 %v1491
    %1677 = vmatpush.bf16.msra.mxu0 %v1487
    %1678 = vmatpush.bf16.msra.mxu0 %v1483
    %1679 = vmatpush.bf16.msra.mxu0 %v1479
    %1680 = vmatpush.bf16.msra.mxu0 %v1475
    %1681 = vmatpush.bf16.msra.mxu0 %v1471
    %1682 = vmatmul.bf16.gmra.mxu0 %v1027
    %v1683 = vpop.f32.mrf.mxu0
    %v1684 = vadd.f32 %v1275, %v1683
    %v1685 = vpop.f32.mrf.mxu0
    %1686 = vdwg.mxu0
    %1687 = vmatpush.bf16.msra.mxu0 %v1531
    %1688 = vmatpush.bf16.msra.mxu0 %v1527
    %1689 = vmatpush.bf16.msra.mxu0 %v1523
    %1690 = vmatpush.bf16.msra.mxu0 %v1519
    %1691 = vmatpush.bf16.msra.mxu0 %v1515
    %1692 = vmatpush.bf16.msra.mxu0 %v1511
    %1693 = vmatpush.bf16.msra.mxu0 %v1507
    %1694 = vmatpush.bf16.msra.mxu0 %v1503
    %1695 = vmatmul.bf16.gmra.mxu0 %v1028
    %v1696 = vpop.f32.mrf.mxu0
    %v1697 = vadd.f32 %v1684, %v1696
    %v1698 = vpop.f32.mrf.mxu0
    %1699 = vdwg.mxu0
    %v1700 = vmul.f32 %v1619, %v454
    %v1701 = vmul.f32 %v1645, %v454
    %v1702 = vmul.f32 %v1671, %v454
    %v1703 = vmul.f32 %v1697, %v454
    %v1704 = vrot.slane %v1700, 4
    %v1705 = vadd.f32 %v1700, %v1704
    %v1706 = vrot.slane %v1705, 2
    %v1707 = vadd.f32 %v1705, %v1706
    %v1708 = vrot.slane %v1707, 1
    %v1709 = vadd.f32 %v1707, %v1708
    %v1710 = vrot.slane %v1701, 4
    %v1711 = vadd.f32 %v1701, %v1710
    %v1712 = vrot.slane %v1711, 2
    %v1713 = vadd.f32 %v1711, %v1712
    %v1714 = vrot.slane %v1713, 1
    %v1715 = vadd.f32 %v1713, %v1714
    %v1716 = vrot.slane %v1702, 4
    %v1717 = vadd.f32 %v1702, %v1716
    %v1718 = vrot.slane %v1717, 2
    %v1719 = vadd.f32 %v1717, %v1718
    %v1720 = vrot.slane %v1719, 1
    %v1721 = vadd.f32 %v1719, %v1720
    %v1722 = vrot.slane %v1703, 4
    %v1723 = vadd.f32 %v1703, %v1722
    %v1724 = vrot.slane %v1723, 2
    %v1725 = vadd.f32 %v1723, %v1724
    %v1726 = vrot.slane %v1725, 1
    %v1727 = vadd.f32 %v1725, %v1726
    %v1728 = vmul.f32 %v1709, 0.25
    %v1729 = vmul.f32 %v1715, 0.25
    %v1730 = vmul.f32 %v1721, 0.25
    %v1731 = vmul.f32 %v1727, 0.25
    %v1732 = vsub.f32 %v1619, %v1728
    %v1733 = vsub.f32 %v1645, %v1729
    %v1734 = vsub.f32 %v1671, %v1730
    %v1735 = vsub.f32 %v1697, %v1731
    %v1736 = vmul.f32 %v1732, %v454
    %v1737 = vmul.f32 %v1733, %v454
    %v1738 = vmul.f32 %v1734, %v454
    %v1739 = vmul.f32 %v1735, %v454
    %v1740 = vmul.f32 %v1736, %v1736
    %v1741 = vmul.f32 %v1737, %v1737
    %v1742 = vmul.f32 %v1738, %v1738
    %v1743 = vmul.f32 %v1739, %v1739
    %v1744 = vrot.slane %v1740, 4
    %v1745 = vadd.f32 %v1740, %v1744
    %v1746 = vrot.slane %v1745, 2
    %v1747 = vadd.f32 %v1745, %v1746
    %v1748 = vrot.slane %v1747, 1
    %v1749 = vadd.f32 %v1747, %v1748
    %v1750 = vrot.slane %v1741, 4
    %v1751 = vadd.f32 %v1741, %v1750
    %v1752 = vrot.slane %v1751, 2
    %v1753 = vadd.f32 %v1751, %v1752
    %v1754 = vrot.slane %v1753, 1
    %v1755 = vadd.f32 %v1753, %v1754
    %v1756 = vrot.slane %v1742, 4
    %v1757 = vadd.f32 %v1742, %v1756
    %v1758 = vrot.slane %v1757, 2
    %v1759 = vadd.f32 %v1757, %v1758
    %v1760 = vrot.slane %v1759, 1
    %v1761 = vadd.f32 %v1759, %v1760
    %v1762 = vrot.slane %v1743, 4
    %v1763 = vadd.f32 %v1743, %v1762
    %v1764 = vrot.slane %v1763, 2
    %v1765 = vadd.f32 %v1763, %v1764
    %v1766 = vrot.slane %v1765, 1
    %v1767 = vadd.f32 %v1765, %v1766
    %v1768 = vmul.f32 %v1749, 0.25
    %v1769 = vmul.f32 %v1755, 0.25
    %v1770 = vmul.f32 %v1761, 0.25
    %v1771 = vmul.f32 %v1767, 0.25
    %v1772 = vperm.slane %v455, 5
    %v1773 = vperm.slane %v456, 5
    %v1774 = vperm.slane %v457, 5
    %v1775 = vperm.slane %v458, 5
    %v1776 = vmul.f32 %v1772, %v1732
    %v1777 = vmul.f32 %v1773, %v1733
    %v1778 = vmul.f32 %v1774, %v1734
    %v1779 = vmul.f32 %v1775, %v1735
    %v1780 = vadd.f32 %v1768, 1e-05
    %v1781 = vadd.f32 %v1769, 1e-05
    %v1782 = vadd.f32 %v1770, 1e-05
    %v1783 = vadd.f32 %v1771, 1e-05
    %v1784 = vrsqrt.pop %v1780
    %v1785 = vmul.f32 %v1784, %v1780
    %v1786 = vmul.f32 %v1785, %v1784
    %v1787 = vmul.f32 0.5, %v1786
    %v1788 = vsub.f32 1.5, %v1787
    %v1789 = vmul.f32 %v1784, %v1788
    %vm1790 = vweird.f32 %v1780
    %vm1791 = vweird.f32 %v1784
    %vm1792 = vmor %vm1790, %vm1791
    %v1793 = vsel %vm1792, %v1784, %v1789
    %v1794 = vrsqrt.pop %v1781
    %v1795 = vmul.f32 %v1794, %v1781
    %v1796 = vmul.f32 %v1795, %v1794
    %v1797 = vmul.f32 0.5, %v1796
    %v1798 = vsub.f32 1.5, %v1797
    %v1799 = vmul.f32 %v1794, %v1798
    %vm1800 = vweird.f32 %v1781
    %vm1801 = vweird.f32 %v1794
    %vm1802 = vmor %vm1800, %vm1801
    %v1803 = vsel %vm1802, %v1794, %v1799
    %v1804 = vrsqrt.pop %v1782
    %v1805 = vmul.f32 %v1804, %v1782
    %v1806 = vmul.f32 %v1805, %v1804
    %v1807 = vmul.f32 0.5, %v1806
    %v1808 = vsub.f32 1.5, %v1807
    %v1809 = vmul.f32 %v1804, %v1808
    %vm1810 = vweird.f32 %v1782
    %vm1811 = vweird.f32 %v1804
    %vm1812 = vmor %vm1810, %vm1811
    %v1813 = vsel %vm1812, %v1804, %v1809
    %v1814 = vrsqrt.pop %v1783
    %v1815 = vmul.f32 %v1814, %v1783
    %v1816 = vmul.f32 %v1815, %v1814
    %v1817 = vmul.f32 0.5, %v1816
    %v1818 = vsub.f32 1.5, %v1817
    %v1819 = vmul.f32 %v1814, %v1818
    %vm1820 = vweird.f32 %v1783
    %vm1821 = vweird.f32 %v1814
    %vm1822 = vmor %vm1820, %vm1821
    %v1823 = vsel %vm1822, %v1814, %v1819
    %v1824 = vmul.f32 %v1776, %v1793
    %v1825 = vmul.f32 %v1777, %v1803
    %v1826 = vmul.f32 %v1778, %v1813
    %v1827 = vmul.f32 %v1779, %v1823
    %v1828 = vperm.slane %v455, 6
    %v1829 = vperm.slane %v456, 6
    %v1830 = vperm.slane %v457, 6
    %v1831 = vperm.slane %v458, 6
    %v1832 = vadd.f32 %v1824, %v1828
    %v1833 = vadd.f32 %v1825, %v1829
    %v1834 = vadd.f32 %v1826, %v1830
    %v1835 = vadd.f32 %v1827, %v1831
    %v1836 = vmax.f32 %v1832, 0.0
    %v1837 = vmax.f32 %v1833, 0.0
    %v1838 = vmax.f32 %v1834, 0.0
    %v1839 = vmax.f32 %v1835, 0.0
    %v1840 = vpack.c.bf16 %v1836, %v1836
    %v1841 = vpack.c.bf16 %v1837, %v1837
    %v1842 = vpack.c.bf16 %v1838, %v1838
    %v1843 = vpack.c.bf16 %v1839, %v1839
    %v1844 = vld [vmem:[%s5] sm:$0xff]
    %v1845 = vld [vmem:[%s5 + $0x8] sm:$0xff]
    %v1846 = vld [vmem:[%s5 + $0x10] sm:$0xff]
    %v1847 = vld [vmem:[%s5 + $0x18] sm:$0xff]
    %v1848 = vld [vmem:[%s5 + $0x20] sm:$0xff]
    %v1849 = vld [vmem:[%s5 + $0x28] sm:$0xff]
    %v1850 = vld [vmem:[%s5 + $0x30] sm:$0xff]
    %v1851 = vld [vmem:[%s5 + $0x38] sm:$0xff]
    %v1852 = vld [vmem:[%s5 + $0x40] sm:$0xff]
    %v1853 = vld [vmem:[%s5 + $0x48] sm:$0xff]
    %v1854 = vld [vmem:[%s5 + $0x50] sm:$0xff]
    %v1855 = vld [vmem:[%s5 + $0x58] sm:$0xff]
    %v1856 = vld [vmem:[%s5 + $0x60] sm:$0xff]
    %v1857 = vld [vmem:[%s5 + $0x68] sm:$0xff]
    %v1858 = vld [vmem:[%s5 + $0x70] sm:$0xff]
    %v1859 = vld [vmem:[%s5 + $0x78] sm:$0xff]
    %v1860 = vld [vmem:[%s5 + $0x80] sm:$0xff]
    %v1861 = vld [vmem:[%s5 + $0x88] sm:$0xff]
    %v1862 = vld [vmem:[%s5 + $0x90] sm:$0xff]
    %v1863 = vld [vmem:[%s5 + $0x98] sm:$0xff]
    %v1864 = vld [vmem:[%s5 + $0xa0] sm:$0xff]
    %v1865 = vld [vmem:[%s5 + $0xa8] sm:$0xff]
    %v1866 = vld [vmem:[%s5 + $0xb0] sm:$0xff]
    %v1867 = vld [vmem:[%s5 + $0xb8] sm:$0xff]
    %v1868 = vld [vmem:[%s5 + $0xc0] sm:$0xff]
    %v1869 = vld [vmem:[%s5 + $0xc8] sm:$0xff]
    %v1870 = vld [vmem:[%s5 + $0xd0] sm:$0xff]
    %v1871 = vld [vmem:[%s5 + $0xd8] sm:$0xff]
    %v1872 = vld [vmem:[%s5 + $0xe0] sm:$0xff]
    %v1873 = vld [vmem:[%s5 + $0xe8] sm:$0xff]
    %v1874 = vld [vmem:[%s5 + $0xf0] sm:$0xff]
    %v1875 = vld [vmem:[%s5 + $0xf8] sm:$0xff]
    %v1876 = vld [vmem:[%s5 + $0x100] sm:$0xff]
    %v1877 = vld [vmem:[%s5 + $0x108] sm:$0xff]
    %v1878 = vld [vmem:[%s5 + $0x110] sm:$0xff]
    %v1879 = vld [vmem:[%s5 + $0x118] sm:$0xff]
    %v1880 = vld [vmem:[%s5 + $0x120] sm:$0xff]
    %v1881 = vld [vmem:[%s5 + $0x128] sm:$0xff]
    %v1882 = vld [vmem:[%s5 + $0x130] sm:$0xff]
    %v1883 = vld [vmem:[%s5 + $0x138] sm:$0xff]
    %v1884 = vld [vmem:[%s5 + $0x140] sm:$0xff]
    %v1885 = vld [vmem:[%s5 + $0x148] sm:$0xff]
    %v1886 = vld [vmem:[%s5 + $0x150] sm:$0xff]
    %v1887 = vld [vmem:[%s5 + $0x158] sm:$0xff]
    %v1888 = vld [vmem:[%s5 + $0x160] sm:$0xff]
    %v1889 = vld [vmem:[%s5 + $0x168] sm:$0xff]
    %v1890 = vld [vmem:[%s5 + $0x170] sm:$0xff]
    %v1891 = vld [vmem:[%s5 + $0x178] sm:$0xff]
    %v1892 = vld [vmem:[%s5 + $0x180] sm:$0xff]
    %v1893 = vld [vmem:[%s5 + $0x188] sm:$0xff]
    %v1894 = vld [vmem:[%s5 + $0x190] sm:$0xff]
    %v1895 = vld [vmem:[%s5 + $0x198] sm:$0xff]
    %v1896 = vld [vmem:[%s5 + $0x1a0] sm:$0xff]
    %v1897 = vld [vmem:[%s5 + $0x1a8] sm:$0xff]
    %v1898 = vld [vmem:[%s5 + $0x1b0] sm:$0xff]
    %v1899 = vld [vmem:[%s5 + $0x1b8] sm:$0xff]
    %v1900 = vld [vmem:[%s5 + $0x1c0] sm:$0xff]
    %v1901 = vld [vmem:[%s5 + $0x1c8] sm:$0xff]
    %v1902 = vld [vmem:[%s5 + $0x1d0] sm:$0xff]
    %v1903 = vld [vmem:[%s5 + $0x1d8] sm:$0xff]
    %v1904 = vld [vmem:[%s5 + $0x1e0] sm:$0xff]
    %v1905 = vld [vmem:[%s5 + $0x1e8] sm:$0xff]
    %v1906 = vld [vmem:[%s5 + $0x1f0] sm:$0xff]
    %v1907 = vld [vmem:[%s5 + $0x1f8] sm:$0xff]
    %v1908 = vld [vmem:[%s5 + $0x200] sm:$0xff]
    %v1909 = vld [vmem:[%s5 + $0x208] sm:$0xff]
    %v1910 = vld [vmem:[%s5 + $0x210] sm:$0xff]
    %v1911 = vld [vmem:[%s5 + $0x218] sm:$0xff]
    %v1912 = vld [vmem:[%s5 + $0x220] sm:$0xff]
    %v1913 = vld [vmem:[%s5 + $0x228] sm:$0xff]
    %v1914 = vld [vmem:[%s5 + $0x230] sm:$0xff]
    %v1915 = vld [vmem:[%s5 + $0x238] sm:$0xff]
    %v1916 = vld [vmem:[%s5 + $0x240] sm:$0xff]
    %v1917 = vld [vmem:[%s5 + $0x248] sm:$0xff]
    %v1918 = vld [vmem:[%s5 + $0x250] sm:$0xff]
    %v1919 = vld [vmem:[%s5 + $0x258] sm:$0xff]
    %v1920 = vld [vmem:[%s5 + $0x260] sm:$0xff]
    %v1921 = vld [vmem:[%s5 + $0x268] sm:$0xff]
    %v1922 = vld [vmem:[%s5 + $0x270] sm:$0xff]
    %v1923 = vld [vmem:[%s5 + $0x278] sm:$0xff]
    %v1924 = vld [vmem:[%s5 + $0x280] sm:$0xff]
    %v1925 = vld [vmem:[%s5 + $0x288] sm:$0xff]
    %v1926 = vld [vmem:[%s5 + $0x290] sm:$0xff]
    %v1927 = vld [vmem:[%s5 + $0x298] sm:$0xff]
    %v1928 = vld [vmem:[%s5 + $0x2a0] sm:$0xff]
    %v1929 = vld [vmem:[%s5 + $0x2a8] sm:$0xff]
    %v1930 = vld [vmem:[%s5 + $0x2b0] sm:$0xff]
    %v1931 = vld [vmem:[%s5 + $0x2b8] sm:$0xff]
    %v1932 = vld [vmem:[%s5 + $0x2c0] sm:$0xff]
    %v1933 = vld [vmem:[%s5 + $0x2c8] sm:$0xff]
    %v1934 = vld [vmem:[%s5 + $0x2d0] sm:$0xff]
    %v1935 = vld [vmem:[%s5 + $0x2d8] sm:$0xff]
    %v1936 = vld [vmem:[%s5 + $0x2e0] sm:$0xff]
    %v1937 = vld [vmem:[%s5 + $0x2e8] sm:$0xff]
    %v1938 = vld [vmem:[%s5 + $0x2f0] sm:$0xff]
    %v1939 = vld [vmem:[%s5 + $0x2f8] sm:$0xff]
    %v1940 = vld [vmem:[%s5 + $0x300] sm:$0xff]
    %v1941 = vld [vmem:[%s5 + $0x308] sm:$0xff]
    %v1942 = vld [vmem:[%s5 + $0x310] sm:$0xff]
    %v1943 = vld [vmem:[%s5 + $0x318] sm:$0xff]
    %v1944 = vld [vmem:[%s5 + $0x320] sm:$0xff]
    %v1945 = vld [vmem:[%s5 + $0x328] sm:$0xff]
    %v1946 = vld [vmem:[%s5 + $0x330] sm:$0xff]
    %v1947 = vld [vmem:[%s5 + $0x338] sm:$0xff]
    %v1948 = vld [vmem:[%s5 + $0x340] sm:$0xff]
    %v1949 = vld [vmem:[%s5 + $0x348] sm:$0xff]
    %v1950 = vld [vmem:[%s5 + $0x350] sm:$0xff]
    %v1951 = vld [vmem:[%s5 + $0x358] sm:$0xff]
    %v1952 = vld [vmem:[%s5 + $0x360] sm:$0xff]
    %v1953 = vld [vmem:[%s5 + $0x368] sm:$0xff]
    %v1954 = vld [vmem:[%s5 + $0x370] sm:$0xff]
    %v1955 = vld [vmem:[%s5 + $0x378] sm:$0xff]
    %v1956 = vld [vmem:[%s5 + $0x380] sm:$0xff]
    %v1957 = vld [vmem:[%s5 + $0x388] sm:$0xff]
    %v1958 = vld [vmem:[%s5 + $0x390] sm:$0xff]
    %v1959 = vld [vmem:[%s5 + $0x398] sm:$0xff]
    %v1960 = vld [vmem:[%s5 + $0x3a0] sm:$0xff]
    %v1961 = vld [vmem:[%s5 + $0x3a8] sm:$0xff]
    %v1962 = vld [vmem:[%s5 + $0x3b0] sm:$0xff]
    %v1963 = vld [vmem:[%s5 + $0x3b8] sm:$0xff]
    %v1964 = vld [vmem:[%s5 + $0x3c0] sm:$0xff]
    %v1965 = vld [vmem:[%s5 + $0x3c8] sm:$0xff]
    %v1966 = vld [vmem:[%s5 + $0x3d0] sm:$0xff]
    %v1967 = vld [vmem:[%s5 + $0x3d8] sm:$0xff]
    %v1968 = vld [vmem:[%s5 + $0x3e0] sm:$0xff]
    %v1969 = vld [vmem:[%s5 + $0x3e8] sm:$0xff]
    %v1970 = vld [vmem:[%s5 + $0x3f0] sm:$0xff]
    %v1971 = vld [vmem:[%s5 + $0x3f8] sm:$0xff]
    %v1972 = vperm.slane %v455, 7
    %v1973 = vperm.slane %v456, 7
    %v1974 = vperm.slane %v457, 7
    %v1975 = vperm.slane %v458, 7
    %v2104 = vunpack.c.l.b16 %v1844
    %v2105 = vunpack.c.h.b16 %v1844
    %v2106 = vunpack.c.l.b16 %v1845
    %v2107 = vunpack.c.h.b16 %v1845
    %v2108 = vunpack.c.l.b16 %v1846
    %v2109 = vunpack.c.h.b16 %v1846
    %v2110 = vunpack.c.l.b16 %v1847
    %v2111 = vunpack.c.h.b16 %v1847
    %v2112 = vunpack.c.l.b16 %v1848
    %v2113 = vunpack.c.h.b16 %v1848
    %v2114 = vunpack.c.l.b16 %v1849
    %v2115 = vunpack.c.h.b16 %v1849
    %v2116 = vunpack.c.l.b16 %v1850
    %v2117 = vunpack.c.h.b16 %v1850
    %v2118 = vunpack.c.l.b16 %v1851
    %v2119 = vunpack.c.h.b16 %v1851
    %v2120 = vunpack.c.l.b16 %v1852
    %v2121 = vunpack.c.h.b16 %v1852
    %v2122 = vunpack.c.l.b16 %v1853
    %v2123 = vunpack.c.h.b16 %v1853
    %v2124 = vunpack.c.l.b16 %v1854
    %v2125 = vunpack.c.h.b16 %v1854
    %v2126 = vunpack.c.l.b16 %v1855
    %v2127 = vunpack.c.h.b16 %v1855
    %v2128 = vunpack.c.l.b16 %v1856
    %v2129 = vunpack.c.h.b16 %v1856
    %v2130 = vunpack.c.l.b16 %v1857
    %v2131 = vunpack.c.h.b16 %v1857
    %v2132 = vunpack.c.l.b16 %v1858
    %v2133 = vunpack.c.h.b16 %v1858
    %v2134 = vunpack.c.l.b16 %v1859
    %v2135 = vunpack.c.h.b16 %v1859
    %v2136 = vunpack.c.l.b16 %v1860
    %v2137 = vunpack.c.h.b16 %v1860
    %v2138 = vunpack.c.l.b16 %v1861
    %v2139 = vunpack.c.h.b16 %v1861
    %v2140 = vunpack.c.l.b16 %v1862
    %v2141 = vunpack.c.h.b16 %v1862
    %v2142 = vunpack.c.l.b16 %v1863
    %v2143 = vunpack.c.h.b16 %v1863
    %v2144 = vunpack.c.l.b16 %v1864
    %v2145 = vunpack.c.h.b16 %v1864
    %v2146 = vunpack.c.l.b16 %v1865
    %v2147 = vunpack.c.h.b16 %v1865
    %v2148 = vunpack.c.l.b16 %v1866
    %v2149 = vunpack.c.h.b16 %v1866
    %v2150 = vunpack.c.l.b16 %v1867
    %v2151 = vunpack.c.h.b16 %v1867
    %v2152 = vunpack.c.l.b16 %v1868
    %v2153 = vunpack.c.h.b16 %v1868
    %v2154 = vunpack.c.l.b16 %v1869
    %v2155 = vunpack.c.h.b16 %v1869
    %v2156 = vunpack.c.l.b16 %v1870
    %v2157 = vunpack.c.h.b16 %v1870
    %v2158 = vunpack.c.l.b16 %v1871
    %v2159 = vunpack.c.h.b16 %v1871
    %v2160 = vunpack.c.l.b16 %v1872
    %v2161 = vunpack.c.h.b16 %v1872
    %v2162 = vunpack.c.l.b16 %v1873
    %v2163 = vunpack.c.h.b16 %v1873
    %v2164 = vunpack.c.l.b16 %v1874
    %v2165 = vunpack.c.h.b16 %v1874
    %v2166 = vunpack.c.l.b16 %v1875
    %v2167 = vunpack.c.h.b16 %v1875
    %v2168 = vunpack.c.l.b16 %v1876
    %v2169 = vunpack.c.h.b16 %v1876
    %v2170 = vunpack.c.l.b16 %v1877
    %v2171 = vunpack.c.h.b16 %v1877
    %v2172 = vunpack.c.l.b16 %v1878
    %v2173 = vunpack.c.h.b16 %v1878
    %v2174 = vunpack.c.l.b16 %v1879
    %v2175 = vunpack.c.h.b16 %v1879
    %v2176 = vunpack.c.l.b16 %v1880
    %v2177 = vunpack.c.h.b16 %v1880
    %v2178 = vunpack.c.l.b16 %v1881
    %v2179 = vunpack.c.h.b16 %v1881
    %v2180 = vunpack.c.l.b16 %v1882
    %v2181 = vunpack.c.h.b16 %v1882
    %v2182 = vunpack.c.l.b16 %v1883
    %v2183 = vunpack.c.h.b16 %v1883
    %v2184 = vunpack.c.l.b16 %v1884
    %v2185 = vunpack.c.h.b16 %v1884
    %v2186 = vunpack.c.l.b16 %v1885
    %v2187 = vunpack.c.h.b16 %v1885
    %v2188 = vunpack.c.l.b16 %v1886
    %v2189 = vunpack.c.h.b16 %v1886
    %v2190 = vunpack.c.l.b16 %v1887
    %v2191 = vunpack.c.h.b16 %v1887
    %v2192 = vunpack.c.l.b16 %v1888
    %v2193 = vunpack.c.h.b16 %v1888
    %v2194 = vunpack.c.l.b16 %v1889
    %v2195 = vunpack.c.h.b16 %v1889
    %v2196 = vunpack.c.l.b16 %v1890
    %v2197 = vunpack.c.h.b16 %v1890
    %v2198 = vunpack.c.l.b16 %v1891
    %v2199 = vunpack.c.h.b16 %v1891
    %v2200 = vunpack.c.l.b16 %v1892
    %v2201 = vunpack.c.h.b16 %v1892
    %v2202 = vunpack.c.l.b16 %v1893
    %v2203 = vunpack.c.h.b16 %v1893
    %v2204 = vunpack.c.l.b16 %v1894
    %v2205 = vunpack.c.h.b16 %v1894
    %v2206 = vunpack.c.l.b16 %v1895
    %v2207 = vunpack.c.h.b16 %v1895
    %v2208 = vunpack.c.l.b16 %v1896
    %v2209 = vunpack.c.h.b16 %v1896
    %v2210 = vunpack.c.l.b16 %v1897
    %v2211 = vunpack.c.h.b16 %v1897
    %v2212 = vunpack.c.l.b16 %v1898
    %v2213 = vunpack.c.h.b16 %v1898
    %v2214 = vunpack.c.l.b16 %v1899
    %v2215 = vunpack.c.h.b16 %v1899
    %v2216 = vunpack.c.l.b16 %v1900
    %v2217 = vunpack.c.h.b16 %v1900
    %v2218 = vunpack.c.l.b16 %v1901
    %v2219 = vunpack.c.h.b16 %v1901
    %v2220 = vunpack.c.l.b16 %v1902
    %v2221 = vunpack.c.h.b16 %v1902
    %v2222 = vunpack.c.l.b16 %v1903
    %v2223 = vunpack.c.h.b16 %v1903
    %v2224 = vunpack.c.l.b16 %v1904
    %v2225 = vunpack.c.h.b16 %v1904
    %v2226 = vunpack.c.l.b16 %v1905
    %v2227 = vunpack.c.h.b16 %v1905
    %v2228 = vunpack.c.l.b16 %v1906
    %v2229 = vunpack.c.h.b16 %v1906
    %v2230 = vunpack.c.l.b16 %v1907
    %v2231 = vunpack.c.h.b16 %v1907
    %v2232 = vunpack.c.l.b16 %v1908
    %v2233 = vunpack.c.h.b16 %v1908
    %v2234 = vunpack.c.l.b16 %v1909
    %v2235 = vunpack.c.h.b16 %v1909
    %v2236 = vunpack.c.l.b16 %v1910
    %v2237 = vunpack.c.h.b16 %v1910
    %v2238 = vunpack.c.l.b16 %v1911
    %v2239 = vunpack.c.h.b16 %v1911
    %v2240 = vunpack.c.l.b16 %v1912
    %v2241 = vunpack.c.h.b16 %v1912
    %v2242 = vunpack.c.l.b16 %v1913
    %v2243 = vunpack.c.h.b16 %v1913
    %v2244 = vunpack.c.l.b16 %v1914
    %v2245 = vunpack.c.h.b16 %v1914
    %v2246 = vunpack.c.l.b16 %v1915
    %v2247 = vunpack.c.h.b16 %v1915
    %v2248 = vunpack.c.l.b16 %v1916
    %v2249 = vunpack.c.h.b16 %v1916
    %v2250 = vunpack.c.l.b16 %v1917
    %v2251 = vunpack.c.h.b16 %v1917
    %v2252 = vunpack.c.l.b16 %v1918
    %v2253 = vunpack.c.h.b16 %v1918
    %v2254 = vunpack.c.l.b16 %v1919
    %v2255 = vunpack.c.h.b16 %v1919
    %v2256 = vunpack.c.l.b16 %v1920
    %v2257 = vunpack.c.h.b16 %v1920
    %v2258 = vunpack.c.l.b16 %v1921
    %v2259 = vunpack.c.h.b16 %v1921
    %v2260 = vunpack.c.l.b16 %v1922
    %v2261 = vunpack.c.h.b16 %v1922
    %v2262 = vunpack.c.l.b16 %v1923
    %v2263 = vunpack.c.h.b16 %v1923
    %v2264 = vunpack.c.l.b16 %v1924
    %v2265 = vunpack.c.h.b16 %v1924
    %v2266 = vunpack.c.l.b16 %v1925
    %v2267 = vunpack.c.h.b16 %v1925
    %v2268 = vunpack.c.l.b16 %v1926
    %v2269 = vunpack.c.h.b16 %v1926
    %v2270 = vunpack.c.l.b16 %v1927
    %v2271 = vunpack.c.h.b16 %v1927
    %v2272 = vunpack.c.l.b16 %v1928
    %v2273 = vunpack.c.h.b16 %v1928
    %v2274 = vunpack.c.l.b16 %v1929
    %v2275 = vunpack.c.h.b16 %v1929
    %v2276 = vunpack.c.l.b16 %v1930
    %v2277 = vunpack.c.h.b16 %v1930
    %v2278 = vunpack.c.l.b16 %v1931
    %v2279 = vunpack.c.h.b16 %v1931
    %v2280 = vunpack.c.l.b16 %v1932
    %v2281 = vunpack.c.h.b16 %v1932
    %v2282 = vunpack.c.l.b16 %v1933
    %v2283 = vunpack.c.h.b16 %v1933
    %v2284 = vunpack.c.l.b16 %v1934
    %v2285 = vunpack.c.h.b16 %v1934
    %v2286 = vunpack.c.l.b16 %v1935
    %v2287 = vunpack.c.h.b16 %v1935
    %v2288 = vunpack.c.l.b16 %v1936
    %v2289 = vunpack.c.h.b16 %v1936
    %v2290 = vunpack.c.l.b16 %v1937
    %v2291 = vunpack.c.h.b16 %v1937
    %v2292 = vunpack.c.l.b16 %v1938
    %v2293 = vunpack.c.h.b16 %v1938
    %v2294 = vunpack.c.l.b16 %v1939
    %v2295 = vunpack.c.h.b16 %v1939
    %v2296 = vunpack.c.l.b16 %v1940
    %v2297 = vunpack.c.h.b16 %v1940
    %v2298 = vunpack.c.l.b16 %v1941
    %v2299 = vunpack.c.h.b16 %v1941
    %v2300 = vunpack.c.l.b16 %v1942
    %v2301 = vunpack.c.h.b16 %v1942
    %v2302 = vunpack.c.l.b16 %v1943
    %v2303 = vunpack.c.h.b16 %v1943
    %v2304 = vunpack.c.l.b16 %v1944
    %v2305 = vunpack.c.h.b16 %v1944
    %v2306 = vunpack.c.l.b16 %v1945
    %v2307 = vunpack.c.h.b16 %v1945
    %v2308 = vunpack.c.l.b16 %v1946
    %v2309 = vunpack.c.h.b16 %v1946
    %v2310 = vunpack.c.l.b16 %v1947
    %v2311 = vunpack.c.h.b16 %v1947
    %v2312 = vunpack.c.l.b16 %v1948
    %v2313 = vunpack.c.h.b16 %v1948
    %v2314 = vunpack.c.l.b16 %v1949
    %v2315 = vunpack.c.h.b16 %v1949
    %v2316 = vunpack.c.l.b16 %v1950
    %v2317 = vunpack.c.h.b16 %v1950
    %v2318 = vunpack.c.l.b16 %v1951
    %v2319 = vunpack.c.h.b16 %v1951
    %v2320 = vunpack.c.l.b16 %v1952
    %v2321 = vunpack.c.h.b16 %v1952
    %v2322 = vunpack.c.l.b16 %v1953
    %v2323 = vunpack.c.h.b16 %v1953
    %v2324 = vunpack.c.l.b16 %v1954
    %v2325 = vunpack.c.h.b16 %v1954
    %v2326 = vunpack.c.l.b16 %v1955
    %v2327 = vunpack.c.h.b16 %v1955
    %v2328 = vunpack.c.l.b16 %v1956
    %v2329 = vunpack.c.h.b16 %v1956
    %v2330 = vunpack.c.l.b16 %v1957
    %v2331 = vunpack.c.h.b16 %v1957
    %v2332 = vunpack.c.l.b16 %v1958
    %v2333 = vunpack.c.h.b16 %v1958
    %v2334 = vunpack.c.l.b16 %v1959
    %v2335 = vunpack.c.h.b16 %v1959
    %v2336 = vunpack.c.l.b16 %v1960
    %v2337 = vunpack.c.h.b16 %v1960
    %v2338 = vunpack.c.l.b16 %v1961
    %v2339 = vunpack.c.h.b16 %v1961
    %v2340 = vunpack.c.l.b16 %v1962
    %v2341 = vunpack.c.h.b16 %v1962
    %v2342 = vunpack.c.l.b16 %v1963
    %v2343 = vunpack.c.h.b16 %v1963
    %v2344 = vunpack.c.l.b16 %v1964
    %v2345 = vunpack.c.h.b16 %v1964
    %v2346 = vunpack.c.l.b16 %v1965
    %v2347 = vunpack.c.h.b16 %v1965
    %v2348 = vunpack.c.l.b16 %v1966
    %v2349 = vunpack.c.h.b16 %v1966
    %v2350 = vunpack.c.l.b16 %v1967
    %v2351 = vunpack.c.h.b16 %v1967
    %v2352 = vunpack.c.l.b16 %v1968
    %v2353 = vunpack.c.h.b16 %v1968
    %v2354 = vunpack.c.l.b16 %v1969
    %v2355 = vunpack.c.h.b16 %v1969
    %v2356 = vunpack.c.l.b16 %v1970
    %v2357 = vunpack.c.h.b16 %v1970
    %v2358 = vunpack.c.l.b16 %v1971
    %v2359 = vunpack.c.h.b16 %v1971
    %v2360 = vpack.c.b16 %v2108, %v2104
    %v2361 = vpack.c.b16 %v2109, %v2105
    %v2362 = vpack.c.b16 %v2110, %v2106
    %v2363 = vpack.c.b16 %v2111, %v2107
    %v2364 = vpack.c.b16 %v2116, %v2112
    %v2365 = vpack.c.b16 %v2117, %v2113
    %v2366 = vpack.c.b16 %v2118, %v2114
    %v2367 = vpack.c.b16 %v2119, %v2115
    %v2368 = vpack.c.b16 %v2124, %v2120
    %v2369 = vpack.c.b16 %v2125, %v2121
    %v2370 = vpack.c.b16 %v2126, %v2122
    %v2371 = vpack.c.b16 %v2127, %v2123
    %v2372 = vpack.c.b16 %v2132, %v2128
    %v2373 = vpack.c.b16 %v2133, %v2129
    %v2374 = vpack.c.b16 %v2134, %v2130
    %v2375 = vpack.c.b16 %v2135, %v2131
    %v2376 = vpack.c.b16 %v2140, %v2136
    %v2377 = vpack.c.b16 %v2141, %v2137
    %v2378 = vpack.c.b16 %v2142, %v2138
    %v2379 = vpack.c.b16 %v2143, %v2139
    %v2380 = vpack.c.b16 %v2148, %v2144
    %v2381 = vpack.c.b16 %v2149, %v2145
    %v2382 = vpack.c.b16 %v2150, %v2146
    %v2383 = vpack.c.b16 %v2151, %v2147
    %v2384 = vpack.c.b16 %v2156, %v2152
    %v2385 = vpack.c.b16 %v2157, %v2153
    %v2386 = vpack.c.b16 %v2158, %v2154
    %v2387 = vpack.c.b16 %v2159, %v2155
    %v2388 = vpack.c.b16 %v2164, %v2160
    %v2389 = vpack.c.b16 %v2165, %v2161
    %v2390 = vpack.c.b16 %v2166, %v2162
    %v2391 = vpack.c.b16 %v2167, %v2163
    %v2392 = vpack.c.b16 %v2172, %v2168
    %v2393 = vpack.c.b16 %v2173, %v2169
    %v2394 = vpack.c.b16 %v2174, %v2170
    %v2395 = vpack.c.b16 %v2175, %v2171
    %v2396 = vpack.c.b16 %v2180, %v2176
    %v2397 = vpack.c.b16 %v2181, %v2177
    %v2398 = vpack.c.b16 %v2182, %v2178
    %v2399 = vpack.c.b16 %v2183, %v2179
    %v2400 = vpack.c.b16 %v2188, %v2184
    %v2401 = vpack.c.b16 %v2189, %v2185
    %v2402 = vpack.c.b16 %v2190, %v2186
    %v2403 = vpack.c.b16 %v2191, %v2187
    %v2404 = vpack.c.b16 %v2196, %v2192
    %v2405 = vpack.c.b16 %v2197, %v2193
    %v2406 = vpack.c.b16 %v2198, %v2194
    %v2407 = vpack.c.b16 %v2199, %v2195
    %v2408 = vpack.c.b16 %v2204, %v2200
    %v2409 = vpack.c.b16 %v2205, %v2201
    %v2410 = vpack.c.b16 %v2206, %v2202
    %v2411 = vpack.c.b16 %v2207, %v2203
    %v2412 = vpack.c.b16 %v2212, %v2208
    %v2413 = vpack.c.b16 %v2213, %v2209
    %v2414 = vpack.c.b16 %v2214, %v2210
    %v2415 = vpack.c.b16 %v2215, %v2211
    %v2416 = vpack.c.b16 %v2220, %v2216
    %v2417 = vpack.c.b16 %v2221, %v2217
    %v2418 = vpack.c.b16 %v2222, %v2218
    %v2419 = vpack.c.b16 %v2223, %v2219
    %v2420 = vpack.c.b16 %v2228, %v2224
    %v2421 = vpack.c.b16 %v2229, %v2225
    %v2422 = vpack.c.b16 %v2230, %v2226
    %v2423 = vpack.c.b16 %v2231, %v2227
    %v2424 = vpack.c.b16 %v2236, %v2232
    %v2425 = vpack.c.b16 %v2237, %v2233
    %v2426 = vpack.c.b16 %v2238, %v2234
    %v2427 = vpack.c.b16 %v2239, %v2235
    %v2428 = vpack.c.b16 %v2244, %v2240
    %v2429 = vpack.c.b16 %v2245, %v2241
    %v2430 = vpack.c.b16 %v2246, %v2242
    %v2431 = vpack.c.b16 %v2247, %v2243
    %v2432 = vpack.c.b16 %v2252, %v2248
    %v2433 = vpack.c.b16 %v2253, %v2249
    %v2434 = vpack.c.b16 %v2254, %v2250
    %v2435 = vpack.c.b16 %v2255, %v2251
    %v2436 = vpack.c.b16 %v2260, %v2256
    %v2437 = vpack.c.b16 %v2261, %v2257
    %v2438 = vpack.c.b16 %v2262, %v2258
    %v2439 = vpack.c.b16 %v2263, %v2259
    %v2440 = vpack.c.b16 %v2268, %v2264
    %v2441 = vpack.c.b16 %v2269, %v2265
    %v2442 = vpack.c.b16 %v2270, %v2266
    %v2443 = vpack.c.b16 %v2271, %v2267
    %v2444 = vpack.c.b16 %v2276, %v2272
    %v2445 = vpack.c.b16 %v2277, %v2273
    %v2446 = vpack.c.b16 %v2278, %v2274
    %v2447 = vpack.c.b16 %v2279, %v2275
    %v2448 = vpack.c.b16 %v2284, %v2280
    %v2449 = vpack.c.b16 %v2285, %v2281
    %v2450 = vpack.c.b16 %v2286, %v2282
    %v2451 = vpack.c.b16 %v2287, %v2283
    %v2452 = vpack.c.b16 %v2292, %v2288
    %v2453 = vpack.c.b16 %v2293, %v2289
    %v2454 = vpack.c.b16 %v2294, %v2290
    %v2455 = vpack.c.b16 %v2295, %v2291
    %v2456 = vpack.c.b16 %v2300, %v2296
    %v2457 = vpack.c.b16 %v2301, %v2297
    %v2458 = vpack.c.b16 %v2302, %v2298
    %v2459 = vpack.c.b16 %v2303, %v2299
    %v2460 = vpack.c.b16 %v2308, %v2304
    %v2461 = vpack.c.b16 %v2309, %v2305
    %v2462 = vpack.c.b16 %v2310, %v2306
    %v2463 = vpack.c.b16 %v2311, %v2307
    %v2464 = vpack.c.b16 %v2316, %v2312
    %v2465 = vpack.c.b16 %v2317, %v2313
    %v2466 = vpack.c.b16 %v2318, %v2314
    %v2467 = vpack.c.b16 %v2319, %v2315
    %v2468 = vpack.c.b16 %v2324, %v2320
    %v2469 = vpack.c.b16 %v2325, %v2321
    %v2470 = vpack.c.b16 %v2326, %v2322
    %v2471 = vpack.c.b16 %v2327, %v2323
    %v2472 = vpack.c.b16 %v2332, %v2328
    %v2473 = vpack.c.b16 %v2333, %v2329
    %v2474 = vpack.c.b16 %v2334, %v2330
    %v2475 = vpack.c.b16 %v2335, %v2331
    %v2476 = vpack.c.b16 %v2340, %v2336
    %v2477 = vpack.c.b16 %v2341, %v2337
    %v2478 = vpack.c.b16 %v2342, %v2338
    %v2479 = vpack.c.b16 %v2343, %v2339
    %v2480 = vpack.c.b16 %v2348, %v2344
    %v2481 = vpack.c.b16 %v2349, %v2345
    %v2482 = vpack.c.b16 %v2350, %v2346
    %v2483 = vpack.c.b16 %v2351, %v2347
    %v2484 = vpack.c.b16 %v2356, %v2352
    %v2485 = vpack.c.b16 %v2357, %v2353
    %v2486 = vpack.c.b16 %v2358, %v2354
    %v2487 = vpack.c.b16 %v2359, %v2355
    %2616 = vmatpush.bf16.msra.mxu0 %v2388
    %2617 = vmatpush.bf16.msra.mxu0 %v2384
    %2618 = vmatpush.bf16.msra.mxu0 %v2380
    %2619 = vmatpush.bf16.msra.mxu0 %v2376
    %2620 = vmatpush.bf16.msra.mxu0 %v2372
    %2621 = vmatpush.bf16.msra.mxu0 %v2368
    %2622 = vmatpush.bf16.msra.mxu0 %v2364
    %2623 = vmatpush.bf16.msra.mxu0 %v2360
    %2624 = vmatmul.bf16.gmra.mxu0 %v1840
    %v2625 = vpop.f32.mrf.mxu0
    %v2626 = vadd.f32 %v1972, %v2625
    %v2627 = vpop.f32.mrf.mxu0
    %2628 = vdwg.mxu0
    %2629 = vmatpush.bf16.msra.mxu0 %v2420
    %2630 = vmatpush.bf16.msra.mxu0 %v2416
    %2631 = vmatpush.bf16.msra.mxu0 %v2412
    %2632 = vmatpush.bf16.msra.mxu0 %v2408
    %2633 = vmatpush.bf16.msra.mxu0 %v2404
    %2634 = vmatpush.bf16.msra.mxu0 %v2400
    %2635 = vmatpush.bf16.msra.mxu0 %v2396
    %2636 = vmatpush.bf16.msra.mxu0 %v2392
    %2637 = vmatmul.bf16.gmra.mxu0 %v1841
    %v2638 = vpop.f32.mrf.mxu0
    %v2639 = vadd.f32 %v2626, %v2638
    %v2640 = vpop.f32.mrf.mxu0
    %2641 = vdwg.mxu0
    %2642 = vmatpush.bf16.msra.mxu0 %v2452
    %2643 = vmatpush.bf16.msra.mxu0 %v2448
    %2644 = vmatpush.bf16.msra.mxu0 %v2444
    %2645 = vmatpush.bf16.msra.mxu0 %v2440
    %2646 = vmatpush.bf16.msra.mxu0 %v2436
    %2647 = vmatpush.bf16.msra.mxu0 %v2432
    %2648 = vmatpush.bf16.msra.mxu0 %v2428
    %2649 = vmatpush.bf16.msra.mxu0 %v2424
    %2650 = vmatmul.bf16.gmra.mxu0 %v1842
    %v2651 = vpop.f32.mrf.mxu0
    %v2652 = vadd.f32 %v2639, %v2651
    %v2653 = vpop.f32.mrf.mxu0
    %2654 = vdwg.mxu0
    %2655 = vmatpush.bf16.msra.mxu0 %v2484
    %2656 = vmatpush.bf16.msra.mxu0 %v2480
    %2657 = vmatpush.bf16.msra.mxu0 %v2476
    %2658 = vmatpush.bf16.msra.mxu0 %v2472
    %2659 = vmatpush.bf16.msra.mxu0 %v2468
    %2660 = vmatpush.bf16.msra.mxu0 %v2464
    %2661 = vmatpush.bf16.msra.mxu0 %v2460
    %2662 = vmatpush.bf16.msra.mxu0 %v2456
    %2663 = vmatmul.bf16.gmra.mxu0 %v1843
    %v2664 = vpop.f32.mrf.mxu0
    %v2665 = vadd.f32 %v2652, %v2664
    %v2666 = vpop.f32.mrf.mxu0
    %2667 = vdwg.mxu0
    %2668 = vmatpush.bf16.msra.mxu0 %v2389
    %2669 = vmatpush.bf16.msra.mxu0 %v2385
    %2670 = vmatpush.bf16.msra.mxu0 %v2381
    %2671 = vmatpush.bf16.msra.mxu0 %v2377
    %2672 = vmatpush.bf16.msra.mxu0 %v2373
    %2673 = vmatpush.bf16.msra.mxu0 %v2369
    %2674 = vmatpush.bf16.msra.mxu0 %v2365
    %2675 = vmatpush.bf16.msra.mxu0 %v2361
    %2676 = vmatmul.bf16.gmra.mxu0 %v1840
    %v2677 = vpop.f32.mrf.mxu0
    %v2678 = vadd.f32 %v1973, %v2677
    %v2679 = vpop.f32.mrf.mxu0
    %2680 = vdwg.mxu0
    %2681 = vmatpush.bf16.msra.mxu0 %v2421
    %2682 = vmatpush.bf16.msra.mxu0 %v2417
    %2683 = vmatpush.bf16.msra.mxu0 %v2413
    %2684 = vmatpush.bf16.msra.mxu0 %v2409
    %2685 = vmatpush.bf16.msra.mxu0 %v2405
    %2686 = vmatpush.bf16.msra.mxu0 %v2401
    %2687 = vmatpush.bf16.msra.mxu0 %v2397
    %2688 = vmatpush.bf16.msra.mxu0 %v2393
    %2689 = vmatmul.bf16.gmra.mxu0 %v1841
    %v2690 = vpop.f32.mrf.mxu0
    %v2691 = vadd.f32 %v2678, %v2690
    %v2692 = vpop.f32.mrf.mxu0
    %2693 = vdwg.mxu0
    %2694 = vmatpush.bf16.msra.mxu0 %v2453
    %2695 = vmatpush.bf16.msra.mxu0 %v2449
    %2696 = vmatpush.bf16.msra.mxu0 %v2445
    %2697 = vmatpush.bf16.msra.mxu0 %v2441
    %2698 = vmatpush.bf16.msra.mxu0 %v2437
    %2699 = vmatpush.bf16.msra.mxu0 %v2433
    %2700 = vmatpush.bf16.msra.mxu0 %v2429
    %2701 = vmatpush.bf16.msra.mxu0 %v2425
    %2702 = vmatmul.bf16.gmra.mxu0 %v1842
    %v2703 = vpop.f32.mrf.mxu0
    %v2704 = vadd.f32 %v2691, %v2703
    %v2705 = vpop.f32.mrf.mxu0
    %2706 = vdwg.mxu0
    %2707 = vmatpush.bf16.msra.mxu0 %v2485
    %2708 = vmatpush.bf16.msra.mxu0 %v2481
    %2709 = vmatpush.bf16.msra.mxu0 %v2477
    %2710 = vmatpush.bf16.msra.mxu0 %v2473
    %2711 = vmatpush.bf16.msra.mxu0 %v2469
    %2712 = vmatpush.bf16.msra.mxu0 %v2465
    %2713 = vmatpush.bf16.msra.mxu0 %v2461
    %2714 = vmatpush.bf16.msra.mxu0 %v2457
    %2715 = vmatmul.bf16.gmra.mxu0 %v1843
    %v2716 = vpop.f32.mrf.mxu0
    %v2717 = vadd.f32 %v2704, %v2716
    %v2718 = vpop.f32.mrf.mxu0
    %2719 = vdwg.mxu0
    %2720 = vmatpush.bf16.msra.mxu0 %v2390
    %2721 = vmatpush.bf16.msra.mxu0 %v2386
    %2722 = vmatpush.bf16.msra.mxu0 %v2382
    %2723 = vmatpush.bf16.msra.mxu0 %v2378
    %2724 = vmatpush.bf16.msra.mxu0 %v2374
    %2725 = vmatpush.bf16.msra.mxu0 %v2370
    %2726 = vmatpush.bf16.msra.mxu0 %v2366
    %2727 = vmatpush.bf16.msra.mxu0 %v2362
    %2728 = vmatmul.bf16.gmra.mxu0 %v1840
    %v2729 = vpop.f32.mrf.mxu0
    %v2730 = vadd.f32 %v1974, %v2729
    %v2731 = vpop.f32.mrf.mxu0
    %2732 = vdwg.mxu0
    %2733 = vmatpush.bf16.msra.mxu0 %v2422
    %2734 = vmatpush.bf16.msra.mxu0 %v2418
    %2735 = vmatpush.bf16.msra.mxu0 %v2414
    %2736 = vmatpush.bf16.msra.mxu0 %v2410
    %2737 = vmatpush.bf16.msra.mxu0 %v2406
    %2738 = vmatpush.bf16.msra.mxu0 %v2402
    %2739 = vmatpush.bf16.msra.mxu0 %v2398
    %2740 = vmatpush.bf16.msra.mxu0 %v2394
    %2741 = vmatmul.bf16.gmra.mxu0 %v1841
    %v2742 = vpop.f32.mrf.mxu0
    %v2743 = vadd.f32 %v2730, %v2742
    %v2744 = vpop.f32.mrf.mxu0
    %2745 = vdwg.mxu0
    %2746 = vmatpush.bf16.msra.mxu0 %v2454
    %2747 = vmatpush.bf16.msra.mxu0 %v2450
    %2748 = vmatpush.bf16.msra.mxu0 %v2446
    %2749 = vmatpush.bf16.msra.mxu0 %v2442
    %2750 = vmatpush.bf16.msra.mxu0 %v2438
    %2751 = vmatpush.bf16.msra.mxu0 %v2434
    %2752 = vmatpush.bf16.msra.mxu0 %v2430
    %2753 = vmatpush.bf16.msra.mxu0 %v2426
    %2754 = vmatmul.bf16.gmra.mxu0 %v1842
    %v2755 = vpop.f32.mrf.mxu0
    %v2756 = vadd.f32 %v2743, %v2755
    %v2757 = vpop.f32.mrf.mxu0
    %2758 = vdwg.mxu0
    %2759 = vmatpush.bf16.msra.mxu0 %v2486
    %2760 = vmatpush.bf16.msra.mxu0 %v2482
    %2761 = vmatpush.bf16.msra.mxu0 %v2478
    %2762 = vmatpush.bf16.msra.mxu0 %v2474
    %2763 = vmatpush.bf16.msra.mxu0 %v2470
    %2764 = vmatpush.bf16.msra.mxu0 %v2466
    %2765 = vmatpush.bf16.msra.mxu0 %v2462
    %2766 = vmatpush.bf16.msra.mxu0 %v2458
    %2767 = vmatmul.bf16.gmra.mxu0 %v1843
    %v2768 = vpop.f32.mrf.mxu0
    %v2769 = vadd.f32 %v2756, %v2768
    %v2770 = vpop.f32.mrf.mxu0
    %2771 = vdwg.mxu0
    %2772 = vmatpush.bf16.msra.mxu0 %v2391
    %2773 = vmatpush.bf16.msra.mxu0 %v2387
    %2774 = vmatpush.bf16.msra.mxu0 %v2383
    %2775 = vmatpush.bf16.msra.mxu0 %v2379
    %2776 = vmatpush.bf16.msra.mxu0 %v2375
    %2777 = vmatpush.bf16.msra.mxu0 %v2371
    %2778 = vmatpush.bf16.msra.mxu0 %v2367
    %2779 = vmatpush.bf16.msra.mxu0 %v2363
    %2780 = vmatmul.bf16.gmra.mxu0 %v1840
    %v2781 = vpop.f32.mrf.mxu0
    %v2782 = vadd.f32 %v1975, %v2781
    %v2783 = vpop.f32.mrf.mxu0
    %2784 = vdwg.mxu0
    %2785 = vmatpush.bf16.msra.mxu0 %v2423
    %2786 = vmatpush.bf16.msra.mxu0 %v2419
    %2787 = vmatpush.bf16.msra.mxu0 %v2415
    %2788 = vmatpush.bf16.msra.mxu0 %v2411
    %2789 = vmatpush.bf16.msra.mxu0 %v2407
    %2790 = vmatpush.bf16.msra.mxu0 %v2403
    %2791 = vmatpush.bf16.msra.mxu0 %v2399
    %2792 = vmatpush.bf16.msra.mxu0 %v2395
    %2793 = vmatmul.bf16.gmra.mxu0 %v1841
    %v2794 = vpop.f32.mrf.mxu0
    %v2795 = vadd.f32 %v2782, %v2794
    %v2796 = vpop.f32.mrf.mxu0
    %2797 = vdwg.mxu0
    %2798 = vmatpush.bf16.msra.mxu0 %v2455
    %2799 = vmatpush.bf16.msra.mxu0 %v2451
    %2800 = vmatpush.bf16.msra.mxu0 %v2447
    %2801 = vmatpush.bf16.msra.mxu0 %v2443
    %2802 = vmatpush.bf16.msra.mxu0 %v2439
    %2803 = vmatpush.bf16.msra.mxu0 %v2435
    %2804 = vmatpush.bf16.msra.mxu0 %v2431
    %2805 = vmatpush.bf16.msra.mxu0 %v2427
    %2806 = vmatmul.bf16.gmra.mxu0 %v1842
    %v2807 = vpop.f32.mrf.mxu0
    %v2808 = vadd.f32 %v2795, %v2807
    %v2809 = vpop.f32.mrf.mxu0
    %2810 = vdwg.mxu0
    %2811 = vmatpush.bf16.msra.mxu0 %v2487
    %2812 = vmatpush.bf16.msra.mxu0 %v2483
    %2813 = vmatpush.bf16.msra.mxu0 %v2479
    %2814 = vmatpush.bf16.msra.mxu0 %v2475
    %2815 = vmatpush.bf16.msra.mxu0 %v2471
    %2816 = vmatpush.bf16.msra.mxu0 %v2467
    %2817 = vmatpush.bf16.msra.mxu0 %v2463
    %2818 = vmatpush.bf16.msra.mxu0 %v2459
    %2819 = vmatmul.bf16.gmra.mxu0 %v1843
    %v2820 = vpop.f32.mrf.mxu0
    %v2821 = vadd.f32 %v2808, %v2820
    %v2822 = vpop.f32.mrf.mxu0
    %2823 = vdwg.mxu0
    %v2824 = vmul.f32 %v2665, %v454
    %v2825 = vmul.f32 %v2717, %v454
    %v2826 = vmul.f32 %v2769, %v454
    %v2827 = vmul.f32 %v2821, %v454
    %v2828 = vrot.slane %v2824, 4
    %v2829 = vadd.f32 %v2824, %v2828
    %v2830 = vrot.slane %v2829, 2
    %v2831 = vadd.f32 %v2829, %v2830
    %v2832 = vrot.slane %v2831, 1
    %v2833 = vadd.f32 %v2831, %v2832
    %v2834 = vrot.slane %v2825, 4
    %v2835 = vadd.f32 %v2825, %v2834
    %v2836 = vrot.slane %v2835, 2
    %v2837 = vadd.f32 %v2835, %v2836
    %v2838 = vrot.slane %v2837, 1
    %v2839 = vadd.f32 %v2837, %v2838
    %v2840 = vrot.slane %v2826, 4
    %v2841 = vadd.f32 %v2826, %v2840
    %v2842 = vrot.slane %v2841, 2
    %v2843 = vadd.f32 %v2841, %v2842
    %v2844 = vrot.slane %v2843, 1
    %v2845 = vadd.f32 %v2843, %v2844
    %v2846 = vrot.slane %v2827, 4
    %v2847 = vadd.f32 %v2827, %v2846
    %v2848 = vrot.slane %v2847, 2
    %v2849 = vadd.f32 %v2847, %v2848
    %v2850 = vrot.slane %v2849, 1
    %v2851 = vadd.f32 %v2849, %v2850
    %v2852 = vmul.f32 %v2833, 0.25
    %v2853 = vmul.f32 %v2839, 0.25
    %v2854 = vmul.f32 %v2845, 0.25
    %v2855 = vmul.f32 %v2851, 0.25
    %v2856 = vsub.f32 %v2665, %v2852
    %v2857 = vsub.f32 %v2717, %v2853
    %v2858 = vsub.f32 %v2769, %v2854
    %v2859 = vsub.f32 %v2821, %v2855
    %v2860 = vmul.f32 %v2856, %v454
    %v2861 = vmul.f32 %v2857, %v454
    %v2862 = vmul.f32 %v2858, %v454
    %v2863 = vmul.f32 %v2859, %v454
    %v2864 = vmul.f32 %v2860, %v2860
    %v2865 = vmul.f32 %v2861, %v2861
    %v2866 = vmul.f32 %v2862, %v2862
    %v2867 = vmul.f32 %v2863, %v2863
    %v2868 = vrot.slane %v2864, 4
    %v2869 = vadd.f32 %v2864, %v2868
    %v2870 = vrot.slane %v2869, 2
    %v2871 = vadd.f32 %v2869, %v2870
    %v2872 = vrot.slane %v2871, 1
    %v2873 = vadd.f32 %v2871, %v2872
    %v2874 = vrot.slane %v2865, 4
    %v2875 = vadd.f32 %v2865, %v2874
    %v2876 = vrot.slane %v2875, 2
    %v2877 = vadd.f32 %v2875, %v2876
    %v2878 = vrot.slane %v2877, 1
    %v2879 = vadd.f32 %v2877, %v2878
    %v2880 = vrot.slane %v2866, 4
    %v2881 = vadd.f32 %v2866, %v2880
    %v2882 = vrot.slane %v2881, 2
    %v2883 = vadd.f32 %v2881, %v2882
    %v2884 = vrot.slane %v2883, 1
    %v2885 = vadd.f32 %v2883, %v2884
    %v2886 = vrot.slane %v2867, 4
    %v2887 = vadd.f32 %v2867, %v2886
    %v2888 = vrot.slane %v2887, 2
    %v2889 = vadd.f32 %v2887, %v2888
    %v2890 = vrot.slane %v2889, 1
    %v2891 = vadd.f32 %v2889, %v2890
    %v2892 = vmul.f32 %v2873, 0.25
    %v2893 = vmul.f32 %v2879, 0.25
    %v2894 = vmul.f32 %v2885, 0.25
    %v2895 = vmul.f32 %v2891, 0.25
    %v2896 = vperm.slane %v459, 0
    %v2897 = vperm.slane %v460, 0
    %v2898 = vperm.slane %v461, 0
    %v2899 = vperm.slane %v462, 0
    %v2900 = vmul.f32 %v2896, %v2856
    %v2901 = vmul.f32 %v2897, %v2857
    %v2902 = vmul.f32 %v2898, %v2858
    %v2903 = vmul.f32 %v2899, %v2859
    %v2904 = vadd.f32 %v2892, 1e-05
    %v2905 = vadd.f32 %v2893, 1e-05
    %v2906 = vadd.f32 %v2894, 1e-05
    %v2907 = vadd.f32 %v2895, 1e-05
    %v2908 = vrsqrt.pop %v2904
    %v2909 = vmul.f32 %v2908, %v2904
    %v2910 = vmul.f32 %v2909, %v2908
    %v2911 = vmul.f32 0.5, %v2910
    %v2912 = vsub.f32 1.5, %v2911
    %v2913 = vmul.f32 %v2908, %v2912
    %vm2914 = vweird.f32 %v2904
    %vm2915 = vweird.f32 %v2908
    %vm2916 = vmor %vm2914, %vm2915
    %v2917 = vsel %vm2916, %v2908, %v2913
    %v2918 = vrsqrt.pop %v2905
    %v2919 = vmul.f32 %v2918, %v2905
    %v2920 = vmul.f32 %v2919, %v2918
    %v2921 = vmul.f32 0.5, %v2920
    %v2922 = vsub.f32 1.5, %v2921
    %v2923 = vmul.f32 %v2918, %v2922
    %vm2924 = vweird.f32 %v2905
    %vm2925 = vweird.f32 %v2918
    %vm2926 = vmor %vm2924, %vm2925
    %v2927 = vsel %vm2926, %v2918, %v2923
    %v2928 = vrsqrt.pop %v2906
    %v2929 = vmul.f32 %v2928, %v2906
    %v2930 = vmul.f32 %v2929, %v2928
    %v2931 = vmul.f32 0.5, %v2930
    %v2932 = vsub.f32 1.5, %v2931
    %v2933 = vmul.f32 %v2928, %v2932
    %vm2934 = vweird.f32 %v2906
    %vm2935 = vweird.f32 %v2928
    %vm2936 = vmor %vm2934, %vm2935
    %v2937 = vsel %vm2936, %v2928, %v2933
    %v2938 = vrsqrt.pop %v2907
    %v2939 = vmul.f32 %v2938, %v2907
    %v2940 = vmul.f32 %v2939, %v2938
    %v2941 = vmul.f32 0.5, %v2940
    %v2942 = vsub.f32 1.5, %v2941
    %v2943 = vmul.f32 %v2938, %v2942
    %vm2944 = vweird.f32 %v2907
    %vm2945 = vweird.f32 %v2938
    %vm2946 = vmor %vm2944, %vm2945
    %v2947 = vsel %vm2946, %v2938, %v2943
    %v2948 = vmul.f32 %v2900, %v2917
    %v2949 = vmul.f32 %v2901, %v2927
    %v2950 = vmul.f32 %v2902, %v2937
    %v2951 = vmul.f32 %v2903, %v2947
    %v2952 = vperm.slane %v459, 1
    %v2953 = vperm.slane %v460, 1
    %v2954 = vperm.slane %v461, 1
    %v2955 = vperm.slane %v462, 1
    %v2956 = vadd.f32 %v2948, %v2952
    %v2957 = vadd.f32 %v2949, %v2953
    %v2958 = vadd.f32 %v2950, %v2954
    %v2959 = vadd.f32 %v2951, %v2955
    %v2960 = vmax.f32 %v2956, 0.0
    %v2961 = vmax.f32 %v2957, 0.0
    %v2962 = vmax.f32 %v2958, 0.0
    %v2963 = vmax.f32 %v2959, 0.0
    %v2964 = vperm.slane %v459, 2
    %v2965 = vperm.slane %v460, 2
    %v2966 = vperm.slane %v461, 2
    %v2967 = vperm.slane %v462, 2
    %v2968 = vmul.f32 %v2960, %v2964
    %v2969 = vmul.f32 %v2961, %v2965
    %v2970 = vmul.f32 %v2962, %v2966
    %v2971 = vmul.f32 %v2963, %v2967
    %v2972 = vadd.f32 %v2968, %v2969
    %v2973 = vadd.f32 %v2972, %v2970
    %v2974 = vadd.f32 %v2973, %v2971
    %2975 = vadd.xlane.f32.xlu0 %v2974
    %v2976 = vpop.xlane.xlu0 %2975
    %v2977 = vperm.slane %v459, 3
    %v2978 = vadd.f32 %v2976, %v2977
    %v2979 = vsub.f32 0.0, %v2978
    %v2980 = vmax.f32 %v2979, 0.0
    %v2981 = vand.u32 2147483647, %v2979
    %v2982 = vsub.f32 0.0, %v2981
    %v2983 = vmul.f32 %v2982, 1.442695
    %v2984 = vpow.pop %v2983
    %v2985 = vadd.f32 %v2984, 1.0
    %v2986 = vlog2.pop %v2985
    %v2987 = vmul.f32 %v2986, 0.6931472
    %v2988 = vadd.f32 %v2980, %v2987
    %vm2989 = vcmask 1024
    %v2990 = vsel %vm2989, %v2988, 0.0
    %v2991 = vrot.slane %v2990, 4
    %v2992 = vadd.f32 %v2990, %v2991
    %v2993 = vrot.slane %v2992, 2
    %v2994 = vadd.f32 %v2992, %v2993
    %v2995 = vrot.slane %v2994, 1
    %v2996 = vadd.f32 %v2994, %v2995
    %v2997 = vrcp.pop 2.0
    %v2998 = vmul.f32 2.0, %v2997
    %v2999 = vsub.f32 1.0, %v2998
    %v3000 = vmul.f32 %v2997, %v2999
    %v3001 = vadd.f32 %v2997, %v3000
    %vm3002 = vweird.f32 %v2997
    %v3003 = vsel %vm3002, %v2997, %v3001
    %v3004 = vmul.f32 %v2996, %v3003
    %v3005 = vmax.f32 %v2978, 0.0
    %v3006 = vand.u32 2147483647, %v2978
    %v3007 = vsub.f32 0.0, %v3006
    %v3008 = vmul.f32 %v3007, 1.442695
    %v3009 = vpow.pop %v3008
    %v3010 = vadd.f32 %v3009, 1.0
    %v3011 = vlog2.pop %v3010
    %v3012 = vmul.f32 %v3011, 0.6931472
    %v3013 = vadd.f32 %v3005, %v3012
    %v3015 = vrot.slane %v3013, 2
    %v3017 = vsel %vm2989, %v3015, 0.0
    %v3018 = vrot.slane %v3017, 4
    %v3019 = vadd.f32 %v3017, %v3018
    %v3020 = vrot.slane %v3019, 2
    %v3021 = vadd.f32 %v3019, %v3020
    %v3022 = vrot.slane %v3021, 1
    %v3023 = vadd.f32 %v3021, %v3022
    %v3024 = vmul.f32 %v3023, %v3003
    %v3025 = vadd.f32 %v3004, %v3024
    %v3026 = vmul.f32 %v3025, 0.5
    %vm3027 = vcmp.ge.f32.partialorder %v2978, 0.0
    %v3028 = vsel %vm3027, 1, 0
    %v3029 = vcvt.s32.f32 %v3028
    %v3030 = vsel %vm2989, %v3029, 0.0
    %v3031 = vrot.slane %v3030, 4
    %v3032 = vadd.f32 %v3030, %v3031
    %v3033 = vrot.slane %v3032, 2
    %v3034 = vadd.f32 %v3032, %v3033
    %v3035 = vrot.slane %v3034, 1
    %v3036 = vadd.f32 %v3034, %v3035
    %v3037 = vmul.f32 %v3036, %v3003
    %v3038 = vmul.f32 %v3037, 100.0
    %vm3039 = vcmp.lt.f32.partialorder %v2978, 0.0
    %v3040 = vsel %vm3039, 1, 0
    %v3041 = vcvt.s32.f32 %v3040
    %v3043 = vrot.slane %v3041, 2
    %v3045 = vsel %vm2989, %v3043, 0.0
    %v3046 = vrot.slane %v3045, 4
    %v3047 = vadd.f32 %v3045, %v3046
    %v3048 = vrot.slane %v3047, 2
    %v3049 = vadd.f32 %v3047, %v3048
    %v3050 = vrot.slane %v3049, 1
    %v3051 = vadd.f32 %v3049, %v3050
    %v3052 = vmul.f32 %v3051, %v3003
    %v3053 = vmul.f32 %v3052, 100.0
    %v3054 = vadd.f32 %v3038, %v3053
    %v3055 = vmul.f32 %v3054, 0.5
    %v3056 = vlaneseq
    %v3057 = vand.u32 %v3056, 127
    %vm3058 = vcmp.eq.s32.totalorder %v3057, 0
    %v3059 = vsel %vm3058, %v1207, 0.0
    %vm3060 = vcmp.eq.s32.totalorder %v3057, 1
    %3062 = vset.pattern.permute.xlu0 0
    %3063 = vperm.xlu0 %3062, %v3026
    %v3064 = vpop.permute.xlu0 %3063
    %v3066 = vsel %vm3060, %v3064, 0.0
    %v3067 = vadd.f32 %v3059, %v3066
    %vm3068 = vcmp.eq.s32.totalorder %v3057, 2
    %3070 = vset.pattern.permute.xlu0 0
    %3071 = vperm.xlu0 %3070, %v3055
    %v3072 = vpop.permute.xlu0 %3071
    %v3074 = vsel %vm3068, %v3072, 0.0
    %v3075 = vadd.f32 %v3067, %v3074
    %3076 = vst [vmem:[%s8] sm:$0x1] %v3075
  $region37: #{_lambda_.1} parent=0 // pred_fallthru
    _
  // Predicated region
  $region38: #{_lambda_.1} parent=0 // pred_check
    _
  $region39: #{_lambda_.1} parent=0 // pred_check_branch
    %3078 = sbr.rel (0) target = $region41
  $region40: #{_lambda_.1} parent=0 // pred_region
    _
  $region41: #{_lambda_.1} parent=0 // pred_fallthru
    _
  // Predicated region
  $region42: #{_lambda_.1} parent=0 // pred_check
    _
  $region43: #{_lambda_.1} parent=0 // pred_check_branch
    %3080 = sbr.rel (0) target = $region45
  $region44: #{_lambda_.1} parent=0 // pred_region
    _
  $region45: #{_lambda_.1} parent=0 // pred_fallthru
    _
  // Predicated region
  $region46: #{_lambda_.1} parent=0 // pred_check
    _
  $region47: #{_lambda_.1} parent=0 // pred_check_branch
    %3082 = sbr.rel (0) target = $region49
  $region48: #{_lambda_.1} parent=0 // pred_region
    _
  $region49: #{_lambda_.1} parent=0 // pred_fallthru
    _
  // Predicated region
  $region50: #{_lambda_.1} parent=0 // pred_check
    _
  $region51: #{_lambda_.1} parent=0 // pred_check_branch
    %3084 = sbr.rel (0) target = $region53
  $region52: #{_lambda_.1} parent=0 // pred_region
    _
  $region53: #{_lambda_.1} parent=0 // pred_fallthru
    _

</llo_original>
